<compile_context>
chip_gen: v7x
topology: tpu7x:2x2x1
jax: 0.10.0
libtpu: 0.0.40
codegen_flags: <defaults>
</compile_context>

<pallas_src>
import jax
import jax.numpy as jnp
from jax.experimental import pallas as pl
from jax.experimental.pallas import tpu as pltpu


# ---------------------------------------------------------------------------
# In-kernel helpers (operate on values already resident in VMEM/vregs)
# ---------------------------------------------------------------------------

def _temporal_glu(z, w_ref, b_ref):
    """Causal temporal conv (valid) + GLU on a (Bb, T, V*C_in) value.

    w_ref: (kt*V*C_in, 2*V*C_out) bf16 -- im2col-folded per-shift block-diagonal
           weights; the aligned GLU residual is folded into the P half of the
           k = kt-1 row block.
    b_ref: (1, 2*V*C_out) f32
    One MXU GEMM with K = kt*V*C_in (replaces a kt-step accumulate loop).
    """
    bb, t, vc_in = z.shape
    kt = w_ref.shape[0] // vc_in
    n = w_ref.shape[1] // 2
    t_out = t - kt + 1
    rows = bb * t_out
    # Static im2col: concat the kt shifted time windows along the lane axis.
    cols = jnp.concatenate([z[:, k:k + t_out, :] for k in range(kt)], axis=-1)
    cols = cols.reshape(rows, kt * vc_in).astype(jnp.bfloat16)
    acc = jnp.dot(cols, w_ref[...], preferred_element_type=jnp.float32)
    acc = acc + b_ref[...]
    p = acc[:, :n]          # P half (residual + align bias already folded in)
    q = acc[:, n:]          # Q half (gate)
    return (p * jax.nn.sigmoid(q)).reshape(bb, t_out, n)


def _layernorm(x2, g, b, eps=1e-5):
    """Row-wise LayerNorm of a (rows, V*C) value == nn.LayerNorm([V, C])."""
    mu = jnp.mean(x2, axis=-1, keepdims=True)
    var = jnp.mean(jnp.square(x2 - mu), axis=-1, keepdims=True)
    return (x2 - mu) * jax.lax.rsqrt(var + eps) * g + b


# ---------------------------------------------------------------------------
# Fully fused kernel: all ST blocks + OutputBlock + global pool
# ---------------------------------------------------------------------------

def _make_fused_kernel(n_st_blocks):
    def kernel(*refs):
        x_ref = refs[0]
        o_ref = refs[-1]
        idx = 1
        z = x_ref[...].astype(jnp.float32)                 # (Bb, T, V*C_in)

        for _ in range(n_st_blocks):
            w1, b1, wg, bg, w2, b2, lng, lnb = refs[idx:idx + 8]
            idx += 8
            # Temporal GLU 1 (align + residual folded into weights)
            z = _temporal_glu(z, w1, b1)
            # Graph conv: align + gso-mix + channel-mix + bias + residual folded
            # into a single (V*c1, V*cg) matrix; then ReLU.
            bb, t, n_in = z.shape
            y = jnp.dot(z.reshape(bb * t, n_in).astype(jnp.bfloat16), wg[...],
                        preferred_element_type=jnp.float32) + bg[...]
            z = jnp.maximum(y, 0.0).reshape(bb, t, wg.shape[1])
            # Temporal GLU 2
            z = _temporal_glu(z, w2, b2)
            # LayerNorm over (V, C).  nn.Dropout is identity in eval mode.
            bb, t, n = z.shape
            z = _layernorm(z.reshape(bb * t, n), lng[...], lnb[...]).reshape(bb, t, n)

        # OutputBlock: temporal GLU (Ko) -> LN -> FC1+ReLU -> FC2 (vertex pool
        # folded into wf2) -> time mean.
        wt, bt, lng, lnb, wf1, bf1, wf2, bf2 = refs[idx:idx + 8]
        z = _temporal_glu(z, wt, bt)                        # (Bb, T-Ko+1, V*c0)
        bb, t, n = z.shape
        x2 = _layernorm(z.reshape(bb * t, n), lng[...], lnb[...])
        h = jnp.maximum(jnp.dot(x2.astype(jnp.bfloat16), wf1[...],
                                preferred_element_type=jnp.float32) + bf1[...], 0.0)
        y = jnp.dot(h.astype(jnp.bfloat16), wf2[...],
                    preferred_element_type=jnp.float32) + bf2[...]   # (Bb*t, end_c)
        end_c = o_ref.shape[-1]
        o_ref[...] = jnp.mean(y.reshape(bb, t, end_c), axis=1).astype(o_ref.dtype)

    return kernel


def _const_index_map(ndim):
    zeros = (0,) * ndim
    return lambda i: zeros


def stgcn_fused_call(z, fparams):
    """z: (B, T, V*C_in) -> (B, end_c).  Single pallas_call for the full net."""
    bsz, t, vc_in = z.shape
    end_c = fparams["out"]["bf2"].shape[1]

    weights = []
    for blk in fparams["st"]:
        weights += [blk["w1"], blk["b1"], blk["wg"], blk["bg"],
                    blk["w2"], blk["b2"], blk["lng"], blk["lnb"]]
    ob = fparams["out"]
    weights += [ob["wt"], ob["bt"], ob["lng"], ob["lnb"],
                ob["wf1"], ob["bf1"], ob["wf2"], ob["bf2"]]

    # Whole batch per grid step at these shapes (maximizes GEMM M = B*T_out).
    # TODO(synk): for large batches, tile bb into 8-32-element chunks so v7x's
    # two TensorCores each get grid steps (dimension_semantics already set).
    bb = bsz
    grid = (bsz // bb,)
    in_specs = [pl.BlockSpec((bb, t, vc_in), lambda i: (i, 0, 0))]
    for w in weights:
        in_specs.append(pl.BlockSpec(w.shape, _const_index_map(w.ndim)))

    return pl.pallas_call(
        _make_fused_kernel(len(fparams["st"])),
        out_shape=jax.ShapeDtypeStruct((bsz, end_c), z.dtype),
        grid=grid,
        in_specs=in_specs,
        out_specs=pl.BlockSpec((bb, end_c), lambda i: (i, 0)),
        compiler_params=pltpu.CompilerParams(dimension_semantics=("parallel",)),
    )(z, *weights)


# ---------------------------------------------------------------------------
# Parameter folding (runs once, in plain JAX, at setup time)
# ---------------------------------------------------------------------------
# TODO(synk): when loading real PyTorch weights, Conv2d (out,in,kt,1) / Linear
# (out,in) layouts must be permuted into the (kt*c_in, 2*c_out) / (in,out)
# raw layouts used below before folding.
# TODO(synk): sub-128 lane widths (V*C = 64 here) could additionally be
# zero-padded to 128 in the fold; skipped at these toy shapes because
# LayerNorm would then need an explicit true-feature-count correction.

def _align_mat(c_in, c_out, align):
    """Align op as a (c_in, c_out) matrix + (c_out,) bias (1x1 conv / pad / id)."""
    if align is not None:                                    # 1x1 conv (c_in > c_out)
        return align
    if c_in < c_out:                                         # zero-pad channels
        a = jnp.concatenate([jnp.eye(c_in, dtype=jnp.float32),
                             jnp.zeros((c_in, c_out - c_in), jnp.float32)], axis=1)
    else:                                                    # identity
        a = jnp.eye(c_in, dtype=jnp.float32)
    return a, jnp.zeros((c_out,), jnp.float32)


def _fold_temporal(w_flat, bias, kt, c_in, c_out, align, v):
    """Fold temporal conv + GLU residual align into (kt*V*c_in, 2*V*c_out) bf16."""
    a, ab = _align_mat(c_in, c_out, align)
    eye_v = jnp.eye(v, dtype=jnp.float32)
    blocks = []
    for k in range(kt):
        wk = w_flat[k * c_in:(k + 1) * c_in, :]              # (c_in, 2*c_out)
        wp = jnp.kron(eye_v, wk[:, :c_out])
        wq = jnp.kron(eye_v, wk[:, c_out:])
        if k == kt - 1:
            wp = wp + jnp.kron(eye_v, a)                     # GLU residual (aligned)
        blocks.append(jnp.concatenate([wp, wq], axis=1))     # (V*c_in, 2*V*c_out)
    w = jnp.concatenate(blocks, axis=0)                      # (kt*V*c_in, 2*V*c_out)
    b = jnp.concatenate([jnp.tile(bias[:c_out], v) + jnp.tile(ab, v),
                         jnp.tile(bias[c_out:], v)]).reshape(1, -1)
    return w.astype(jnp.bfloat16), b


def _fold_graph_conv(gc_w, gc_b, c_in, align, gso, v):
    """align + (gso-mix, channel-mix, bias) + residual as one (V*c_in, V*cg) GEMM."""
    cg = gc_w.shape[0]
    a, ab = _align_mat(c_in, cg, align)
    eye_v = jnp.eye(v, dtype=jnp.float32)
    a_big = jnp.kron(eye_v, a)                               # align
    g = jnp.kron(gso.T, gc_w) + jnp.eye(v * cg, dtype=jnp.float32)   # gso⊗W + residual
    w = a_big @ g
    b = jnp.tile(ab, v) @ g + jnp.tile(gc_b, v)
    return w.astype(jnp.bfloat16), b.reshape(1, -1)


def fold_params(raw, gso, v, kt, ko):
    folded = {"st": []}
    for blk in raw["st"]:
        c_in = blk["c_in"]
        c1, cg, c2 = blk["ch"]
        w1, b1 = _fold_temporal(blk["tc1_w"], blk["tc1_b"], kt, c_in, c1,
                                blk["tc1_align"], v)
        wg, bg = _fold_graph_conv(blk["gc_w"], blk["gc_b"], c1,
                                  blk["gc_align"], gso, v)
        w2, b2 = _fold_temporal(blk["tc2_w"], blk["tc2_b"], kt, cg, c2,
                                blk["tc2_align"], v)
        folded["st"].append({"w1": w1, "b1": b1, "wg": wg, "bg": bg,
                             "w2": w2, "b2": b2,
                             "lng": blk["ln_g"].reshape(1, -1),
                             "lnb": blk["ln_b"].reshape(1, -1)})
    ob = raw["out"]
    c_in = ob["c_in"]
    c0, _, _ = ob["ch"]
    wt, bt = _fold_temporal(ob["tc_w"], ob["tc_b"], ko, c_in, c0,
                            ob["tc_align"], v)
    eye_v = jnp.eye(v, dtype=jnp.float32)
    ones_v = jnp.ones((v, 1), jnp.float32) / v               # vertex average fold
    folded["out"] = {
        "wt": wt, "bt": bt,
        "lng": ob["ln_g"].reshape(1, -1), "lnb": ob["ln_b"].reshape(1, -1),
        "wf1": jnp.kron(eye_v, ob["fc1_w"]).astype(jnp.bfloat16),
        "bf1": jnp.tile(ob["fc1_b"], v).reshape(1, -1),
        "wf2": jnp.kron(ones_v, ob["fc2_w"]).astype(jnp.bfloat16),
        "bf2": ob["fc2_b"].reshape(1, -1),
    }
    return folded


# ---------------------------------------------------------------------------
# Raw (logical) parameters, forward pass, and pure-JAX reference
# ---------------------------------------------------------------------------

def init_params(key, blocks, kt, ko, n_vertex):
    keys = iter(jax.random.split(key, 64))

    def nrm(shape):
        return jax.random.normal(next(keys), shape, jnp.float32) * 0.1

    def align_p(c_in, c_out):
        return (nrm((c_in, c_out)), nrm((c_out,))) if c_in > c_out else None

    raw = {"st": []}
    last_c = blocks[0][-1]
    for l in range(len(blocks) - 3):
        ch = blocks[l + 1]
        raw["st"].append({
            "c_in": last_c, "ch": tuple(ch),
            "tc1_w": nrm((kt * last_c, 2 * ch[0])), "tc1_b": nrm((2 * ch[0],)),
            "tc1_align": align_p(last_c, ch[0]),
            "gc_align": align_p(ch[0], ch[1]),
            "gc_w": nrm((ch[1], ch[1])), "gc_b": nrm((ch[1],)),
            "tc2_w": nrm((kt * ch[1], 2 * ch[2])), "tc2_b": nrm((2 * ch[2],)),
            "tc2_align": align_p(ch[1], ch[2]),
            "ln_g": jnp.ones((n_vertex, ch[2]), jnp.float32),
            "ln_b": jnp.zeros((n_vertex, ch[2]), jnp.float32),
        })
        last_c = ch[2]
    out_ch = blocks[-2]
    end_c = blocks[-1][0]
    raw["out"] = {
        "c_in": last_c, "ch": (out_ch[0], out_ch[1], end_c),
        "tc_w": nrm((ko * last_c, 2 * out_ch[0])), "tc_b": nrm((2 * out_ch[0],)),
        "tc_align": align_p(last_c, out_ch[0]),
        "ln_g": jnp.ones((n_vertex, out_ch[0]), jnp.float32),
        "ln_b": jnp.zeros((n_vertex, out_ch[0]), jnp.float32),
        "fc1_w": nrm((out_ch[0], out_ch[1])), "fc1_b": nrm((out_ch[1],)),
        "fc2_w": nrm((out_ch[1], end_c)), "fc2_b": nrm((end_c,)),
    }
    return raw


def stgcn_forward(x_nchw, fparams):
    """x_nchw: (batch, features, time, vertex) -> (batch, end_channel)."""
    x = jnp.transpose(x_nchw, (0, 2, 3, 1))          # NCHW -> (B, T, V, C) (tiny glue)
    b, t, v, c = x.shape
    z = x.reshape(b, t, v * c)                       # lane-dense V*C slab
    return stgcn_fused_call(z, fparams)
    # TODO(synk): the Ko == 0 branch of STGCNGraphConv is not exercised by this
    # config (Ko = 4 > 1); only the OutputBlock path is implemented.


# ----- pure-JAX reference (used only for the in-script correctness check) ---

def _ref_align(x, c_out, align):
    b, t, v, c = x.shape
    if c > c_out:
        a, ab = align
        return jnp.einsum("btvc,co->btvo", x, a) + ab
    if c < c_out:
        return jnp.concatenate([x, jnp.zeros((b, t, v, c_out - c), x.dtype)], -1)
    return x


def _ref_temporal_glu(x, w_flat, bias, kt, c_out, align):
    t_out = x.shape[1] - kt + 1
    x_res = _ref_align(x, c_out, align)[:, kt - 1:]
    cols = jnp.concatenate([x[:, k:k + t_out] for k in range(kt)], axis=-1)
    y = jnp.einsum("btvk,kn->btvn", cols, w_flat) + bias
    return (y[..., :c_out] + x_res) * jax.nn.sigmoid(y[..., c_out:])


def _ref_graph_conv(x, gc_w, gc_b, align, gso):
    x_al = _ref_align(x, gc_w.shape[0], align)
    mixed = jnp.einsum("hv,btvc->bthc", gso, x_al)
    y = jnp.einsum("bthc,cj->bthj", mixed, gc_w) + gc_b + x_al
    return jnp.maximum(y, 0.0)


def _ref_layernorm(x, g, b, eps=1e-5):
    mu = x.mean(axis=(-2, -1), keepdims=True)
    var = ((x - mu) ** 2).mean(axis=(-2, -1), keepdims=True)
    return (x - mu) * jax.lax.rsqrt(var + eps) * g + b


def reference_forward(x_nchw, raw, gso, kt):
    x = jnp.transpose(x_nchw, (0, 2, 3, 1))
    for blk in raw["st"]:
        c1, _, c2 = blk["ch"]
        x = _ref_temporal_glu(x, blk["tc1_w"], blk["tc1_b"], kt, c1, blk["tc1_align"])
        x = _ref_graph_conv(x, blk["gc_w"], blk["gc_b"], blk["gc_align"], gso)
        x = _ref_temporal_glu(x, blk["tc2_w"], blk["tc2_b"], kt, c2, blk["tc2_align"])
        x = _ref_layernorm(x, blk["ln_g"], blk["ln_b"])
    ob = raw["out"]
    c0, _, _ = ob["ch"]
    x = _ref_temporal_glu(x, ob["tc_w"], ob["tc_b"], x.shape[1], c0, ob["tc_align"])
    x = _ref_layernorm(x, ob["ln_g"], ob["ln_b"])
    x = jnp.maximum(jnp.einsum("btvc,co->btvo", x, ob["fc1_w"]) + ob["fc1_b"], 0.0)
    x = jnp.einsum("btvc,co->btvo", x, ob["fc2_w"]) + ob["fc2_b"]
    return x.mean(axis=(1, 2))


def make_gso(n_vertex):
    """Symmetrically-normalized ring adjacency with self loops (deterministic)."""
    idx = jnp.arange(n_vertex)
    a = jnp.zeros((n_vertex, n_vertex), jnp.float32)
    a = a.at[idx, (idx + 1) % n_vertex].set(1.0)
    a = a.at[(idx + 1) % n_vertex, idx].set(1.0)
    a_hat = a + jnp.eye(n_vertex, dtype=jnp.float32)
    d_inv_sqrt = 1.0 / jnp.sqrt(jnp.sum(a_hat, axis=1))
    return a_hat * d_inv_sqrt[:, None] * d_inv_sqrt[None, :]


if __name__ == "__main__":
    # args.Kt=3, args.n_his=12, act_func='glu', graph_conv_type='graph_conv';
    # Ks is unused by the plain graph_conv path.
    B, C_IN, N_HIS, N_VERTEX = 2, 4, 12, 16
    KT = 3
    blocks = [[C_IN], [8, 4, 8], [8, 4, 8], [16, 16], [1]]
    KO = N_HIS - (len(blocks) - 3) * 2 * (KT - 1)    # = 4  (> 1 -> OutputBlock path)

    key = jax.random.PRNGKey(0)
    kx, kp = jax.random.split(key)
    x = jax.random.normal(kx, (B, C_IN, N_HIS, N_VERTEX), jnp.float32)   # NCHW input
    gso = make_gso(N_VERTEX)
    raw_params = init_params(kp, blocks, KT, KO, N_VERTEX)
    fparams = fold_params(raw_params, gso, N_VERTEX, KT, KO)             # one-time fold

    fwd = jax.jit(lambda inp: stgcn_forward(inp, fparams))
    out = jax.block_until_ready(fwd(x))
    assert out.shape == (B, blocks[-1][0]) and out.dtype == jnp.float32

    # Numerical check of the fused/folded bf16-GEMM kernel vs. a plain-f32
    # JAX reference (tolerance loosened slightly for bf16 MXU operands).
    ref = jax.block_until_ready(reference_forward(x, raw_params, gso, KT))
    assert jnp.allclose(out, ref, rtol=2e-2, atol=2e-2), (out, ref)

    print("KERNEL_OK")
</pallas_src>

<mosaic_0001>
module attributes {stable_mosaic.version = 11 : i64} {
  func.func @kernel(%arg0: i32, %arg1: memref<2x12x64xf32, #tpu.memory_space<vmem>>, %arg2: memref<192x256xbf16, #tpu.memory_space<vmem>>, %arg3: memref<1x256xf32, #tpu.memory_space<vmem>>, %arg4: memref<128x64xbf16, #tpu.memory_space<vmem>>, %arg5: memref<1x64xf32, #tpu.memory_space<vmem>>, %arg6: memref<192x256xbf16, #tpu.memory_space<vmem>>, %arg7: memref<1x256xf32, #tpu.memory_space<vmem>>, %arg8: memref<1x128xf32, #tpu.memory_space<vmem>>, %arg9: memref<1x128xf32, #tpu.memory_space<vmem>>, %arg10: memref<384x256xbf16, #tpu.memory_space<vmem>>, %arg11: memref<1x256xf32, #tpu.memory_space<vmem>>, %arg12: memref<128x64xbf16, #tpu.memory_space<vmem>>, %arg13: memref<1x64xf32, #tpu.memory_space<vmem>>, %arg14: memref<192x256xbf16, #tpu.memory_space<vmem>>, %arg15: memref<1x256xf32, #tpu.memory_space<vmem>>, %arg16: memref<1x128xf32, #tpu.memory_space<vmem>>, %arg17: memref<1x128xf32, #tpu.memory_space<vmem>>, %arg18: memref<512x512xbf16, #tpu.memory_space<vmem>>, %arg19: memref<1x512xf32, #tpu.memory_space<vmem>>, %arg20: memref<1x256xf32, #tpu.memory_space<vmem>>, %arg21: memref<1x256xf32, #tpu.memory_space<vmem>>, %arg22: memref<256x256xbf16, #tpu.memory_space<vmem>>, %arg23: memref<1x256xf32, #tpu.memory_space<vmem>>, %arg24: memref<256x1xbf16, #tpu.memory_space<vmem>>, %arg25: memref<1x1xf32, #tpu.memory_space<vmem>>, %arg26: memref<2x1xf32, #tpu.memory_space<vmem>>) attributes {dimension_semantics = [#tpu.dimension_semantics<parallel>], iteration_bounds = array<i64: 1>, scalar_prefetch = 0 : i64, scratch_operands = 0 : i64, tpu.core_type = #tpu.core_type<tc>, window_params = [{transform_indices = @transform_0, window_bounds = array<i64: 2, 12, 64>}, {pipeline_mode = #tpu.pipeline_mode<synchronous>, transform_indices = @transform_1, window_bounds = array<i64: 192, 256>}, {pipeline_mode = #tpu.pipeline_mode<synchronous>, transform_indices = @transform_2, window_bounds = array<i64: 1, 256>}, {pipeline_mode = #tpu.pipeline_mode<synchronous>, transform_indices = @transform_3, window_bounds = array<i64: 128, 64>}, {pipeline_mode = #tpu.pipeline_mode<synchronous>, transform_indices = @transform_4, window_bounds = array<i64: 1, 64>}, {pipeline_mode = #tpu.pipeline_mode<synchronous>, transform_indices = @transform_5, window_bounds = array<i64: 192, 256>}, {pipeline_mode = #tpu.pipeline_mode<synchronous>, transform_indices = @transform_6, window_bounds = array<i64: 1, 256>}, {pipeline_mode = #tpu.pipeline_mode<synchronous>, transform_indices = @transform_7, window_bounds = array<i64: 1, 128>}, {pipeline_mode = #tpu.pipeline_mode<synchronous>, transform_indices = @transform_8, window_bounds = array<i64: 1, 128>}, {pipeline_mode = #tpu.pipeline_mode<synchronous>, transform_indices = @transform_9, window_bounds = array<i64: 384, 256>}, {pipeline_mode = #tpu.pipeline_mode<synchronous>, transform_indices = @transform_10, window_bounds = array<i64: 1, 256>}, {pipeline_mode = #tpu.pipeline_mode<synchronous>, transform_indices = @transform_11, window_bounds = array<i64: 128, 64>}, {pipeline_mode = #tpu.pipeline_mode<synchronous>, transform_indices = @transform_12, window_bounds = array<i64: 1, 64>}, {pipeline_mode = #tpu.pipeline_mode<synchronous>, transform_indices = @transform_13, window_bounds = array<i64: 192, 256>}, {pipeline_mode = #tpu.pipeline_mode<synchronous>, transform_indices = @transform_14, window_bounds = array<i64: 1, 256>}, {pipeline_mode = #tpu.pipeline_mode<synchronous>, transform_indices = @transform_15, window_bounds = array<i64: 1, 128>}, {pipeline_mode = #tpu.pipeline_mode<synchronous>, transform_indices = @transform_16, window_bounds = array<i64: 1, 128>}, {pipeline_mode = #tpu.pipeline_mode<synchronous>, transform_indices = @transform_17, window_bounds = array<i64: 512, 512>}, {pipeline_mode = #tpu.pipeline_mode<synchronous>, transform_indices = @transform_18, window_bounds = array<i64: 1, 512>}, {pipeline_mode = #tpu.pipeline_mode<synchronous>, transform_indices = @transform_19, window_bounds = array<i64: 1, 256>}, {pipeline_mode = #tpu.pipeline_mode<synchronous>, transform_indices = @transform_20, window_bounds = array<i64: 1, 256>}, {pipeline_mode = #tpu.pipeline_mode<synchronous>, transform_indices = @transform_21, window_bounds = array<i64: 256, 256>}, {pipeline_mode = #tpu.pipeline_mode<synchronous>, transform_indices = @transform_22, window_bounds = array<i64: 1, 256>}, {pipeline_mode = #tpu.pipeline_mode<synchronous>, transform_indices = @transform_23, window_bounds = array<i64: 256, 1>}, {pipeline_mode = #tpu.pipeline_mode<synchronous>, transform_indices = @transform_24, window_bounds = array<i64: 1, 1>}, {transform_indices = @transform_25, window_bounds = array<i64: 2, 1>}]} {
    %c0 = arith.constant 0 : index
    %c0_0 = arith.constant 0 : index
    %c0_1 = arith.constant 0 : index
    %0 = vector.load %arg1[%c0, %c0_0, %c0_1] : memref<2x12x64xf32, #tpu.memory_space<vmem>>, vector<2x12x64xf32>
    %1 = vector.extract_strided_slice %0 {offsets = [0, 0, 0], sizes = [2, 10, 64], strides = [1, 1, 1]} : vector<2x12x64xf32> to vector<2x10x64xf32>
    %2 = vector.extract_strided_slice %0 {offsets = [0, 1, 0], sizes = [2, 10, 64], strides = [1, 1, 1]} : vector<2x12x64xf32> to vector<2x10x64xf32>
    %3 = vector.extract_strided_slice %0 {offsets = [0, 2, 0], sizes = [2, 10, 64], strides = [1, 1, 1]} : vector<2x12x64xf32> to vector<2x10x64xf32>
    %4 = tpu.concatenate %1, %2, %3 in 2 : vector<2x10x64xf32>, vector<2x10x64xf32>, vector<2x10x64xf32> -> vector<2x10x192xf32>
    %5 = vector.shape_cast %4 : vector<2x10x192xf32> to vector<20x192xf32>
    %6 = arith.truncf %5 : vector<20x192xf32> to vector<20x192xbf16>
    %c0_2 = arith.constant 0 : index
    %c0_3 = arith.constant 0 : index
    %7 = vector.load %arg2[%c0_2, %c0_3] : memref<192x256xbf16, #tpu.memory_space<vmem>>, vector<192x256xbf16>
    %cst = arith.constant dense<0.000000e+00> : vector<20x256xf32>
    %8 = tpu.matmul %6, %7, %cst {dimension_numbers = #tpu.dot_dimension_numbers<[1], [0], [0], [1], [0, 0, 1, 1], [], []>} : vector<20x192xbf16>, vector<192x256xbf16>, vector<20x256xf32> -> vector<20x256xf32>
    %c0_4 = arith.constant 0 : index
    %c0_5 = arith.constant 0 : index
    %9 = vector.load %arg3[%c0_4, %c0_5] : memref<1x256xf32, #tpu.memory_space<vmem>>, vector<1x256xf32>
    %10 = vector.broadcast %9 : vector<1x256xf32> to vector<20x256xf32>
    %11 = arith.addf %8, %10 : vector<20x256xf32>
    %12 = vector.extract_strided_slice %11 {offsets = [0, 0], sizes = [20, 128], strides = [1, 1]} : vector<20x256xf32> to vector<20x128xf32>
    %13 = vector.extract_strided_slice %11 {offsets = [0, 128], sizes = [20, 128], strides = [1, 1]} : vector<20x256xf32> to vector<20x128xf32>
    %14 = arith.negf %13 : vector<20x128xf32>
    %15 = math.exp %14 : vector<20x128xf32>
    %cst_6 = arith.constant 1.000000e+00 : f32
    %16 = vector.broadcast %cst_6 : f32 to vector<20x128xf32>
    %17 = arith.addf %16, %15 : vector<20x128xf32>
    %18 = arith.divf %16, %17 : vector<20x128xf32>
    %19 = arith.mulf %12, %18 : vector<20x128xf32>
    %20 = vector.shape_cast %19 : vector<20x128xf32> to vector<2x10x128xf32>
    %21 = vector.shape_cast %20 : vector<2x10x128xf32> to vector<20x128xf32>
    %22 = arith.truncf %21 : vector<20x128xf32> to vector<20x128xbf16>
    %c0_7 = arith.constant 0 : index
    %c0_8 = arith.constant 0 : index
    %23 = vector.load %arg4[%c0_7, %c0_8] : memref<128x64xbf16, #tpu.memory_space<vmem>>, vector<128x64xbf16>
    %cst_9 = arith.constant dense<0.000000e+00> : vector<20x64xf32>
    %24 = tpu.matmul %22, %23, %cst_9 {dimension_numbers = #tpu.dot_dimension_numbers<[1], [0], [0], [1], [0, 0, 1, 1], [], []>} : vector<20x128xbf16>, vector<128x64xbf16>, vector<20x64xf32> -> vector<20x64xf32>
    %c0_10 = arith.constant 0 : index
    %c0_11 = arith.constant 0 : index
    %25 = vector.load %arg5[%c0_10, %c0_11] : memref<1x64xf32, #tpu.memory_space<vmem>>, vector<1x64xf32>
    %26 = vector.broadcast %25 : vector<1x64xf32> to vector<20x64xf32>
    %27 = arith.addf %24, %26 : vector<20x64xf32>
    %cst_12 = arith.constant 0.000000e+00 : f32
    %28 = vector.broadcast %cst_12 : f32 to vector<20x64xf32>
    %29 = arith.maximumf %27, %28 : vector<20x64xf32>
    %30 = vector.shape_cast %29 : vector<20x64xf32> to vector<2x10x64xf32>
    %31 = vector.extract_strided_slice %30 {offsets = [0, 0, 0], sizes = [2, 8, 64], strides = [1, 1, 1]} : vector<2x10x64xf32> to vector<2x8x64xf32>
    %32 = vector.extract_strided_slice %30 {offsets = [0, 1, 0], sizes = [2, 8, 64], strides = [1, 1, 1]} : vector<2x10x64xf32> to vector<2x8x64xf32>
    %33 = vector.extract_strided_slice %30 {offsets = [0, 2, 0], sizes = [2, 8, 64], strides = [1, 1, 1]} : vector<2x10x64xf32> to vector<2x8x64xf32>
    %34 = tpu.concatenate %31, %32, %33 in 2 : vector<2x8x64xf32>, vector<2x8x64xf32>, vector<2x8x64xf32> -> vector<2x8x192xf32>
    %35 = vector.shape_cast %34 : vector<2x8x192xf32> to vector<16x192xf32>
    %36 = arith.truncf %35 : vector<16x192xf32> to vector<16x192xbf16>
    %c0_13 = arith.constant 0 : index
    %c0_14 = arith.constant 0 : index
    %37 = vector.load %arg6[%c0_13, %c0_14] : memref<192x256xbf16, #tpu.memory_space<vmem>>, vector<192x256xbf16>
    %cst_15 = arith.constant dense<0.000000e+00> : vector<16x256xf32>
    %38 = tpu.matmul %36, %37, %cst_15 {dimension_numbers = #tpu.dot_dimension_numbers<[1], [0], [0], [1], [0, 0, 1, 1], [], []>} : vector<16x192xbf16>, vector<192x256xbf16>, vector<16x256xf32> -> vector<16x256xf32>
    %c0_16 = arith.constant 0 : index
    %c0_17 = arith.constant 0 : index
    %39 = vector.load %arg7[%c0_16, %c0_17] : memref<1x256xf32, #tpu.memory_space<vmem>>, vector<1x256xf32>
    %40 = vector.broadcast %39 : vector<1x256xf32> to vector<16x256xf32>
    %41 = arith.addf %38, %40 : vector<16x256xf32>
    %42 = vector.extract_strided_slice %41 {offsets = [0, 0], sizes = [16, 128], strides = [1, 1]} : vector<16x256xf32> to vector<16x128xf32>
    %43 = vector.extract_strided_slice %41 {offsets = [0, 128], sizes = [16, 128], strides = [1, 1]} : vector<16x256xf32> to vector<16x128xf32>
    %44 = arith.negf %43 : vector<16x128xf32>
    %45 = math.exp %44 : vector<16x128xf32>
    %cst_18 = arith.constant 1.000000e+00 : f32
    %46 = vector.broadcast %cst_18 : f32 to vector<16x128xf32>
    %47 = arith.addf %46, %45 : vector<16x128xf32>
    %48 = arith.divf %46, %47 : vector<16x128xf32>
    %49 = arith.mulf %42, %48 : vector<16x128xf32>
    %50 = vector.shape_cast %49 : vector<16x128xf32> to vector<2x8x128xf32>
    %51 = vector.shape_cast %50 : vector<2x8x128xf32> to vector<16x128xf32>
    %c0_19 = arith.constant 0 : index
    %c0_20 = arith.constant 0 : index
    %52 = vector.load %arg8[%c0_19, %c0_20] : memref<1x128xf32, #tpu.memory_space<vmem>>, vector<1x128xf32>
    %c0_21 = arith.constant 0 : index
    %c0_22 = arith.constant 0 : index
    %53 = vector.load %arg9[%c0_21, %c0_22] : memref<1x128xf32, #tpu.memory_space<vmem>>, vector<1x128xf32>
    %cst_23 = arith.constant dense<0.000000e+00> : vector<16xf32>
    %54 = vector.multi_reduction <add>, %51, %cst_23 [1] : vector<16x128xf32> to vector<16xf32>
    %55 = vector.shape_cast %54 : vector<16xf32> to vector<16x1xf32>
    %cst_24 = arith.constant 1.280000e+02 : f32
    %56 = vector.broadcast %cst_24 : f32 to vector<16x1xf32>
    %57 = arith.divf %55, %56 : vector<16x1xf32>
    %58 = vector.broadcast %57 : vector<16x1xf32> to vector<16x128xf32>
    %59 = arith.subf %51, %58 : vector<16x128xf32>
    %60 = arith.mulf %59, %59 : vector<16x128xf32>
    %cst_25 = arith.constant dense<0.000000e+00> : vector<16xf32>
    %61 = vector.multi_reduction <add>, %60, %cst_25 [1] : vector<16x128xf32> to vector<16xf32>
    %62 = vector.shape_cast %61 : vector<16xf32> to vector<16x1xf32>
    %cst_26 = arith.constant 1.280000e+02 : f32
    %63 = vector.broadcast %cst_26 : f32 to vector<16x1xf32>
    %64 = arith.divf %62, %63 : vector<16x1xf32>
    %65 = vector.broadcast %57 : vector<16x1xf32> to vector<16x128xf32>
    %66 = arith.subf %51, %65 : vector<16x128xf32>
    %cst_27 = arith.constant 9.99999974E-6 : f32
    %67 = vector.broadcast %cst_27 : f32 to vector<16x1xf32>
    %68 = arith.addf %64, %67 : vector<16x1xf32>
    %69 = math.rsqrt %68 : vector<16x1xf32>
    %70 = vector.broadcast %69 : vector<16x1xf32> to vector<16x128xf32>
    %71 = arith.mulf %66, %70 : vector<16x128xf32>
    %72 = vector.broadcast %52 : vector<1x128xf32> to vector<16x128xf32>
    %73 = arith.mulf %71, %72 : vector<16x128xf32>
    %74 = vector.broadcast %53 : vector<1x128xf32> to vector<16x128xf32>
    %75 = arith.addf %73, %74 : vector<16x128xf32>
    %76 = vector.shape_cast %75 : vector<16x128xf32> to vector<2x8x128xf32>
    %77 = vector.extract_strided_slice %76 {offsets = [0, 0, 0], sizes = [2, 6, 128], strides = [1, 1, 1]} : vector<2x8x128xf32> to vector<2x6x128xf32>
    %78 = vector.extract_strided_slice %76 {offsets = [0, 1, 0], sizes = [2, 6, 128], strides = [1, 1, 1]} : vector<2x8x128xf32> to vector<2x6x128xf32>
    %79 = vector.extract_strided_slice %76 {offsets = [0, 2, 0], sizes = [2, 6, 128], strides = [1, 1, 1]} : vector<2x8x128xf32> to vector<2x6x128xf32>
    %80 = tpu.concatenate %77, %78, %79 in 2 : vector<2x6x128xf32>, vector<2x6x128xf32>, vector<2x6x128xf32> -> vector<2x6x384xf32>
    %81 = vector.shape_cast %80 : vector<2x6x384xf32> to vector<12x384xf32>
    %82 = arith.truncf %81 : vector<12x384xf32> to vector<12x384xbf16>
    %c0_28 = arith.constant 0 : index
    %c0_29 = arith.constant 0 : index
    %83 = vector.load %arg10[%c0_28, %c0_29] : memref<384x256xbf16, #tpu.memory_space<vmem>>, vector<384x256xbf16>
    %cst_30 = arith.constant dense<0.000000e+00> : vector<12x256xf32>
    %84 = tpu.matmul %82, %83, %cst_30 {dimension_numbers = #tpu.dot_dimension_numbers<[1], [0], [0], [1], [0, 0, 1, 1], [], []>} : vector<12x384xbf16>, vector<384x256xbf16>, vector<12x256xf32> -> vector<12x256xf32>
    %c0_31 = arith.constant 0 : index
    %c0_32 = arith.constant 0 : index
    %85 = vector.load %arg11[%c0_31, %c0_32] : memref<1x256xf32, #tpu.memory_space<vmem>>, vector<1x256xf32>
    %86 = vector.broadcast %85 : vector<1x256xf32> to vector<12x256xf32>
    %87 = arith.addf %84, %86 : vector<12x256xf32>
    %88 = vector.extract_strided_slice %87 {offsets = [0, 0], sizes = [12, 128], strides = [1, 1]} : vector<12x256xf32> to vector<12x128xf32>
    %89 = vector.extract_strided_slice %87 {offsets = [0, 128], sizes = [12, 128], strides = [1, 1]} : vector<12x256xf32> to vector<12x128xf32>
    %90 = arith.negf %89 : vector<12x128xf32>
    %91 = math.exp %90 : vector<12x128xf32>
    %cst_33 = arith.constant 1.000000e+00 : f32
    %92 = vector.broadcast %cst_33 : f32 to vector<12x128xf32>
    %93 = arith.addf %92, %91 : vector<12x128xf32>
    %94 = arith.divf %92, %93 : vector<12x128xf32>
    %95 = arith.mulf %88, %94 : vector<12x128xf32>
    %96 = vector.shape_cast %95 : vector<12x128xf32> to vector<2x6x128xf32>
    %97 = vector.shape_cast %96 : vector<2x6x128xf32> to vector<12x128xf32>
    %98 = arith.truncf %97 : vector<12x128xf32> to vector<12x128xbf16>
    %c0_34 = arith.constant 0 : index
    %c0_35 = arith.constant 0 : index
    %99 = vector.load %arg12[%c0_34, %c0_35] : memref<128x64xbf16, #tpu.memory_space<vmem>>, vector<128x64xbf16>
    %cst_36 = arith.constant dense<0.000000e+00> : vector<12x64xf32>
    %100 = tpu.matmul %98, %99, %cst_36 {dimension_numbers = #tpu.dot_dimension_numbers<[1], [0], [0], [1], [0, 0, 1, 1], [], []>} : vector<12x128xbf16>, vector<128x64xbf16>, vector<12x64xf32> -> vector<12x64xf32>
    %c0_37 = arith.constant 0 : index
    %c0_38 = arith.constant 0 : index
    %101 = vector.load %arg13[%c0_37, %c0_38] : memref<1x64xf32, #tpu.memory_space<vmem>>, vector<1x64xf32>
    %102 = vector.broadcast %101 : vector<1x64xf32> to vector<12x64xf32>
    %103 = arith.addf %100, %102 : vector<12x64xf32>
    %cst_39 = arith.constant 0.000000e+00 : f32
    %104 = vector.broadcast %cst_39 : f32 to vector<12x64xf32>
    %105 = arith.maximumf %103, %104 : vector<12x64xf32>
    %106 = vector.shape_cast %105 : vector<12x64xf32> to vector<2x6x64xf32>
    %107 = vector.extract_strided_slice %106 {offsets = [0, 0, 0], sizes = [2, 4, 64], strides = [1, 1, 1]} : vector<2x6x64xf32> to vector<2x4x64xf32>
    %108 = vector.extract_strided_slice %106 {offsets = [0, 1, 0], sizes = [2, 4, 64], strides = [1, 1, 1]} : vector<2x6x64xf32> to vector<2x4x64xf32>
    %109 = vector.extract_strided_slice %106 {offsets = [0, 2, 0], sizes = [2, 4, 64], strides = [1, 1, 1]} : vector<2x6x64xf32> to vector<2x4x64xf32>
    %110 = tpu.concatenate %107, %108, %109 in 2 : vector<2x4x64xf32>, vector<2x4x64xf32>, vector<2x4x64xf32> -> vector<2x4x192xf32>
    %111 = vector.shape_cast %110 : vector<2x4x192xf32> to vector<8x192xf32>
    %112 = arith.truncf %111 : vector<8x192xf32> to vector<8x192xbf16>
    %c0_40 = arith.constant 0 : index
    %c0_41 = arith.constant 0 : index
    %113 = vector.load %arg14[%c0_40, %c0_41] : memref<192x256xbf16, #tpu.memory_space<vmem>>, vector<192x256xbf16>
    %cst_42 = arith.constant dense<0.000000e+00> : vector<8x256xf32>
    %114 = tpu.matmul %112, %113, %cst_42 {dimension_numbers = #tpu.dot_dimension_numbers<[1], [0], [0], [1], [0, 0, 1, 1], [], []>} : vector<8x192xbf16>, vector<192x256xbf16>, vector<8x256xf32> -> vector<8x256xf32>
    %c0_43 = arith.constant 0 : index
    %c0_44 = arith.constant 0 : index
    %115 = vector.load %arg15[%c0_43, %c0_44] : memref<1x256xf32, #tpu.memory_space<vmem>>, vector<1x256xf32>
    %116 = vector.broadcast %115 : vector<1x256xf32> to vector<8x256xf32>
    %117 = arith.addf %114, %116 : vector<8x256xf32>
    %118 = vector.extract_strided_slice %117 {offsets = [0, 0], sizes = [8, 128], strides = [1, 1]} : vector<8x256xf32> to vector<8x128xf32>
    %119 = vector.extract_strided_slice %117 {offsets = [0, 128], sizes = [8, 128], strides = [1, 1]} : vector<8x256xf32> to vector<8x128xf32>
    %120 = arith.negf %119 : vector<8x128xf32>
    %121 = math.exp %120 : vector<8x128xf32>
    %cst_45 = arith.constant 1.000000e+00 : f32
    %122 = vector.broadcast %cst_45 : f32 to vector<8x128xf32>
    %123 = arith.addf %122, %121 : vector<8x128xf32>
    %124 = arith.divf %122, %123 : vector<8x128xf32>
    %125 = arith.mulf %118, %124 : vector<8x128xf32>
    %126 = vector.shape_cast %125 : vector<8x128xf32> to vector<2x4x128xf32>
    %127 = vector.shape_cast %126 : vector<2x4x128xf32> to vector<8x128xf32>
    %c0_46 = arith.constant 0 : index
    %c0_47 = arith.constant 0 : index
    %128 = vector.load %arg16[%c0_46, %c0_47] : memref<1x128xf32, #tpu.memory_space<vmem>>, vector<1x128xf32>
    %c0_48 = arith.constant 0 : index
    %c0_49 = arith.constant 0 : index
    %129 = vector.load %arg17[%c0_48, %c0_49] : memref<1x128xf32, #tpu.memory_space<vmem>>, vector<1x128xf32>
    %cst_50 = arith.constant dense<0.000000e+00> : vector<8xf32>
    %130 = vector.multi_reduction <add>, %127, %cst_50 [1] : vector<8x128xf32> to vector<8xf32>
    %131 = vector.shape_cast %130 : vector<8xf32> to vector<8x1xf32>
    %cst_51 = arith.constant 1.280000e+02 : f32
    %132 = vector.broadcast %cst_51 : f32 to vector<8x1xf32>
    %133 = arith.divf %131, %132 : vector<8x1xf32>
    %134 = vector.broadcast %133 : vector<8x1xf32> to vector<8x128xf32>
    %135 = arith.subf %127, %134 : vector<8x128xf32>
    %136 = arith.mulf %135, %135 : vector<8x128xf32>
    %cst_52 = arith.constant dense<0.000000e+00> : vector<8xf32>
    %137 = vector.multi_reduction <add>, %136, %cst_52 [1] : vector<8x128xf32> to vector<8xf32>
    %138 = vector.shape_cast %137 : vector<8xf32> to vector<8x1xf32>
    %cst_53 = arith.constant 1.280000e+02 : f32
    %139 = vector.broadcast %cst_53 : f32 to vector<8x1xf32>
    %140 = arith.divf %138, %139 : vector<8x1xf32>
    %141 = vector.broadcast %133 : vector<8x1xf32> to vector<8x128xf32>
    %142 = arith.subf %127, %141 : vector<8x128xf32>
    %cst_54 = arith.constant 9.99999974E-6 : f32
    %143 = vector.broadcast %cst_54 : f32 to vector<8x1xf32>
    %144 = arith.addf %140, %143 : vector<8x1xf32>
    %145 = math.rsqrt %144 : vector<8x1xf32>
    %146 = vector.broadcast %145 : vector<8x1xf32> to vector<8x128xf32>
    %147 = arith.mulf %142, %146 : vector<8x128xf32>
    %148 = vector.broadcast %128 : vector<1x128xf32> to vector<8x128xf32>
    %149 = arith.mulf %147, %148 : vector<8x128xf32>
    %150 = vector.broadcast %129 : vector<1x128xf32> to vector<8x128xf32>
    %151 = arith.addf %149, %150 : vector<8x128xf32>
    %152 = vector.shape_cast %151 : vector<8x128xf32> to vector<2x4x128xf32>
    %153 = vector.extract_strided_slice %152 {offsets = [0, 0, 0], sizes = [2, 1, 128], strides = [1, 1, 1]} : vector<2x4x128xf32> to vector<2x1x128xf32>
    %154 = vector.extract_strided_slice %152 {offsets = [0, 1, 0], sizes = [2, 1, 128], strides = [1, 1, 1]} : vector<2x4x128xf32> to vector<2x1x128xf32>
    %155 = vector.extract_strided_slice %152 {offsets = [0, 2, 0], sizes = [2, 1, 128], strides = [1, 1, 1]} : vector<2x4x128xf32> to vector<2x1x128xf32>
    %156 = vector.extract_strided_slice %152 {offsets = [0, 3, 0], sizes = [2, 1, 128], strides = [1, 1, 1]} : vector<2x4x128xf32> to vector<2x1x128xf32>
    %157 = tpu.concatenate %153, %154, %155, %156 in 2 : vector<2x1x128xf32>, vector<2x1x128xf32>, vector<2x1x128xf32>, vector<2x1x128xf32> -> vector<2x1x512xf32>
    %158 = vector.shape_cast %157 : vector<2x1x512xf32> to vector<2x512xf32>
    %159 = arith.truncf %158 : vector<2x512xf32> to vector<2x512xbf16>
    %c0_55 = arith.constant 0 : index
    %c0_56 = arith.constant 0 : index
    %160 = vector.load %arg18[%c0_55, %c0_56] : memref<512x512xbf16, #tpu.memory_space<vmem>>, vector<512x512xbf16>
    %cst_57 = arith.constant dense<0.000000e+00> : vector<2x512xf32>
    %161 = tpu.matmul %159, %160, %cst_57 {dimension_numbers = #tpu.dot_dimension_numbers<[1], [0], [0], [1], [0, 0, 1, 1], [], []>} : vector<2x512xbf16>, vector<512x512xbf16>, vector<2x512xf32> -> vector<2x512xf32>
    %c0_58 = arith.constant 0 : index
    %c0_59 = arith.constant 0 : index
    %162 = vector.load %arg19[%c0_58, %c0_59] : memref<1x512xf32, #tpu.memory_space<vmem>>, vector<1x512xf32>
    %163 = vector.broadcast %162 : vector<1x512xf32> to vector<2x512xf32>
    %164 = arith.addf %161, %163 : vector<2x512xf32>
    %165 = vector.extract_strided_slice %164 {offsets = [0, 0], sizes = [2, 256], strides = [1, 1]} : vector<2x512xf32> to vector<2x256xf32>
    %166 = vector.extract_strided_slice %164 {offsets = [0, 256], sizes = [2, 256], strides = [1, 1]} : vector<2x512xf32> to vector<2x256xf32>
    %167 = arith.negf %166 : vector<2x256xf32>
    %168 = math.exp %167 : vector<2x256xf32>
    %cst_60 = arith.constant 1.000000e+00 : f32
    %169 = vector.broadcast %cst_60 : f32 to vector<2x256xf32>
    %170 = arith.addf %169, %168 : vector<2x256xf32>
    %171 = arith.divf %169, %170 : vector<2x256xf32>
    %172 = arith.mulf %165, %171 : vector<2x256xf32>
    %173 = vector.shape_cast %172 : vector<2x256xf32> to vector<2x1x256xf32>
    %174 = vector.shape_cast %173 : vector<2x1x256xf32> to vector<2x256xf32>
    %c0_61 = arith.constant 0 : index
    %c0_62 = arith.constant 0 : index
    %175 = vector.load %arg20[%c0_61, %c0_62] : memref<1x256xf32, #tpu.memory_space<vmem>>, vector<1x256xf32>
    %c0_63 = arith.constant 0 : index
    %c0_64 = arith.constant 0 : index
    %176 = vector.load %arg21[%c0_63, %c0_64] : memref<1x256xf32, #tpu.memory_space<vmem>>, vector<1x256xf32>
    %cst_65 = arith.constant dense<0.000000e+00> : vector<2xf32>
    %177 = vector.multi_reduction <add>, %174, %cst_65 [1] : vector<2x256xf32> to vector<2xf32>
    %178 = vector.shape_cast %177 : vector<2xf32> to vector<2x1xf32>
    %cst_66 = arith.constant 2.560000e+02 : f32
    %179 = vector.broadcast %cst_66 : f32 to vector<2x1xf32>
    %180 = arith.divf %178, %179 : vector<2x1xf32>
    %181 = vector.broadcast %180 : vector<2x1xf32> to vector<2x256xf32>
    %182 = arith.subf %174, %181 : vector<2x256xf32>
    %183 = arith.mulf %182, %182 : vector<2x256xf32>
    %cst_67 = arith.constant dense<0.000000e+00> : vector<2xf32>
    %184 = vector.multi_reduction <add>, %183, %cst_67 [1] : vector<2x256xf32> to vector<2xf32>
    %185 = vector.shape_cast %184 : vector<2xf32> to vector<2x1xf32>
    %cst_68 = arith.constant 2.560000e+02 : f32
    %186 = vector.broadcast %cst_68 : f32 to vector<2x1xf32>
    %187 = arith.divf %185, %186 : vector<2x1xf32>
    %188 = vector.broadcast %180 : vector<2x1xf32> to vector<2x256xf32>
    %189 = arith.subf %174, %188 : vector<2x256xf32>
    %cst_69 = arith.constant 9.99999974E-6 : f32
    %190 = vector.broadcast %cst_69 : f32 to vector<2x1xf32>
    %191 = arith.addf %187, %190 : vector<2x1xf32>
    %192 = math.rsqrt %191 : vector<2x1xf32>
    %193 = vector.broadcast %192 : vector<2x1xf32> to vector<2x256xf32>
    %194 = arith.mulf %189, %193 : vector<2x256xf32>
    %195 = vector.broadcast %175 : vector<1x256xf32> to vector<2x256xf32>
    %196 = arith.mulf %194, %195 : vector<2x256xf32>
    %197 = vector.broadcast %176 : vector<1x256xf32> to vector<2x256xf32>
    %198 = arith.addf %196, %197 : vector<2x256xf32>
    %199 = arith.truncf %198 : vector<2x256xf32> to vector<2x256xbf16>
    %c0_70 = arith.constant 0 : index
    %c0_71 = arith.constant 0 : index
    %200 = vector.load %arg22[%c0_70, %c0_71] : memref<256x256xbf16, #tpu.memory_space<vmem>>, vector<256x256xbf16>
    %cst_72 = arith.constant dense<0.000000e+00> : vector<2x256xf32>
    %201 = tpu.matmul %199, %200, %cst_72 {dimension_numbers = #tpu.dot_dimension_numbers<[1], [0], [0], [1], [0, 0, 1, 1], [], []>} : vector<2x256xbf16>, vector<256x256xbf16>, vector<2x256xf32> -> vector<2x256xf32>
    %c0_73 = arith.constant 0 : index
    %c0_74 = arith.constant 0 : index
    %202 = vector.load %arg23[%c0_73, %c0_74] : memref<1x256xf32, #tpu.memory_space<vmem>>, vector<1x256xf32>
    %203 = vector.broadcast %202 : vector<1x256xf32> to vector<2x256xf32>
    %204 = arith.addf %201, %203 : vector<2x256xf32>
    %cst_75 = arith.constant 0.000000e+00 : f32
    %205 = vector.broadcast %cst_75 : f32 to vector<2x256xf32>
    %206 = arith.maximumf %204, %205 : vector<2x256xf32>
    %207 = arith.truncf %206 : vector<2x256xf32> to vector<2x256xbf16>
    %c0_76 = arith.constant 0 : index
    %c0_77 = arith.constant 0 : index
    %208 = vector.load %arg24[%c0_76, %c0_77] : memref<256x1xbf16, #tpu.memory_space<vmem>>, vector<256x1xbf16>
    %cst_78 = arith.constant dense<0.000000e+00> : vector<2x1xf32>
    %209 = tpu.matmul %207, %208, %cst_78 {dimension_numbers = #tpu.dot_dimension_numbers<[1], [0], [0], [1], [0, 0, 1, 1], [], []>} : vector<2x256xbf16>, vector<256x1xbf16>, vector<2x1xf32> -> vector<2x1xf32>
    %c0_79 = arith.constant 0 : index
    %c0_80 = arith.constant 0 : index
    %210 = vector.load %arg25[%c0_79, %c0_80] : memref<1x1xf32, #tpu.memory_space<vmem>>, vector<1x1xf32>
    %211 = vector.broadcast %210 : vector<1x1xf32> to vector<2x1xf32>
    %212 = arith.addf %209, %211 : vector<2x1xf32>
    %213 = vector.shape_cast %212 : vector<2x1xf32> to vector<2x1x1xf32>
    %cst_81 = arith.constant dense<0.000000e+00> : vector<2x1xf32>
    %214 = vector.multi_reduction <add>, %213, %cst_81 [1] : vector<2x1x1xf32> to vector<2x1xf32>
    %cst_82 = arith.constant 1.000000e+00 : f32
    %215 = vector.broadcast %cst_82 : f32 to vector<2x1xf32>
    %216 = arith.divf %214, %215 : vector<2x1xf32>
    %c0_83 = arith.constant 0 : index
    %c0_84 = arith.constant 0 : index
    %217 = vector.load %arg26[%c0_83, %c0_84] : memref<2x1xf32, #tpu.memory_space<vmem>>, vector<2x1xf32>
    tpu.vector_store %arg26[%c0_83, %c0_84], %216 {strides = array<i32>} : memref<2x1xf32, #tpu.memory_space<vmem>>, vector<2x1xf32>,
    return
  }
  func.func @transform_0(%arg0: i32) -> (i32, i32, i32) {
    %c0_i32 = arith.constant 0 : i32
    %c0_i32_0 = arith.constant 0 : i32
    %c0_i32_1 = arith.constant 0 : i32
    return %arg0, %c0_i32, %c0_i32_0 : i32, i32, i32
  }
  func.func @transform_1(%arg0: i32) -> (i32, i32) {
    %c0_i32 = arith.constant 0 : i32
    %c0_i32_0 = arith.constant 0 : i32
    %c0_i32_1 = arith.constant 0 : i32
    return %c0_i32, %c0_i32_0 : i32, i32
  }
  func.func @transform_2(%arg0: i32) -> (i32, i32) {
    %c0_i32 = arith.constant 0 : i32
    %c0_i32_0 = arith.constant 0 : i32
    %c0_i32_1 = arith.constant 0 : i32
    return %c0_i32, %c0_i32_0 : i32, i32
  }
  func.func @transform_3(%arg0: i32) -> (i32, i32) {
    %c0_i32 = arith.constant 0 : i32
    %c0_i32_0 = arith.constant 0 : i32
    %c0_i32_1 = arith.constant 0 : i32
    return %c0_i32, %c0_i32_0 : i32, i32
  }
  func.func @transform_4(%arg0: i32) -> (i32, i32) {
    %c0_i32 = arith.constant 0 : i32
    %c0_i32_0 = arith.constant 0 : i32
    %c0_i32_1 = arith.constant 0 : i32
    return %c0_i32, %c0_i32_0 : i32, i32
  }
  func.func @transform_5(%arg0: i32) -> (i32, i32) {
    %c0_i32 = arith.constant 0 : i32
    %c0_i32_0 = arith.constant 0 : i32
    %c0_i32_1 = arith.constant 0 : i32
    return %c0_i32, %c0_i32_0 : i32, i32
  }
  func.func @transform_6(%arg0: i32) -> (i32, i32) {
    %c0_i32 = arith.constant 0 : i32
    %c0_i32_0 = arith.constant 0 : i32
    %c0_i32_1 = arith.constant 0 : i32
    return %c0_i32, %c0_i32_0 : i32, i32
  }
  func.func @transform_7(%arg0: i32) -> (i32, i32) {
    %c0_i32 = arith.constant 0 : i32
    %c0_i32_0 = arith.constant 0 : i32
    %c0_i32_1 = arith.constant 0 : i32
    return %c0_i32, %c0_i32_0 : i32, i32
  }
  func.func @transform_8(%arg0: i32) -> (i32, i32) {
    %c0_i32 = arith.constant 0 : i32
    %c0_i32_0 = arith.constant 0 : i32
    %c0_i32_1 = arith.constant 0 : i32
    return %c0_i32, %c0_i32_0 : i32, i32
  }
  func.func @transform_9(%arg0: i32) -> (i32, i32) {
    %c0_i32 = arith.constant 0 : i32
    %c0_i32_0 = arith.constant 0 : i32
    %c0_i32_1 = arith.constant 0 : i32
    return %c0_i32, %c0_i32_0 : i32, i32
  }
  func.func @transform_10(%arg0: i32) -> (i32, i32) {
    %c0_i32 = arith.constant 0 : i32
    %c0_i32_0 = arith.constant 0 : i32
    %c0_i32_1 = arith.constant 0 : i32
    return %c0_i32, %c0_i32_0 : i32, i32
  }
  func.func @transform_11(%arg0: i32) -> (i32, i32) {
    %c0_i32 = arith.constant 0 : i32
    %c0_i32_0 = arith.constant 0 : i32
    %c0_i32_1 = arith.constant 0 : i32
    return %c0_i32, %c0_i32_0 : i32, i32
  }
  func.func @transform_12(%arg0: i32) -> (i32, i32) {
    %c0_i32 = arith.constant 0 : i32
    %c0_i32_0 = arith.constant 0 : i32
    %c0_i32_1 = arith.constant 0 : i32
    return %c0_i32, %c0_i32_0 : i32, i32
  }
  func.func @transform_13(%arg0: i32) -> (i32, i32) {
    %c0_i32 = arith.constant 0 : i32
    %c0_i32_0 = arith.constant 0 : i32
    %c0_i32_1 = arith.constant 0 : i32
    return %c0_i32, %c0_i32_0 : i32, i32
  }
  func.func @transform_14(%arg0: i32) -> (i32, i32) {
    %c0_i32 = arith.constant 0 : i32
    %c0_i32_0 = arith.constant 0 : i32
    %c0_i32_1 = arith.constant 0 : i32
    return %c0_i32, %c0_i32_0 : i32, i32
  }
  func.func @transform_15(%arg0: i32) -> (i32, i32) {
    %c0_i32 = arith.constant 0 : i32
    %c0_i32_0 = arith.constant 0 : i32
    %c0_i32_1 = arith.constant 0 : i32
    return %c0_i32, %c0_i32_0 : i32, i32
  }
  func.func @transform_16(%arg0: i32) -> (i32, i32) {
    %c0_i32 = arith.constant 0 : i32
    %c0_i32_0 = arith.constant 0 : i32
    %c0_i32_1 = arith.constant 0 : i32
    return %c0_i32, %c0_i32_0 : i32, i32
  }
  func.func @transform_17(%arg0: i32) -> (i32, i32) {
    %c0_i32 = arith.constant 0 : i32
    %c0_i32_0 = arith.constant 0 : i32
    %c0_i32_1 = arith.constant 0 : i32
    return %c0_i32, %c0_i32_0 : i32, i32
  }
  func.func @transform_18(%arg0: i32) -> (i32, i32) {
    %c0_i32 = arith.constant 0 : i32
    %c0_i32_0 = arith.constant 0 : i32
    %c0_i32_1 = arith.constant 0 : i32
    return %c0_i32, %c0_i32_0 : i32, i32
  }
  func.func @transform_19(%arg0: i32) -> (i32, i32) {
    %c0_i32 = arith.constant 0 : i32
    %c0_i32_0 = arith.constant 0 : i32
    %c0_i32_1 = arith.constant 0 : i32
    return %c0_i32, %c0_i32_0 : i32, i32
  }
  func.func @transform_20(%arg0: i32) -> (i32, i32) {
    %c0_i32 = arith.constant 0 : i32
    %c0_i32_0 = arith.constant 0 : i32
    %c0_i32_1 = arith.constant 0 : i32
    return %c0_i32, %c0_i32_0 : i32, i32
  }
  func.func @transform_21(%arg0: i32) -> (i32, i32) {
    %c0_i32 = arith.constant 0 : i32
    %c0_i32_0 = arith.constant 0 : i32
    %c0_i32_1 = arith.constant 0 : i32
    return %c0_i32, %c0_i32_0 : i32, i32
  }
  func.func @transform_22(%arg0: i32) -> (i32, i32) {
    %c0_i32 = arith.constant 0 : i32
    %c0_i32_0 = arith.constant 0 : i32
    %c0_i32_1 = arith.constant 0 : i32
    return %c0_i32, %c0_i32_0 : i32, i32
  }
  func.func @transform_23(%arg0: i32) -> (i32, i32) {
    %c0_i32 = arith.constant 0 : i32
    %c0_i32_0 = arith.constant 0 : i32
    %c0_i32_1 = arith.constant 0 : i32
    return %c0_i32, %c0_i32_0 : i32, i32
  }
  func.func @transform_24(%arg0: i32) -> (i32, i32) {
    %c0_i32 = arith.constant 0 : i32
    %c0_i32_0 = arith.constant 0 : i32
    %c0_i32_1 = arith.constant 0 : i32
    return %c0_i32, %c0_i32_0 : i32, i32
  }
  func.func @transform_25(%arg0: i32) -> (i32, i32) {
    %c0_i32 = arith.constant 0 : i32
    %c0_i32_0 = arith.constant 0 : i32
    return %arg0, %c0_i32 : i32, i32
  }
}

</mosaic_0001>

<llo_original>
// kernel: _lambda_.1
$region0: #{_lambda_.1}
  #allocation0 [shape = 'u32[]', space=smem, size = 0x4, offset = 0x4, fixed_abs, tag = 'smem constant byte address 0x4 - core index']
  #allocation1 [shape = 'u32[144,128]{1,0:T(1,128)}', space=vmem, size = 0x12000, scoped, tag = 'internal scratch']
  #allocation2 [shape = 'f32[1,1]{1,0:T(1,128)S(1)}', space=vmem, size = 0x200, scoped, tag = 'scoped memory for _lambda_.1']
  %s0 = inlined_call_operand.vmem [shape: f32[2,12,64], index: 0, kind: input, shape index: {}]
  %s1 = inlined_call_operand.vmem [shape: bf16[192,256], index: 1, kind: input, shape index: {}]
  %s2 = inlined_call_operand.vmem [shape: f32[1,256], index: 2, kind: input, shape index: {}]
  %s3 = inlined_call_operand.vmem [shape: bf16[128,64], index: 3, kind: input, shape index: {}]
  %s4 = inlined_call_operand.vmem [shape: f32[1,64], index: 4, kind: input, shape index: {}]
  %s5 = inlined_call_operand.vmem [shape: bf16[192,256], index: 5, kind: input, shape index: {}]
  %s6 = inlined_call_operand.vmem [shape: f32[1,256], index: 6, kind: input, shape index: {}]
  %s7 = inlined_call_operand.vmem [shape: f32[1,128], index: 7, kind: input, shape index: {}, may-alias: {7,15}]
  %s8 = inlined_call_operand.vmem [shape: f32[1,128], index: 8, kind: input, shape index: {}, may-alias: {8,16}]
  %s9 = inlined_call_operand.vmem [shape: bf16[384,256], index: 9, kind: input, shape index: {}]
  %s10 = inlined_call_operand.vmem [shape: f32[1,256], index: 10, kind: input, shape index: {}]
  %s11 = inlined_call_operand.vmem [shape: bf16[128,64], index: 11, kind: input, shape index: {}]
  %s12 = inlined_call_operand.vmem [shape: f32[1,64], index: 12, kind: input, shape index: {}]
  %s13 = inlined_call_operand.vmem [shape: bf16[192,256], index: 13, kind: input, shape index: {}]
  %s14 = inlined_call_operand.vmem [shape: f32[1,256], index: 14, kind: input, shape index: {}]
  %s15 = inlined_call_operand.vmem [shape: f32[1,128], index: 15, kind: input, shape index: {}, may-alias: {7,15}]
  %s16 = inlined_call_operand.vmem [shape: f32[1,128], index: 16, kind: input, shape index: {}, may-alias: {8,16}]
  %s17 = inlined_call_operand.vmem [shape: bf16[512,512], index: 17, kind: input, shape index: {}]
  %s18 = inlined_call_operand.vmem [shape: f32[1,512], index: 18, kind: input, shape index: {}]
  %s19 = inlined_call_operand.vmem [shape: f32[1,256], index: 19, kind: input, shape index: {}]
  %s20 = inlined_call_operand.vmem [shape: f32[1,256], index: 20, kind: input, shape index: {}]
  %s21 = inlined_call_operand.vmem [shape: bf16[256,256], index: 21, kind: input, shape index: {}]
  %s22 = inlined_call_operand.vmem [shape: f32[1,256], index: 22, kind: input, shape index: {}]
  %s23 = inlined_call_operand.vmem [shape: bf16[256,1], index: 23, kind: input, shape index: {}]
  %s24 = inlined_call_operand.<no memory space> [shape: f32[1,1], index: 24, kind: input, shape index: {}]
  %s25 = inlined_call_operand.vmem [shape: f32[2,1], index: 25, kind: output, shape index: {}]
  %s26 = sld [smem:[#allocation0]]
  $region110: #{_lambda_.1} parent=0
    _
  %s28 = ssub.s32 1, %s26
  %s29 = scalar_select 0, %s28, %s26
  %v30 = vstv %s24
  %31 = vst [vmem:[#allocation2] sm:$0x1] %v30
  // Predicated region
  $region2: #{_lambda_.1} parent=0 // pred_check
    _
  $region3: #{_lambda_.1} parent=0 // pred_check_branch
    %33 = sbr.rel (0) target = $region5
  $region4: #{_lambda_.1} parent=0 // pred_region
    _
  $region5: #{_lambda_.1} parent=0 // pred_fallthru
    _
  // Predicated region
  $region6: #{_lambda_.1} parent=0 // pred_check
    _
  $region7: #{_lambda_.1} parent=0 // pred_check_branch
    %35 = sbr.rel (0) target = $region9
  $region8: #{_lambda_.1} parent=0 // pred_region
    _
  $region9: #{_lambda_.1} parent=0 // pred_fallthru
    _
  // Predicated region
  $region10: #{_lambda_.1} parent=0 // pred_check
    _
  $region11: #{_lambda_.1} parent=0 // pred_check_branch
    %37 = sbr.rel (0) target = $region13
  $region12: #{_lambda_.1} parent=0 // pred_region
    _
  $region13: #{_lambda_.1} parent=0 // pred_fallthru
    _
  // Predicated region
  $region14: #{_lambda_.1} parent=0 // pred_check
    _
  $region15: #{_lambda_.1} parent=0 // pred_check_branch
    %39 = sbr.rel (0) target = $region17
  $region16: #{_lambda_.1} parent=0 // pred_region
    _
  $region17: #{_lambda_.1} parent=0 // pred_fallthru
    _
  // Predicated region
  $region18: #{_lambda_.1} parent=0 // pred_check
    _
  $region19: #{_lambda_.1} parent=0 // pred_check_branch
    %41 = sbr.rel (0) target = $region21
  $region20: #{_lambda_.1} parent=0 // pred_region
    _
  $region21: #{_lambda_.1} parent=0 // pred_fallthru
    _
  // Predicated region
  $region22: #{_lambda_.1} parent=0 // pred_check
    _
  $region23: #{_lambda_.1} parent=0 // pred_check_branch
    %43 = sbr.rel (0) target = $region25
  $region24: #{_lambda_.1} parent=0 // pred_region
    _
  $region25: #{_lambda_.1} parent=0 // pred_fallthru
    _
  // Predicated region
  $region26: #{_lambda_.1} parent=0 // pred_check
    _
  $region27: #{_lambda_.1} parent=0 // pred_check_branch
    %45 = sbr.rel (0) target = $region29
  $region28: #{_lambda_.1} parent=0 // pred_region
    _
  $region29: #{_lambda_.1} parent=0 // pred_fallthru
    _
  // Predicated region
  $region30: #{_lambda_.1} parent=0 // pred_check
    _
  $region31: #{_lambda_.1} parent=0 // pred_check_branch
    %47 = sbr.rel (0) target = $region33
  $region32: #{_lambda_.1} parent=0 // pred_region
    _
  $region33: #{_lambda_.1} parent=0 // pred_fallthru
    _
  // Predicated region
  $region34: #{_lambda_.1} parent=0 // pred_check
    _
  $region35: #{_lambda_.1} parent=0 // pred_check_branch
    %49 = sbr.rel (0) target = $region37
  $region36: #{_lambda_.1} parent=0 // pred_region
    _
  $region37: #{_lambda_.1} parent=0 // pred_fallthru
    _
  // Predicated region
  $region38: #{_lambda_.1} parent=0 // pred_check
    _
  $region39: #{_lambda_.1} parent=0 // pred_check_branch
    %51 = sbr.rel (0) target = $region41
  $region40: #{_lambda_.1} parent=0 // pred_region
    _
  $region41: #{_lambda_.1} parent=0 // pred_fallthru
    _
  // Predicated region
  $region42: #{_lambda_.1} parent=0 // pred_check
    _
  $region43: #{_lambda_.1} parent=0 // pred_check_branch
    %53 = sbr.rel (0) target = $region45
  $region44: #{_lambda_.1} parent=0 // pred_region
    _
  $region45: #{_lambda_.1} parent=0 // pred_fallthru
    _
  // Predicated region
  $region46: #{_lambda_.1} parent=0 // pred_check
    _
  $region47: #{_lambda_.1} parent=0 // pred_check_branch
    %55 = sbr.rel (0) target = $region49
  $region48: #{_lambda_.1} parent=0 // pred_region
    _
  $region49: #{_lambda_.1} parent=0 // pred_fallthru
    _
  // Predicated region
  $region50: #{_lambda_.1} parent=0 // pred_check
    _
  $region51: #{_lambda_.1} parent=0 // pred_check_branch
    %57 = sbr.rel (0) target = $region53
  $region52: #{_lambda_.1} parent=0 // pred_region
    _
  $region53: #{_lambda_.1} parent=0 // pred_fallthru
    _
  // Predicated region
  $region54: #{_lambda_.1} parent=0 // pred_check
    _
  $region55: #{_lambda_.1} parent=0 // pred_check_branch
    %59 = sbr.rel (0) target = $region57
  $region56: #{_lambda_.1} parent=0 // pred_region
    _
  $region57: #{_lambda_.1} parent=0 // pred_fallthru
    _
  // Predicated region
  $region58: #{_lambda_.1} parent=0 // pred_check
    _
  $region59: #{_lambda_.1} parent=0 // pred_check_branch
    %61 = sbr.rel (0) target = $region61
  $region60: #{_lambda_.1} parent=0 // pred_region
    _
  $region61: #{_lambda_.1} parent=0 // pred_fallthru
    _
  // Predicated region
  $region62: #{_lambda_.1} parent=0 // pred_check
    _
  $region63: #{_lambda_.1} parent=0 // pred_check_branch
    %63 = sbr.rel (0) target = $region65
  $region64: #{_lambda_.1} parent=0 // pred_region
    _
  $region65: #{_lambda_.1} parent=0 // pred_fallthru
    _
  // Predicated region
  $region66: #{_lambda_.1} parent=0 // pred_check
    _
  $region67: #{_lambda_.1} parent=0 // pred_check_branch
    %65 = sbr.rel (0) target = $region69
  $region68: #{_lambda_.1} parent=0 // pred_region
    _
  $region69: #{_lambda_.1} parent=0 // pred_fallthru
    _
  // Predicated region
  $region70: #{_lambda_.1} parent=0 // pred_check
    _
  $region71: #{_lambda_.1} parent=0 // pred_check_branch
    %67 = sbr.rel (0) target = $region73
  $region72: #{_lambda_.1} parent=0 // pred_region
    _
  $region73: #{_lambda_.1} parent=0 // pred_fallthru
    _
  // Predicated region
  $region74: #{_lambda_.1} parent=0 // pred_check
    _
  $region75: #{_lambda_.1} parent=0 // pred_check_branch
    %69 = sbr.rel (0) target = $region77
  $region76: #{_lambda_.1} parent=0 // pred_region
    _
  $region77: #{_lambda_.1} parent=0 // pred_fallthru
    _
  // Predicated region
  $region78: #{_lambda_.1} parent=0 // pred_check
    _
  $region79: #{_lambda_.1} parent=0 // pred_check_branch
    %71 = sbr.rel (0) target = $region81
  $region80: #{_lambda_.1} parent=0 // pred_region
    _
  $region81: #{_lambda_.1} parent=0 // pred_fallthru
    _
  // Predicated region
  $region82: #{_lambda_.1} parent=0 // pred_check
    _
  $region83: #{_lambda_.1} parent=0 // pred_check_branch
    %73 = sbr.rel (0) target = $region85
  $region84: #{_lambda_.1} parent=0 // pred_region
    _
  $region85: #{_lambda_.1} parent=0 // pred_fallthru
    _
  // Predicated region
  $region86: #{_lambda_.1} parent=0 // pred_check
    _
  $region87: #{_lambda_.1} parent=0 // pred_check_branch
    %75 = sbr.rel (0) target = $region89
  $region88: #{_lambda_.1} parent=0 // pred_region
    _
  $region89: #{_lambda_.1} parent=0 // pred_fallthru
    _
  // Predicated region
  $region90: #{_lambda_.1} parent=0 // pred_check
    _
  $region91: #{_lambda_.1} parent=0 // pred_check_branch
    %77 = sbr.rel (0) target = $region93
  $region92: #{_lambda_.1} parent=0 // pred_region
    _
  $region93: #{_lambda_.1} parent=0 // pred_fallthru
    _
  // Predicated region
  $region94: #{_lambda_.1} parent=0 // pred_check
    _
  $region95: #{_lambda_.1} parent=0 // pred_check_branch
    %79 = sbr.rel (0) target = $region97
  $region96: #{_lambda_.1} parent=0 // pred_region
    _
  $region97: #{_lambda_.1} parent=0 // pred_fallthru
    _
  // Predicated region
  $region98: #{_lambda_.1} parent=0 // pred_check
    _
  $region99: #{_lambda_.1} parent=0 // pred_check_branch
    %81 = sbr.rel (0) target = $region101
  $region100: #{_lambda_.1} parent=0 // pred_region
    _
  $region101: #{_lambda_.1} parent=0 // pred_fallthru
    _
  %v83 = vld [vmem:[%s0] sm:$0xff]
  %v84 = vld [vmem:[%s0 + $0x8] sm:$0xf]
  %v85 = vld [vmem:[%s0 + $0x10] sm:$0xff]
  %v86 = vld [vmem:[%s0 + $0x18] sm:$0xf]
  %vm91 = vcmask 1046528
  %v92 = vrot.slane %v83, 1
  %v93 = vrot.slane %v84, 1
  %v94 = vsel %vm91, %v92, %v93
  %v95 = vrot.slane %v85, 1
  %v96 = vrot.slane %v86, 1
  %v97 = vsel %vm91, %v95, %v96
  %98 = vrot.lane.b32.xlu0 %v94, 64
  %v99 = vpop.permute.xlu0 %98
  %100 = vrot.lane.b32.xlu0 %v93, 64
  %v101 = vpop.permute.xlu0 %100
  %102 = vrot.lane.b32.xlu0 %v97, 64
  %v103 = vpop.permute.xlu0 %102
  %104 = vrot.lane.b32.xlu0 %v96, 64
  %v105 = vpop.permute.xlu0 %104
  %vm110 = vcmask 1045504
  %v111 = vrot.slane %v83, 2
  %v112 = vrot.slane %v84, 2
  %v113 = vsel %vm110, %v111, %v112
  %v114 = vrot.slane %v85, 2
  %v115 = vrot.slane %v86, 2
  %v116 = vsel %vm110, %v114, %v115
  %vm117 = vcmask 523264
  %v118 = vsel %vm117, %v83, %v99
  %v119 = vsel %vm117, %v84, %v101
  %v120 = vsel %vm117, %v85, %v103
  %v121 = vsel %vm117, %v86, %v105
  %v126 = vcombine.low %v118, %v113
  %v127 = vcombine.high %v118, %v113
  %v129 = vunpack.c.l.s4 1983009808
  %v130 = vunpack.c.0.s8 %v129
  %v131 = vlaneseq
  %v132 = vshrl.u32 %v131, 7
  %v133 = vsub.s32 %v130, %v132
  %v134 = vrot.slane %v126, %v133
  %v136 = vunpack.c.l.s4 1983009808
  %v137 = vunpack.c.0.s8 %v136
  %v138 = vlaneseq
  %v139 = vshrl.u32 %v138, 7
  %v140 = vsub.s32 %v137, %v139
  %v141 = vrot.slane %v127, %v140
  %v142 = vcombine.high %v134, %v134
  %v143 = vcombine.high %v141, %v141
  %v144 = vcombine.low %v119, %v112
  %v146 = vunpack.c.l.s4 1983009808
  %v147 = vunpack.c.0.s8 %v146
  %v148 = vlaneseq
  %v149 = vshrl.u32 %v148, 7
  %v150 = vsub.s32 %v147, %v149
  %v151 = vrot.slane %v144, %v150
  %v152 = vcombine.low %v120, %v116
  %v153 = vcombine.high %v120, %v116
  %v155 = vunpack.c.l.s4 1983009808
  %v156 = vunpack.c.0.s8 %v155
  %v157 = vlaneseq
  %v158 = vshrl.u32 %v157, 7
  %v159 = vsub.s32 %v156, %v158
  %v160 = vrot.slane %v152, %v159
  %v162 = vunpack.c.l.s4 1983009808
  %v163 = vunpack.c.0.s8 %v162
  %v164 = vlaneseq
  %v165 = vshrl.u32 %v164, 7
  %v166 = vsub.s32 %v163, %v165
  %v167 = vrot.slane %v153, %v166
  %v168 = vcombine.high %v160, %v160
  %v169 = vcombine.high %v167, %v167
  %v170 = vcombine.low %v121, %v115
  %v172 = vunpack.c.l.s4 1983009808
  %v173 = vunpack.c.0.s8 %v172
  %v174 = vlaneseq
  %v175 = vshrl.u32 %v174, 7
  %v176 = vsub.s32 %v173, %v175
  %v177 = vrot.slane %v170, %v176
  %v178 = vcombine.low %v134, %v142
  %v179 = vcombine.low %v141, %v143
  %v181 = vunpack.c.l.s4 1983009808
  %v182 = vunpack.c.0.s8 %v181
  %v183 = vlaneseq
  %v184 = vshrl.u32 %v183, 7
  %v185 = vsub.s32 %v182, %v184
  %v186 = vrot.slane %v178, %v185
  %v188 = vunpack.c.l.s4 1983009808
  %v189 = vunpack.c.0.s8 %v188
  %v190 = vlaneseq
  %v191 = vshrl.u32 %v190, 7
  %v192 = vsub.s32 %v189, %v191
  %v193 = vrot.slane %v179, %v192
  %v194 = vcombine.low %v186, %v193
  %v195 = vcombine.high %v186, %v193
  %v196 = vcombine.low %v151, %v160
  %v197 = vcombine.low %v168, %v167
  %v199 = vunpack.c.l.s4 1983009808
  %v200 = vunpack.c.0.s8 %v199
  %v201 = vlaneseq
  %v202 = vshrl.u32 %v201, 7
  %v203 = vsub.s32 %v200, %v202
  %v204 = vrot.slane %v196, %v203
  %v206 = vunpack.c.l.s4 1983009808
  %v207 = vunpack.c.0.s8 %v206
  %v208 = vlaneseq
  %v209 = vshrl.u32 %v208, 7
  %v210 = vsub.s32 %v207, %v209
  %v211 = vrot.slane %v197, %v210
  %v212 = vcombine.low %v204, %v211
  %v213 = vcombine.high %v204, %v211
  %v214 = vcombine.low %v169, %v177
  %v216 = vunpack.c.l.s4 1983009808
  %v217 = vunpack.c.0.s8 %v216
  %v218 = vlaneseq
  %v219 = vshrl.u32 %v218, 7
  %v220 = vsub.s32 %v217, %v219
  %v221 = vrot.slane %v214, %v220
  %v222 = vcombine.high %v221, %v221
  %v229 = vpack.c.bf16 %v212, %v194
  %v230 = vpack.c.bf16 %v213, %v195
  %v231 = vpack.c.bf16 %v221, %v221
  %v232 = vpack.c.bf16 %v222, %v222
  %v233 = vld [vmem:[%s1] sm:$0xff]
  %v234 = vld [vmem:[%s1 + $0x8] sm:$0xff]
  %v235 = vld [vmem:[%s1 + $0x10] sm:$0xff]
  %v236 = vld [vmem:[%s1 + $0x18] sm:$0xff]
  %v237 = vld [vmem:[%s1 + $0x20] sm:$0xff]
  %v238 = vld [vmem:[%s1 + $0x28] sm:$0xff]
  %v239 = vld [vmem:[%s1 + $0x30] sm:$0xff]
  %v240 = vld [vmem:[%s1 + $0x38] sm:$0xff]
  %v241 = vld [vmem:[%s1 + $0x40] sm:$0xff]
  %v242 = vld [vmem:[%s1 + $0x48] sm:$0xff]
  %v243 = vld [vmem:[%s1 + $0x50] sm:$0xff]
  %v244 = vld [vmem:[%s1 + $0x58] sm:$0xff]
  %v245 = vld [vmem:[%s1 + $0x60] sm:$0xff]
  %v246 = vld [vmem:[%s1 + $0x68] sm:$0xff]
  %v247 = vld [vmem:[%s1 + $0x70] sm:$0xff]
  %v248 = vld [vmem:[%s1 + $0x78] sm:$0xff]
  %v249 = vld [vmem:[%s1 + $0x80] sm:$0xff]
  %v250 = vld [vmem:[%s1 + $0x88] sm:$0xff]
  %v251 = vld [vmem:[%s1 + $0x90] sm:$0xff]
  %v252 = vld [vmem:[%s1 + $0x98] sm:$0xff]
  %v253 = vld [vmem:[%s1 + $0xa0] sm:$0xff]
  %v254 = vld [vmem:[%s1 + $0xa8] sm:$0xff]
  %v255 = vld [vmem:[%s1 + $0xb0] sm:$0xff]
  %v256 = vld [vmem:[%s1 + $0xb8] sm:$0xff]
  %v257 = vld [vmem:[%s2] sm:$0x3]
  %v259 = vlaneseq
  %v260 = vshrl.u32 %v259, 7
  %v261 = vsub.s32 0, %v260
  %v262 = vrot.slane %v257, %v261
  %v263 = vlaneseq
  %v264 = vshrl.u32 %v263, 7
  %v265 = vsub.s32 1, %v264
  %v266 = vrot.slane %v257, %v265
  %v293 = vunpack.c.l.b16 %v233
  %v294 = vunpack.c.h.b16 %v233
  %v295 = vunpack.c.l.b16 %v234
  %v296 = vunpack.c.h.b16 %v234
  %v297 = vunpack.c.l.b16 %v235
  %v298 = vunpack.c.h.b16 %v235
  %v299 = vunpack.c.l.b16 %v236
  %v300 = vunpack.c.h.b16 %v236
  %v301 = vunpack.c.l.b16 %v237
  %v302 = vunpack.c.h.b16 %v237
  %v303 = vunpack.c.l.b16 %v238
  %v304 = vunpack.c.h.b16 %v238
  %v305 = vunpack.c.l.b16 %v239
  %v306 = vunpack.c.h.b16 %v239
  %v307 = vunpack.c.l.b16 %v240
  %v308 = vunpack.c.h.b16 %v240
  %v309 = vunpack.c.l.b16 %v241
  %v310 = vunpack.c.h.b16 %v241
  %v311 = vunpack.c.l.b16 %v242
  %v312 = vunpack.c.h.b16 %v242
  %v313 = vunpack.c.l.b16 %v243
  %v314 = vunpack.c.h.b16 %v243
  %v315 = vunpack.c.l.b16 %v244
  %v316 = vunpack.c.h.b16 %v244
  %v317 = vunpack.c.l.b16 %v245
  %v318 = vunpack.c.h.b16 %v245
  %v319 = vunpack.c.l.b16 %v246
  %v320 = vunpack.c.h.b16 %v246
  %v321 = vunpack.c.l.b16 %v247
  %v322 = vunpack.c.h.b16 %v247
  %v323 = vunpack.c.l.b16 %v248
  %v324 = vunpack.c.h.b16 %v248
  %v325 = vunpack.c.l.b16 %v249
  %v326 = vunpack.c.h.b16 %v249
  %v327 = vunpack.c.l.b16 %v250
  %v328 = vunpack.c.h.b16 %v250
  %v329 = vunpack.c.l.b16 %v251
  %v330 = vunpack.c.h.b16 %v251
  %v331 = vunpack.c.l.b16 %v252
  %v332 = vunpack.c.h.b16 %v252
  %v333 = vunpack.c.l.b16 %v253
  %v334 = vunpack.c.h.b16 %v253
  %v335 = vunpack.c.l.b16 %v254
  %v336 = vunpack.c.h.b16 %v254
  %v337 = vunpack.c.l.b16 %v255
  %v338 = vunpack.c.h.b16 %v255
  %v339 = vunpack.c.l.b16 %v256
  %v340 = vunpack.c.h.b16 %v256
  %v341 = vpack.c.b16 %v295, %v293
  %v342 = vpack.c.b16 %v296, %v294
  %v343 = vpack.c.b16 %v299, %v297
  %v344 = vpack.c.b16 %v300, %v298
  %v345 = vpack.c.b16 %v303, %v301
  %v346 = vpack.c.b16 %v304, %v302
  %v347 = vpack.c.b16 %v307, %v305
  %v348 = vpack.c.b16 %v308, %v306
  %v349 = vpack.c.b16 %v311, %v309
  %v350 = vpack.c.b16 %v312, %v310
  %v351 = vpack.c.b16 %v315, %v313
  %v352 = vpack.c.b16 %v316, %v314
  %v353 = vpack.c.b16 %v319, %v317
  %v354 = vpack.c.b16 %v320, %v318
  %v355 = vpack.c.b16 %v323, %v321
  %v356 = vpack.c.b16 %v324, %v322
  %v357 = vpack.c.b16 %v327, %v325
  %v358 = vpack.c.b16 %v328, %v326
  %v359 = vpack.c.b16 %v331, %v329
  %v360 = vpack.c.b16 %v332, %v330
  %v361 = vpack.c.b16 %v335, %v333
  %v362 = vpack.c.b16 %v336, %v334
  %v363 = vpack.c.b16 %v339, %v337
  %v364 = vpack.c.b16 %v340, %v338
  %v390 = vsel %vm117, %v230, 0
  %v393 = vsel %vm117, %v232, 0
  %395 = vmatprep.subr.bf16.mxu0 %v342
  %396 = vmatpush1.bf16.msra.mxu0 %v341
  %397 = vmatprep.subr.bf16.mxu0 %v344
  %398 = vmatpush1.bf16.msra.mxu0 %v343
  %399 = vmatprep.subr.bf16.mxu0 %v346
  %400 = vmatpush1.bf16.msra.mxu0 %v345
  %401 = vmatprep.subr.bf16.mxu0 %v348
  %402 = vmatpush1.bf16.msra.mxu0 %v347
  %403 = vmatprep.subr.bf16.mxu0 %v350
  %404 = vmatpush1.bf16.msra.mxu0 %v349
  %405 = vmatprep.subr.bf16.mxu0 %v352
  %406 = vmatpush1.bf16.msra.mxu0 %v351
  %407 = vmatprep.subr.bf16.mxu0 %v354
  %408 = vmatpush1.bf16.msra.mxu0 %v353
  %409 = vmatprep.subr.bf16.mxu0 %v356
  %410 = vmatpush1.bf16.msra.mxu0 %v355
  %411 = vmatprep.subr.bf16.mxu0 %v358
  %412 = vmatpush1.bf16.msra.mxu0 %v357
  %413 = vmatprep.subr.bf16.mxu0 %v360
  %414 = vmatpush1.bf16.msra.mxu0 %v359
  %415 = vmatprep.subr.bf16.mxu0 %v362
  %416 = vmatpush1.bf16.msra.mxu0 %v361
  %417 = vmatprep.subr.bf16.mxu0 %v364
  %418 = vmatpush1.bf16.msra.mxu0 %v363
  %419 = vmatprep.subr.bf16.mxu0 0
  %420 = vmatpush1.bf16.msra.mxu0 0
  %421 = vmatprep.subr.bf16.mxu0 0
  %422 = vmatpush1.bf16.msra.mxu0 0
  %423 = vmatprep.subr.bf16.mxu0 0
  %424 = vmatpush1.bf16.msra.mxu0 0
  %425 = vmatprep.subr.bf16.mxu0 0
  %426 = vmatpush1.bf16.msra.mxu0 0
  %427 = vmatprep.mubr.bf16.mxu0 %v390
  %428 = vmatmul.mubr.bf16.gmra.mrb[0].mxu0 %v229
  %v429 = vpop.f32.mrb[0].mxu0
  %v430 = vadd.f32 %v262, %v429
  %v431 = vpop.f32.mrb[0].mxu0
  %v432 = vadd.f32 %v266, %v431
  %v433 = vpop.f32.mrb[0].mxu0
  %v434 = vadd.f32 %v262, %v433
  %v435 = vpop.f32.mrb[0].mxu0
  %v436 = vadd.f32 %v266, %v435
  %437 = vmatprep.mubr.bf16.mxu0 %v393
  %438 = vmatmul.mubr.bf16.gmra.mrb[0].mxu0 %v231
  %v439 = vpop.f32.mrb[0].mxu0
  %v440 = vadd.f32 %v262, %v439
  %v441 = vpop.f32.mrb[0].mxu0
  %v442 = vadd.f32 %v266, %v441
  %v443 = vpop.f32.mrb[0].mxu0
  %v444 = vpop.f32.mrb[0].mxu0
  %445 = vdwg.mxu0
  %v446 = vxor.u32 %v432, 2147483648
  %v447 = vxor.u32 %v436, 2147483648
  %v448 = vxor.u32 %v442, 2147483648
  %v449 = vmul.f32 %v446, 1.442695
  %v450 = vpow.pop %v449
  %v451 = vmul.f32 %v447, 1.442695
  %v452 = vpow.pop %v451
  %v453 = vmul.f32 %v448, 1.442695
  %v454 = vpow.pop %v453
  %v455 = vadd.f32 %v450, 1.0
  %v456 = vadd.f32 %v452, 1.0
  %v457 = vadd.f32 %v454, 1.0
  %v458 = vrcp.pop %v455
  %v459 = vmul.f32 1.0, %v458
  %v460 = vrcp.pop %v456
  %v461 = vmul.f32 1.0, %v460
  %v462 = vrcp.pop %v457
  %v463 = vmul.f32 1.0, %v462
  %v464 = vmul.f32 %v430, %v459
  %v465 = vmul.f32 %v434, %v461
  %v466 = vmul.f32 %v440, %v463
  %v467 = vpack.c.bf16 %v465, %v464
  %v468 = vpack.c.bf16 %v466, %v466
  %v469 = vld [vmem:[%s3] sm:$0xf]
  %v470 = vld [vmem:[%s3 + $0x4] sm:$0xf]
  %v471 = vld [vmem:[%s3 + $0x8] sm:$0xf]
  %v472 = vld [vmem:[%s3 + $0xc] sm:$0xf]
  %v473 = vld [vmem:[%s3 + $0x10] sm:$0xf]
  %v474 = vld [vmem:[%s3 + $0x14] sm:$0xf]
  %v475 = vld [vmem:[%s3 + $0x18] sm:$0xf]
  %v476 = vld [vmem:[%s3 + $0x1c] sm:$0xf]
  %v477 = vld [vmem:[%s3 + $0x20] sm:$0xf]
  %v478 = vld [vmem:[%s3 + $0x24] sm:$0xf]
  %v479 = vld [vmem:[%s3 + $0x28] sm:$0xf]
  %v480 = vld [vmem:[%s3 + $0x2c] sm:$0xf]
  %v481 = vld [vmem:[%s3 + $0x30] sm:$0xf]
  %v482 = vld [vmem:[%s3 + $0x34] sm:$0xf]
  %v483 = vld [vmem:[%s3 + $0x38] sm:$0xf]
  %v484 = vld [vmem:[%s3 + $0x3c] sm:$0xf]
  %v485 = vld [vmem:[%s4] sm:$0x1]
  %v487 = vlaneseq
  %v488 = vshrl.u32 %v487, 7
  %v489 = vsub.s32 0, %v488
  %v490 = vrot.slane %v485, %v489
  %v508 = vunpack.c.l.b16 %v469
  %v509 = vunpack.c.l.b16 %v470
  %v510 = vunpack.c.l.b16 %v471
  %v511 = vunpack.c.l.b16 %v472
  %v512 = vunpack.c.l.b16 %v473
  %v513 = vunpack.c.l.b16 %v474
  %v514 = vunpack.c.l.b16 %v475
  %v515 = vunpack.c.l.b16 %v476
  %v516 = vunpack.c.l.b16 %v477
  %v517 = vunpack.c.l.b16 %v478
  %v518 = vunpack.c.l.b16 %v479
  %v519 = vunpack.c.l.b16 %v480
  %v520 = vunpack.c.l.b16 %v481
  %v521 = vunpack.c.l.b16 %v482
  %v522 = vunpack.c.l.b16 %v483
  %v523 = vunpack.c.l.b16 %v484
  %v524 = vpack.c.b16 %v509, %v508
  %v525 = vpack.c.b16 %v511, %v510
  %v526 = vpack.c.b16 %v513, %v512
  %v527 = vpack.c.b16 %v515, %v514
  %v528 = vpack.c.b16 %v517, %v516
  %v529 = vpack.c.b16 %v519, %v518
  %v530 = vpack.c.b16 %v521, %v520
  %v531 = vpack.c.b16 %v523, %v522
  %540 = vmatprep.subr.bf16.mxu0 0
  %541 = vmatpush1.bf16.msra.mxu0 %v524
  %542 = vmatprep.subr.bf16.mxu0 0
  %543 = vmatpush1.bf16.msra.mxu0 %v525
  %544 = vmatprep.subr.bf16.mxu0 0
  %545 = vmatpush1.bf16.msra.mxu0 %v526
  %546 = vmatprep.subr.bf16.mxu0 0
  %547 = vmatpush1.bf16.msra.mxu0 %v527
  %548 = vmatprep.subr.bf16.mxu0 0
  %549 = vmatpush1.bf16.msra.mxu0 %v528
  %550 = vmatprep.subr.bf16.mxu0 0
  %551 = vmatpush1.bf16.msra.mxu0 %v529
  %552 = vmatprep.subr.bf16.mxu0 0
  %553 = vmatpush1.bf16.msra.mxu0 %v530
  %554 = vmatprep.subr.bf16.mxu0 0
  %555 = vmatpush1.bf16.msra.mxu0 %v531
  %556 = vmatprep.subr.bf16.mxu0 0
  %557 = vmatpush1.bf16.msra.mxu0 0
  %558 = vmatprep.subr.bf16.mxu0 0
  %559 = vmatpush1.bf16.msra.mxu0 0
  %560 = vmatprep.subr.bf16.mxu0 0
  %561 = vmatpush1.bf16.msra.mxu0 0
  %562 = vmatprep.subr.bf16.mxu0 0
  %563 = vmatpush1.bf16.msra.mxu0 0
  %564 = vmatprep.subr.bf16.mxu0 0
  %565 = vmatpush1.bf16.msra.mxu0 0
  %566 = vmatprep.subr.bf16.mxu0 0
  %567 = vmatpush1.bf16.msra.mxu0 0
  %568 = vmatprep.subr.bf16.mxu0 0
  %569 = vmatpush1.bf16.msra.mxu0 0
  %570 = vmatprep.subr.bf16.mxu0 0
  %571 = vmatpush1.bf16.msra.mxu0 0
  %572 = vmatprep.mubr.bf16.mxu0 0
  %573 = vmatmul.mubr.bf16.gmra.mrb[0].mxu0 %v467
  %v574 = vpop.f32.mrb[0].mxu0
  %v575 = vadd.f32 %v490, %v574
  %v576 = vpop.f32.mrb[0].mxu0
  %v577 = vpop.f32.mrb[0].mxu0
  %v578 = vadd.f32 %v490, %v577
  %v579 = vpop.f32.mrb[0].mxu0
  %580 = vmatprep.mubr.bf16.mxu0 0
  %581 = vmatmul.mubr.bf16.gmra.mrb[0].mxu0 %v468
  %v582 = vpop.f32.mrb[0].mxu0
  %v583 = vadd.f32 %v490, %v582
  %v584 = vpop.f32.mrb[0].mxu0
  %v585 = vpop.f32.mrb[0].mxu0
  %v586 = vpop.f32.mrb[0].mxu0
  %587 = vdwg.mxu0
  %v588 = vmax.f32 %v575, 0.0
  %v589 = vmax.f32 %v578, 0.0
  %v590 = vmax.f32 %v583, 0.0
  %v594 = vcombine.high %v588, %v588
  %v596 = vunpack.c.l.s4 1983009808
  %v597 = vunpack.c.0.s8 %v596
  %v598 = vlaneseq
  %v599 = vshrl.u32 %v598, 7
  %v600 = vsub.s32 %v597, %v599
  %v601 = vrot.slane %v588, %v600
  %v603 = vunpack.c.l.s4 1983009808
  %v604 = vunpack.c.0.s8 %v603
  %v605 = vlaneseq
  %v606 = vshrl.u32 %v605, 7
  %v607 = vsub.s32 %v604, %v606
  %v608 = vrot.slane %v594, %v607
  %v609 = vcombine.high %v601, %v601
  %v610 = vcombine.high %v608, %v608
  %v611 = vcombine.high %v589, %v589
  %v613 = vunpack.c.l.s4 1983009808
  %v614 = vunpack.c.0.s8 %v613
  %v615 = vlaneseq
  %v616 = vshrl.u32 %v615, 7
  %v617 = vsub.s32 %v614, %v616
  %v618 = vrot.slane %v589, %v617
  %v620 = vunpack.c.l.s4 1983009808
  %v621 = vunpack.c.0.s8 %v620
  %v622 = vlaneseq
  %v623 = vshrl.u32 %v622, 7
  %v624 = vsub.s32 %v621, %v623
  %v625 = vrot.slane %v611, %v624
  %v626 = vcombine.high %v618, %v618
  %v627 = vcombine.high %v625, %v625
  %v629 = vunpack.c.l.s4 1983009808
  %v630 = vunpack.c.0.s8 %v629
  %v631 = vlaneseq
  %v632 = vshrl.u32 %v631, 7
  %v633 = vsub.s32 %v630, %v632
  %v634 = vrot.slane %v590, %v633
  %v635 = vcombine.high %v634, %v634
  %v636 = vcombine.low %v601, %v609
  %v637 = vcombine.low %v608, %v610
  %v639 = vunpack.c.l.s4 1983009808
  %v640 = vunpack.c.0.s8 %v639
  %v641 = vlaneseq
  %v642 = vshrl.u32 %v641, 7
  %v643 = vsub.s32 %v640, %v642
  %v644 = vrot.slane %v636, %v643
  %v646 = vunpack.c.l.s4 1983009808
  %v647 = vunpack.c.0.s8 %v646
  %v648 = vlaneseq
  %v649 = vshrl.u32 %v648, 7
  %v650 = vsub.s32 %v647, %v649
  %v651 = vrot.slane %v637, %v650
  %v652 = vcombine.low %v644, %v651
  %v653 = vcombine.low %v626, %v625
  %v654 = vcombine.low %v627, %v634
  %v656 = vunpack.c.l.s4 1983009808
  %v657 = vunpack.c.0.s8 %v656
  %v658 = vlaneseq
  %v659 = vshrl.u32 %v658, 7
  %v660 = vsub.s32 %v657, %v659
  %v661 = vrot.slane %v653, %v660
  %v663 = vunpack.c.l.s4 1983009808
  %v664 = vunpack.c.0.s8 %v663
  %v665 = vlaneseq
  %v666 = vshrl.u32 %v665, 7
  %v667 = vsub.s32 %v664, %v666
  %v668 = vrot.slane %v654, %v667
  %v669 = vcombine.low %v661, %v668
  %v673 = vunpack.c.l.s4 1983009808
  %v674 = vunpack.c.0.s8 %v673
  %v675 = vlaneseq
  %v676 = vshrl.u32 %v675, 7
  %v677 = vsub.s32 %v674, %v676
  %v678 = vrot.slane %v618, %v677
  %v680 = vunpack.c.l.s4 1983009808
  %v681 = vunpack.c.0.s8 %v680
  %v682 = vlaneseq
  %v683 = vshrl.u32 %v682, 7
  %v684 = vsub.s32 %v681, %v683
  %v685 = vrot.slane %v635, %v684
  %v686 = vrot.slane %v652, 1
  %v687 = vrot.slane %v678, 1
  %v688 = vsel %vm91, %v686, %v687
  %v689 = vrot.slane %v669, 1
  %v690 = vrot.slane %v685, 1
  %v691 = vsel %vm91, %v689, %v690
  %692 = vrot.lane.b32.xlu0 %v688, 64
  %v693 = vpop.permute.xlu0 %692
  %694 = vrot.lane.b32.xlu0 %v691, 64
  %v695 = vpop.permute.xlu0 %694
  %v698 = vcombine.low %v609, %v608
  %v699 = vcombine.low %v610, %v618
  %v701 = vunpack.c.l.s4 1983009808
  %v702 = vunpack.c.0.s8 %v701
  %v703 = vlaneseq
  %v704 = vshrl.u32 %v703, 7
  %v705 = vsub.s32 %v702, %v704
  %v706 = vrot.slane %v698, %v705
  %v708 = vunpack.c.l.s4 1983009808
  %v709 = vunpack.c.0.s8 %v708
  %v710 = vlaneseq
  %v711 = vshrl.u32 %v710, 7
  %v712 = vsub.s32 %v709, %v711
  %v713 = vrot.slane %v699, %v712
  %v714 = vcombine.low %v706, %v713
  %v715 = vcombine.low %v625, %v627
  %v716 = vcombine.low %v634, %v635
  %v718 = vunpack.c.l.s4 1983009808
  %v719 = vunpack.c.0.s8 %v718
  %v720 = vlaneseq
  %v721 = vshrl.u32 %v720, 7
  %v722 = vsub.s32 %v719, %v721
  %v723 = vrot.slane %v715, %v722
  %v725 = vunpack.c.l.s4 1983009808
  %v726 = vunpack.c.0.s8 %v725
  %v727 = vlaneseq
  %v728 = vshrl.u32 %v727, 7
  %v729 = vsub.s32 %v726, %v728
  %v730 = vrot.slane %v716, %v729
  %v731 = vcombine.low %v723, %v730
  %v734 = vsel %vm117, %v652, %v693
  %v735 = vsel %vm117, %v669, %v695
  %v736 = vpack.c.bf16 %v735, %v734
  %v737 = vpack.c.bf16 %v731, %v714
  %v738 = vld [vmem:[%s5] sm:$0xff]
  %v739 = vld [vmem:[%s5 + $0x8] sm:$0xff]
  %v740 = vld [vmem:[%s5 + $0x10] sm:$0xff]
  %v741 = vld [vmem:[%s5 + $0x18] sm:$0xff]
  %v742 = vld [vmem:[%s5 + $0x20] sm:$0xff]
  %v743 = vld [vmem:[%s5 + $0x28] sm:$0xff]
  %v744 = vld [vmem:[%s5 + $0x30] sm:$0xff]
  %v745 = vld [vmem:[%s5 + $0x38] sm:$0xff]
  %v746 = vld [vmem:[%s5 + $0x40] sm:$0xff]
  %v747 = vld [vmem:[%s5 + $0x48] sm:$0xff]
  %v748 = vld [vmem:[%s5 + $0x50] sm:$0xff]
  %v749 = vld [vmem:[%s5 + $0x58] sm:$0xff]
  %v750 = vld [vmem:[%s5 + $0x60] sm:$0xff]
  %v751 = vld [vmem:[%s5 + $0x68] sm:$0xff]
  %v752 = vld [vmem:[%s5 + $0x70] sm:$0xff]
  %v753 = vld [vmem:[%s5 + $0x78] sm:$0xff]
  %v754 = vld [vmem:[%s5 + $0x80] sm:$0xff]
  %v755 = vld [vmem:[%s5 + $0x88] sm:$0xff]
  %v756 = vld [vmem:[%s5 + $0x90] sm:$0xff]
  %v757 = vld [vmem:[%s5 + $0x98] sm:$0xff]
  %v758 = vld [vmem:[%s5 + $0xa0] sm:$0xff]
  %v759 = vld [vmem:[%s5 + $0xa8] sm:$0xff]
  %v760 = vld [vmem:[%s5 + $0xb0] sm:$0xff]
  %v761 = vld [vmem:[%s5 + $0xb8] sm:$0xff]
  %v762 = vld [vmem:[%s6] sm:$0x3]
  %v764 = vlaneseq
  %v765 = vshrl.u32 %v764, 7
  %v766 = vsub.s32 0, %v765
  %v767 = vrot.slane %v762, %v766
  %v768 = vlaneseq
  %v769 = vshrl.u32 %v768, 7
  %v770 = vsub.s32 1, %v769
  %v771 = vrot.slane %v762, %v770
  %v798 = vunpack.c.l.b16 %v738
  %v799 = vunpack.c.h.b16 %v738
  %v800 = vunpack.c.l.b16 %v739
  %v801 = vunpack.c.h.b16 %v739
  %v802 = vunpack.c.l.b16 %v740
  %v803 = vunpack.c.h.b16 %v740
  %v804 = vunpack.c.l.b16 %v741
  %v805 = vunpack.c.h.b16 %v741
  %v806 = vunpack.c.l.b16 %v742
  %v807 = vunpack.c.h.b16 %v742
  %v808 = vunpack.c.l.b16 %v743
  %v809 = vunpack.c.h.b16 %v743
  %v810 = vunpack.c.l.b16 %v744
  %v811 = vunpack.c.h.b16 %v744
  %v812 = vunpack.c.l.b16 %v745
  %v813 = vunpack.c.h.b16 %v745
  %v814 = vunpack.c.l.b16 %v746
  %v815 = vunpack.c.h.b16 %v746
  %v816 = vunpack.c.l.b16 %v747
  %v817 = vunpack.c.h.b16 %v747
  %v818 = vunpack.c.l.b16 %v748
  %v819 = vunpack.c.h.b16 %v748
  %v820 = vunpack.c.l.b16 %v749
  %v821 = vunpack.c.h.b16 %v749
  %v822 = vunpack.c.l.b16 %v750
  %v823 = vunpack.c.h.b16 %v750
  %v824 = vunpack.c.l.b16 %v751
  %v825 = vunpack.c.h.b16 %v751
  %v826 = vunpack.c.l.b16 %v752
  %v827 = vunpack.c.h.b16 %v752
  %v828 = vunpack.c.l.b16 %v753
  %v829 = vunpack.c.h.b16 %v753
  %v830 = vunpack.c.l.b16 %v754
  %v831 = vunpack.c.h.b16 %v754
  %v832 = vunpack.c.l.b16 %v755
  %v833 = vunpack.c.h.b16 %v755
  %v834 = vunpack.c.l.b16 %v756
  %v835 = vunpack.c.h.b16 %v756
  %v836 = vunpack.c.l.b16 %v757
  %v837 = vunpack.c.h.b16 %v757
  %v838 = vunpack.c.l.b16 %v758
  %v839 = vunpack.c.h.b16 %v758
  %v840 = vunpack.c.l.b16 %v759
  %v841 = vunpack.c.h.b16 %v759
  %v842 = vunpack.c.l.b16 %v760
  %v843 = vunpack.c.h.b16 %v760
  %v844 = vunpack.c.l.b16 %v761
  %v845 = vunpack.c.h.b16 %v761
  %v846 = vpack.c.b16 %v800, %v798
  %v847 = vpack.c.b16 %v801, %v799
  %v848 = vpack.c.b16 %v804, %v802
  %v849 = vpack.c.b16 %v805, %v803
  %v850 = vpack.c.b16 %v808, %v806
  %v851 = vpack.c.b16 %v809, %v807
  %v852 = vpack.c.b16 %v812, %v810
  %v853 = vpack.c.b16 %v813, %v811
  %v854 = vpack.c.b16 %v816, %v814
  %v855 = vpack.c.b16 %v817, %v815
  %v856 = vpack.c.b16 %v820, %v818
  %v857 = vpack.c.b16 %v821, %v819
  %v858 = vpack.c.b16 %v824, %v822
  %v859 = vpack.c.b16 %v825, %v823
  %v860 = vpack.c.b16 %v828, %v826
  %v861 = vpack.c.b16 %v829, %v827
  %v862 = vpack.c.b16 %v832, %v830
  %v863 = vpack.c.b16 %v833, %v831
  %v864 = vpack.c.b16 %v836, %v834
  %v865 = vpack.c.b16 %v837, %v835
  %v866 = vpack.c.b16 %v840, %v838
  %v867 = vpack.c.b16 %v841, %v839
  %v868 = vpack.c.b16 %v844, %v842
  %v869 = vpack.c.b16 %v845, %v843
  %v895 = vsel %vm117, %v737, 0
  %897 = vmatprep.subr.bf16.mxu0 %v847
  %898 = vmatpush1.bf16.msra.mxu0 %v846
  %899 = vmatprep.subr.bf16.mxu0 %v849
  %900 = vmatpush1.bf16.msra.mxu0 %v848
  %901 = vmatprep.subr.bf16.mxu0 %v851
  %902 = vmatpush1.bf16.msra.mxu0 %v850
  %903 = vmatprep.subr.bf16.mxu0 %v853
  %904 = vmatpush1.bf16.msra.mxu0 %v852
  %905 = vmatprep.subr.bf16.mxu0 %v855
  %906 = vmatpush1.bf16.msra.mxu0 %v854
  %907 = vmatprep.subr.bf16.mxu0 %v857
  %908 = vmatpush1.bf16.msra.mxu0 %v856
  %909 = vmatprep.subr.bf16.mxu0 %v859
  %910 = vmatpush1.bf16.msra.mxu0 %v858
  %911 = vmatprep.subr.bf16.mxu0 %v861
  %912 = vmatpush1.bf16.msra.mxu0 %v860
  %913 = vmatprep.subr.bf16.mxu0 %v863
  %914 = vmatpush1.bf16.msra.mxu0 %v862
  %915 = vmatprep.subr.bf16.mxu0 %v865
  %916 = vmatpush1.bf16.msra.mxu0 %v864
  %917 = vmatprep.subr.bf16.mxu0 %v867
  %918 = vmatpush1.bf16.msra.mxu0 %v866
  %919 = vmatprep.subr.bf16.mxu0 %v869
  %920 = vmatpush1.bf16.msra.mxu0 %v868
  %921 = vmatprep.subr.bf16.mxu0 0
  %922 = vmatpush1.bf16.msra.mxu0 0
  %923 = vmatprep.subr.bf16.mxu0 0
  %924 = vmatpush1.bf16.msra.mxu0 0
  %925 = vmatprep.subr.bf16.mxu0 0
  %926 = vmatpush1.bf16.msra.mxu0 0
  %927 = vmatprep.subr.bf16.mxu0 0
  %928 = vmatpush1.bf16.msra.mxu0 0
  %929 = vmatprep.mubr.bf16.mxu0 %v895
  %930 = vmatmul.mubr.bf16.gmra.mrb[0].mxu0 %v736
  %v931 = vpop.f32.mrb[0].mxu0
  %v932 = vadd.f32 %v767, %v931
  %v933 = vpop.f32.mrb[0].mxu0
  %v934 = vadd.f32 %v771, %v933
  %v935 = vpop.f32.mrb[0].mxu0
  %v936 = vadd.f32 %v767, %v935
  %v937 = vpop.f32.mrb[0].mxu0
  %v938 = vadd.f32 %v771, %v937
  %939 = vdwg.mxu0
  %v940 = vxor.u32 %v934, 2147483648
  %v941 = vxor.u32 %v938, 2147483648
  %v942 = vmul.f32 %v940, 1.442695
  %v943 = vpow.pop %v942
  %v944 = vmul.f32 %v941, 1.442695
  %v945 = vpow.pop %v944
  %v946 = vadd.f32 %v943, 1.0
  %v947 = vadd.f32 %v945, 1.0
  %v948 = vrcp.pop %v946
  %v949 = vmul.f32 1.0, %v948
  %v950 = vrcp.pop %v947
  %v951 = vmul.f32 1.0, %v950
  %v952 = vmul.f32 %v932, %v949
  %v953 = vmul.f32 %v936, %v951
  %v954 = vld [vmem:[%s7] sm:$0x1]
  %v955 = vld [vmem:[%s8] sm:$0x1]
  %956 = vadd.xlane.f32.xlu0 %v952
  %v957 = vpop.xlane.xlu0 %956
  %958 = vadd.xlane.f32.xlu0 %v953
  %v959 = vpop.xlane.xlu0 %958
  %v960 = vrcp.pop 128.0
  %v961 = vmul.f32 %v957, %v960
  %v962 = vmul.f32 %v959, %v960
  %v963 = vsub.f32 %v952, %v961
  %v964 = vsub.f32 %v953, %v962
  %v965 = vmul.f32 %v963, %v963
  %v966 = vmul.f32 %v964, %v964
  %967 = vadd.xlane.f32.xlu0 %v965
  %v968 = vpop.xlane.xlu0 %967
  %969 = vadd.xlane.f32.xlu0 %v966
  %v970 = vpop.xlane.xlu0 %969
  %v971 = vmul.f32 %v968, %v960
  %v972 = vmul.f32 %v970, %v960
  %v973 = vadd.f32 %v971, 1e-05
  %v974 = vadd.f32 %v972, 1e-05
  %v975 = vrsqrt.pop %v973
  %v976 = vrsqrt.pop %v974
  %v977 = vmul.f32 %v963, %v975
  %v978 = vmul.f32 %v964, %v976
  %v980 = vlaneseq
  %v981 = vshrl.u32 %v980, 7
  %v982 = vsub.s32 0, %v981
  %v983 = vrot.slane %v954, %v982
  %v985 = vmul.f32 %v977, %v983
  %v986 = vmul.f32 %v978, %v983
  %v988 = vlaneseq
  %v989 = vshrl.u32 %v988, 7
  %v990 = vsub.s32 0, %v989
  %v991 = vrot.slane %v955, %v990
  %v993 = vadd.f32 %v985, %v991
  %v994 = vadd.f32 %v986, %v991
  %v997 = vrot.slane %v993, 1
  %v998 = vrot.slane %v994, 1
  %v999 = vrot.slane %v993, 2
  %v1000 = vrot.slane %v994, 2
  %v1001 = vcombine.low %v993, %v997
  %v1002 = vcombine.high %v993, %v997
  %v1003 = vcombine.high %v999, %v999
  %v1005 = vunpack.c.l.s4 1983009808
  %v1006 = vunpack.c.0.s8 %v1005
  %v1007 = vlaneseq
  %v1008 = vshrl.u32 %v1007, 7
  %v1009 = vsub.s32 %v1006, %v1008
  %v1010 = vrot.slane %v1001, %v1009
  %v1012 = vunpack.c.l.s4 1983009808
  %v1013 = vunpack.c.0.s8 %v1012
  %v1014 = vlaneseq
  %v1015 = vshrl.u32 %v1014, 7
  %v1016 = vsub.s32 %v1013, %v1015
  %v1017 = vrot.slane %v1002, %v1016
  %v1019 = vunpack.c.l.s4 1983009808
  %v1020 = vunpack.c.0.s8 %v1019
  %v1021 = vlaneseq
  %v1022 = vshrl.u32 %v1021, 7
  %v1023 = vsub.s32 %v1020, %v1022
  %v1024 = vrot.slane %v999, %v1023
  %v1026 = vunpack.c.l.s4 1983009808
  %v1027 = vunpack.c.0.s8 %v1026
  %v1028 = vlaneseq
  %v1029 = vshrl.u32 %v1028, 7
  %v1030 = vsub.s32 %v1027, %v1029
  %v1031 = vrot.slane %v1003, %v1030
  %v1032 = vcombine.low %v1010, %v1024
  %v1033 = vcombine.high %v1010, %v1024
  %v1034 = vcombine.low %v1017, %v1031
  %v1035 = vcombine.low %v994, %v998
  %v1036 = vcombine.high %v994, %v998
  %v1037 = vcombine.high %v1000, %v1000
  %v1039 = vunpack.c.l.s4 1983009808
  %v1040 = vunpack.c.0.s8 %v1039
  %v1041 = vlaneseq
  %v1042 = vshrl.u32 %v1041, 7
  %v1043 = vsub.s32 %v1040, %v1042
  %v1044 = vrot.slane %v1035, %v1043
  %v1046 = vunpack.c.l.s4 1983009808
  %v1047 = vunpack.c.0.s8 %v1046
  %v1048 = vlaneseq
  %v1049 = vshrl.u32 %v1048, 7
  %v1050 = vsub.s32 %v1047, %v1049
  %v1051 = vrot.slane %v1036, %v1050
  %v1053 = vunpack.c.l.s4 1983009808
  %v1054 = vunpack.c.0.s8 %v1053
  %v1055 = vlaneseq
  %v1056 = vshrl.u32 %v1055, 7
  %v1057 = vsub.s32 %v1054, %v1056
  %v1058 = vrot.slane %v1000, %v1057
  %v1060 = vunpack.c.l.s4 1983009808
  %v1061 = vunpack.c.0.s8 %v1060
  %v1062 = vlaneseq
  %v1063 = vshrl.u32 %v1062, 7
  %v1064 = vsub.s32 %v1061, %v1063
  %v1065 = vrot.slane %v1037, %v1064
  %v1066 = vcombine.low %v1044, %v1058
  %v1067 = vcombine.high %v1044, %v1058
  %v1068 = vcombine.low %v1051, %v1065
  %v1069 = vcombine.low %v1032, %v1033
  %v1070 = vcombine.high %v1032, %v1033
  %v1071 = vcombine.low %v1034, %v1066
  %v1072 = vcombine.high %v1034, %v1066
  %v1074 = vunpack.c.l.s4 1983009808
  %v1075 = vunpack.c.0.s8 %v1074
  %v1076 = vlaneseq
  %v1077 = vshrl.u32 %v1076, 7
  %v1078 = vsub.s32 %v1075, %v1077
  %v1079 = vrot.slane %v1069, %v1078
  %v1081 = vunpack.c.l.s4 1983009808
  %v1082 = vunpack.c.0.s8 %v1081
  %v1083 = vlaneseq
  %v1084 = vshrl.u32 %v1083, 7
  %v1085 = vsub.s32 %v1082, %v1084
  %v1086 = vrot.slane %v1070, %v1085
  %v1088 = vunpack.c.l.s4 1983009808
  %v1089 = vunpack.c.0.s8 %v1088
  %v1090 = vlaneseq
  %v1091 = vshrl.u32 %v1090, 7
  %v1092 = vsub.s32 %v1089, %v1091
  %v1093 = vrot.slane %v1071, %v1092
  %v1095 = vunpack.c.l.s4 1983009808
  %v1096 = vunpack.c.0.s8 %v1095
  %v1097 = vlaneseq
  %v1098 = vshrl.u32 %v1097, 7
  %v1099 = vsub.s32 %v1096, %v1098
  %v1100 = vrot.slane %v1072, %v1099
  %v1101 = vcombine.low %v1079, %v1093
  %v1102 = vcombine.high %v1079, %v1093
  %v1103 = vcombine.low %v1086, %v1100
  %v1104 = vcombine.low %v1067, %v1068
  %v1105 = vcombine.high %v1067, %v1068
  %v1107 = vunpack.c.l.s4 1983009808
  %v1108 = vunpack.c.0.s8 %v1107
  %v1109 = vlaneseq
  %v1110 = vshrl.u32 %v1109, 7
  %v1111 = vsub.s32 %v1108, %v1110
  %v1112 = vrot.slane %v1104, %v1111
  %v1114 = vunpack.c.l.s4 1983009808
  %v1115 = vunpack.c.0.s8 %v1114
  %v1116 = vlaneseq
  %v1117 = vshrl.u32 %v1116, 7
  %v1118 = vsub.s32 %v1115, %v1117
  %v1119 = vrot.slane %v1105, %v1118
  %v1120 = vcombine.high %v1112, %v1112
  %v1127 = vpack.c.bf16 %v1112, %v1101
  %v1128 = vpack.c.bf16 %v1120, %v1102
  %v1129 = vpack.c.bf16 %v1119, %v1103
  %v1130 = vld [vmem:[%s9] sm:$0xff]
  %v1131 = vld [vmem:[%s9 + $0x8] sm:$0xff]
  %v1132 = vld [vmem:[%s9 + $0x10] sm:$0xff]
  %v1133 = vld [vmem:[%s9 + $0x18] sm:$0xff]
  %v1134 = vld [vmem:[%s9 + $0x20] sm:$0xff]
  %v1135 = vld [vmem:[%s9 + $0x28] sm:$0xff]
  %v1136 = vld [vmem:[%s9 + $0x30] sm:$0xff]
  %v1137 = vld [vmem:[%s9 + $0x38] sm:$0xff]
  %v1138 = vld [vmem:[%s9 + $0x40] sm:$0xff]
  %v1139 = vld [vmem:[%s9 + $0x48] sm:$0xff]
  %v1140 = vld [vmem:[%s9 + $0x50] sm:$0xff]
  %v1141 = vld [vmem:[%s9 + $0x58] sm:$0xff]
  %v1142 = vld [vmem:[%s9 + $0x60] sm:$0xff]
  %v1143 = vld [vmem:[%s9 + $0x68] sm:$0xff]
  %v1144 = vld [vmem:[%s9 + $0x70] sm:$0xff]
  %v1145 = vld [vmem:[%s9 + $0x78] sm:$0xff]
  %v1146 = vld [vmem:[%s9 + $0x80] sm:$0xff]
  %v1147 = vld [vmem:[%s9 + $0x88] sm:$0xff]
  %v1148 = vld [vmem:[%s9 + $0x90] sm:$0xff]
  %v1149 = vld [vmem:[%s9 + $0x98] sm:$0xff]
  %v1150 = vld [vmem:[%s9 + $0xa0] sm:$0xff]
  %v1151 = vld [vmem:[%s9 + $0xa8] sm:$0xff]
  %v1152 = vld [vmem:[%s9 + $0xb0] sm:$0xff]
  %v1153 = vld [vmem:[%s9 + $0xb8] sm:$0xff]
  %v1154 = vld [vmem:[%s9 + $0xc0] sm:$0xff]
  %v1155 = vld [vmem:[%s9 + $0xc8] sm:$0xff]
  %v1156 = vld [vmem:[%s9 + $0xd0] sm:$0xff]
  %v1157 = vld [vmem:[%s9 + $0xd8] sm:$0xff]
  %v1158 = vld [vmem:[%s9 + $0xe0] sm:$0xff]
  %v1159 = vld [vmem:[%s9 + $0xe8] sm:$0xff]
  %v1160 = vld [vmem:[%s9 + $0xf0] sm:$0xff]
  %v1161 = vld [vmem:[%s9 + $0xf8] sm:$0xff]
  %v1162 = vld [vmem:[%s9 + $0x100] sm:$0xff]
  %v1163 = vld [vmem:[%s9 + $0x108] sm:$0xff]
  %v1164 = vld [vmem:[%s9 + $0x110] sm:$0xff]
  %v1165 = vld [vmem:[%s9 + $0x118] sm:$0xff]
  %v1166 = vld [vmem:[%s9 + $0x120] sm:$0xff]
  %v1167 = vld [vmem:[%s9 + $0x128] sm:$0xff]
  %v1168 = vld [vmem:[%s9 + $0x130] sm:$0xff]
  %v1169 = vld [vmem:[%s9 + $0x138] sm:$0xff]
  %v1170 = vld [vmem:[%s9 + $0x140] sm:$0xff]
  %v1171 = vld [vmem:[%s9 + $0x148] sm:$0xff]
  %v1172 = vld [vmem:[%s9 + $0x150] sm:$0xff]
  %v1173 = vld [vmem:[%s9 + $0x158] sm:$0xff]
  %v1174 = vld [vmem:[%s9 + $0x160] sm:$0xff]
  %v1175 = vld [vmem:[%s9 + $0x168] sm:$0xff]
  %v1176 = vld [vmem:[%s9 + $0x170] sm:$0xff]
  %v1177 = vld [vmem:[%s9 + $0x178] sm:$0xff]
  %v1178 = vld [vmem:[%s10] sm:$0x3]
  %v1180 = vlaneseq
  %v1181 = vshrl.u32 %v1180, 7
  %v1182 = vsub.s32 0, %v1181
  %v1183 = vrot.slane %v1178, %v1182
  %v1184 = vlaneseq
  %v1185 = vshrl.u32 %v1184, 7
  %v1186 = vsub.s32 1, %v1185
  %v1187 = vrot.slane %v1178, %v1186
  %v1238 = vunpack.c.l.b16 %v1130
  %v1239 = vunpack.c.h.b16 %v1130
  %v1240 = vunpack.c.l.b16 %v1131
  %v1241 = vunpack.c.h.b16 %v1131
  %v1242 = vunpack.c.l.b16 %v1132
  %v1243 = vunpack.c.h.b16 %v1132
  %v1244 = vunpack.c.l.b16 %v1133
  %v1245 = vunpack.c.h.b16 %v1133
  %v1246 = vunpack.c.l.b16 %v1134
  %v1247 = vunpack.c.h.b16 %v1134
  %v1248 = vunpack.c.l.b16 %v1135
  %v1249 = vunpack.c.h.b16 %v1135
  %v1250 = vunpack.c.l.b16 %v1136
  %v1251 = vunpack.c.h.b16 %v1136
  %v1252 = vunpack.c.l.b16 %v1137
  %v1253 = vunpack.c.h.b16 %v1137
  %v1254 = vunpack.c.l.b16 %v1138
  %v1255 = vunpack.c.h.b16 %v1138
  %v1256 = vunpack.c.l.b16 %v1139
  %v1257 = vunpack.c.h.b16 %v1139
  %v1258 = vunpack.c.l.b16 %v1140
  %v1259 = vunpack.c.h.b16 %v1140
  %v1260 = vunpack.c.l.b16 %v1141
  %v1261 = vunpack.c.h.b16 %v1141
  %v1262 = vunpack.c.l.b16 %v1142
  %v1263 = vunpack.c.h.b16 %v1142
  %v1264 = vunpack.c.l.b16 %v1143
  %v1265 = vunpack.c.h.b16 %v1143
  %v1266 = vunpack.c.l.b16 %v1144
  %v1267 = vunpack.c.h.b16 %v1144
  %v1268 = vunpack.c.l.b16 %v1145
  %v1269 = vunpack.c.h.b16 %v1145
  %v1270 = vunpack.c.l.b16 %v1146
  %v1271 = vunpack.c.h.b16 %v1146
  %v1272 = vunpack.c.l.b16 %v1147
  %v1273 = vunpack.c.h.b16 %v1147
  %v1274 = vunpack.c.l.b16 %v1148
  %v1275 = vunpack.c.h.b16 %v1148
  %v1276 = vunpack.c.l.b16 %v1149
  %v1277 = vunpack.c.h.b16 %v1149
  %v1278 = vunpack.c.l.b16 %v1150
  %v1279 = vunpack.c.h.b16 %v1150
  %v1280 = vunpack.c.l.b16 %v1151
  %v1281 = vunpack.c.h.b16 %v1151
  %v1282 = vunpack.c.l.b16 %v1152
  %v1283 = vunpack.c.h.b16 %v1152
  %v1284 = vunpack.c.l.b16 %v1153
  %v1285 = vunpack.c.h.b16 %v1153
  %v1286 = vunpack.c.l.b16 %v1154
  %v1287 = vunpack.c.h.b16 %v1154
  %v1288 = vunpack.c.l.b16 %v1155
  %v1289 = vunpack.c.h.b16 %v1155
  %v1290 = vunpack.c.l.b16 %v1156
  %v1291 = vunpack.c.h.b16 %v1156
  %v1292 = vunpack.c.l.b16 %v1157
  %v1293 = vunpack.c.h.b16 %v1157
  %v1294 = vunpack.c.l.b16 %v1158
  %v1295 = vunpack.c.h.b16 %v1158
  %v1296 = vunpack.c.l.b16 %v1159
  %v1297 = vunpack.c.h.b16 %v1159
  %v1298 = vunpack.c.l.b16 %v1160
  %v1299 = vunpack.c.h.b16 %v1160
  %v1300 = vunpack.c.l.b16 %v1161
  %v1301 = vunpack.c.h.b16 %v1161
  %v1302 = vunpack.c.l.b16 %v1162
  %v1303 = vunpack.c.h.b16 %v1162
  %v1304 = vunpack.c.l.b16 %v1163
  %v1305 = vunpack.c.h.b16 %v1163
  %v1306 = vunpack.c.l.b16 %v1164
  %v1307 = vunpack.c.h.b16 %v1164
  %v1308 = vunpack.c.l.b16 %v1165
  %v1309 = vunpack.c.h.b16 %v1165
  %v1310 = vunpack.c.l.b16 %v1166
  %v1311 = vunpack.c.h.b16 %v1166
  %v1312 = vunpack.c.l.b16 %v1167
  %v1313 = vunpack.c.h.b16 %v1167
  %v1314 = vunpack.c.l.b16 %v1168
  %v1315 = vunpack.c.h.b16 %v1168
  %v1316 = vunpack.c.l.b16 %v1169
  %v1317 = vunpack.c.h.b16 %v1169
  %v1318 = vunpack.c.l.b16 %v1170
  %v1319 = vunpack.c.h.b16 %v1170
  %v1320 = vunpack.c.l.b16 %v1171
  %v1321 = vunpack.c.h.b16 %v1171
  %v1322 = vunpack.c.l.b16 %v1172
  %v1323 = vunpack.c.h.b16 %v1172
  %v1324 = vunpack.c.l.b16 %v1173
  %v1325 = vunpack.c.h.b16 %v1173
  %v1326 = vunpack.c.l.b16 %v1174
  %v1327 = vunpack.c.h.b16 %v1174
  %v1328 = vunpack.c.l.b16 %v1175
  %v1329 = vunpack.c.h.b16 %v1175
  %v1330 = vunpack.c.l.b16 %v1176
  %v1331 = vunpack.c.h.b16 %v1176
  %v1332 = vunpack.c.l.b16 %v1177
  %v1333 = vunpack.c.h.b16 %v1177
  %v1334 = vpack.c.b16 %v1240, %v1238
  %v1335 = vpack.c.b16 %v1241, %v1239
  %v1336 = vpack.c.b16 %v1244, %v1242
  %v1337 = vpack.c.b16 %v1245, %v1243
  %v1338 = vpack.c.b16 %v1248, %v1246
  %v1339 = vpack.c.b16 %v1249, %v1247
  %v1340 = vpack.c.b16 %v1252, %v1250
  %v1341 = vpack.c.b16 %v1253, %v1251
  %v1342 = vpack.c.b16 %v1256, %v1254
  %v1343 = vpack.c.b16 %v1257, %v1255
  %v1344 = vpack.c.b16 %v1260, %v1258
  %v1345 = vpack.c.b16 %v1261, %v1259
  %v1346 = vpack.c.b16 %v1264, %v1262
  %v1347 = vpack.c.b16 %v1265, %v1263
  %v1348 = vpack.c.b16 %v1268, %v1266
  %v1349 = vpack.c.b16 %v1269, %v1267
  %v1350 = vpack.c.b16 %v1272, %v1270
  %v1351 = vpack.c.b16 %v1273, %v1271
  %v1352 = vpack.c.b16 %v1276, %v1274
  %v1353 = vpack.c.b16 %v1277, %v1275
  %v1354 = vpack.c.b16 %v1280, %v1278
  %v1355 = vpack.c.b16 %v1281, %v1279
  %v1356 = vpack.c.b16 %v1284, %v1282
  %v1357 = vpack.c.b16 %v1285, %v1283
  %v1358 = vpack.c.b16 %v1288, %v1286
  %v1359 = vpack.c.b16 %v1289, %v1287
  %v1360 = vpack.c.b16 %v1292, %v1290
  %v1361 = vpack.c.b16 %v1293, %v1291
  %v1362 = vpack.c.b16 %v1296, %v1294
  %v1363 = vpack.c.b16 %v1297, %v1295
  %v1364 = vpack.c.b16 %v1300, %v1298
  %v1365 = vpack.c.b16 %v1301, %v1299
  %v1366 = vpack.c.b16 %v1304, %v1302
  %v1367 = vpack.c.b16 %v1305, %v1303
  %v1368 = vpack.c.b16 %v1308, %v1306
  %v1369 = vpack.c.b16 %v1309, %v1307
  %v1370 = vpack.c.b16 %v1312, %v1310
  %v1371 = vpack.c.b16 %v1313, %v1311
  %v1372 = vpack.c.b16 %v1316, %v1314
  %v1373 = vpack.c.b16 %v1317, %v1315
  %v1374 = vpack.c.b16 %v1320, %v1318
  %v1375 = vpack.c.b16 %v1321, %v1319
  %v1376 = vpack.c.b16 %v1324, %v1322
  %v1377 = vpack.c.b16 %v1325, %v1323
  %v1378 = vpack.c.b16 %v1328, %v1326
  %v1379 = vpack.c.b16 %v1329, %v1327
  %v1380 = vpack.c.b16 %v1332, %v1330
  %v1381 = vpack.c.b16 %v1333, %v1331
  %1430 = vmatprep.subr.bf16.mxu0 %v1335
  %1431 = vmatpush1.bf16.msra.mxu0 %v1334
  %1432 = vmatprep.subr.bf16.mxu0 %v1337
  %1433 = vmatpush1.bf16.msra.mxu0 %v1336
  %1434 = vmatprep.subr.bf16.mxu0 %v1339
  %1435 = vmatpush1.bf16.msra.mxu0 %v1338
  %1436 = vmatprep.subr.bf16.mxu0 %v1341
  %1437 = vmatpush1.bf16.msra.mxu0 %v1340
  %1438 = vmatprep.subr.bf16.mxu0 %v1343
  %1439 = vmatpush1.bf16.msra.mxu0 %v1342
  %1440 = vmatprep.subr.bf16.mxu0 %v1345
  %1441 = vmatpush1.bf16.msra.mxu0 %v1344
  %1442 = vmatprep.subr.bf16.mxu0 %v1347
  %1443 = vmatpush1.bf16.msra.mxu0 %v1346
  %1444 = vmatprep.subr.bf16.mxu0 %v1349
  %1445 = vmatpush1.bf16.msra.mxu0 %v1348
  %1446 = vmatprep.subr.bf16.mxu0 %v1351
  %1447 = vmatpush1.bf16.msra.mxu0 %v1350
  %1448 = vmatprep.subr.bf16.mxu0 %v1353
  %1449 = vmatpush1.bf16.msra.mxu0 %v1352
  %1450 = vmatprep.subr.bf16.mxu0 %v1355
  %1451 = vmatpush1.bf16.msra.mxu0 %v1354
  %1452 = vmatprep.subr.bf16.mxu0 %v1357
  %1453 = vmatpush1.bf16.msra.mxu0 %v1356
  %1454 = vmatprep.subr.bf16.mxu0 %v1359
  %1455 = vmatpush1.bf16.msra.mxu0 %v1358
  %1456 = vmatprep.subr.bf16.mxu0 %v1361
  %1457 = vmatpush1.bf16.msra.mxu0 %v1360
  %1458 = vmatprep.subr.bf16.mxu0 %v1363
  %1459 = vmatpush1.bf16.msra.mxu0 %v1362
  %1460 = vmatprep.subr.bf16.mxu0 %v1365
  %1461 = vmatpush1.bf16.msra.mxu0 %v1364
  %1462 = vmatprep.mubr.bf16.mxu0 %v1128
  %1463 = vmatmul.mubr.bf16.gmra.mrb[0].mxu0 %v1127
  %v1464 = vpop.f32.mrb[0].mxu0
  %v1465 = vadd.f32 %v1183, %v1464
  %v1466 = vpop.f32.mrb[0].mxu0
  %v1467 = vadd.f32 %v1187, %v1466
  %v1468 = vpop.f32.mrb[0].mxu0
  %v1469 = vadd.f32 %v1183, %v1468
  %v1470 = vpop.f32.mrb[0].mxu0
  %v1471 = vadd.f32 %v1187, %v1470
  %1472 = vdwg.mxu0
  %1473 = vmatprep.subr.bf16.mxu0 %v1367
  %1474 = vmatpush1.bf16.msra.mxu0 %v1366
  %1475 = vmatprep.subr.bf16.mxu0 %v1369
  %1476 = vmatpush1.bf16.msra.mxu0 %v1368
  %1477 = vmatprep.subr.bf16.mxu0 %v1371
  %1478 = vmatpush1.bf16.msra.mxu0 %v1370
  %1479 = vmatprep.subr.bf16.mxu0 %v1373
  %1480 = vmatpush1.bf16.msra.mxu0 %v1372
  %1481 = vmatprep.subr.bf16.mxu0 %v1375
  %1482 = vmatpush1.bf16.msra.mxu0 %v1374
  %1483 = vmatprep.subr.bf16.mxu0 %v1377
  %1484 = vmatpush1.bf16.msra.mxu0 %v1376
  %1485 = vmatprep.subr.bf16.mxu0 %v1379
  %1486 = vmatpush1.bf16.msra.mxu0 %v1378
  %1487 = vmatprep.subr.bf16.mxu0 %v1381
  %1488 = vmatpush1.bf16.msra.mxu0 %v1380
  %1489 = vmatprep.subr.bf16.mxu0 0
  %1490 = vmatpush1.bf16.msra.mxu0 0
  %1491 = vmatprep.subr.bf16.mxu0 0
  %1492 = vmatpush1.bf16.msra.mxu0 0
  %1493 = vmatprep.subr.bf16.mxu0 0
  %1494 = vmatpush1.bf16.msra.mxu0 0
  %1495 = vmatprep.subr.bf16.mxu0 0
  %1496 = vmatpush1.bf16.msra.mxu0 0
  %1497 = vmatprep.subr.bf16.mxu0 0
  %1498 = vmatpush1.bf16.msra.mxu0 0
  %1499 = vmatprep.subr.bf16.mxu0 0
  %1500 = vmatpush1.bf16.msra.mxu0 0
  %1501 = vmatprep.subr.bf16.mxu0 0
  %1502 = vmatpush1.bf16.msra.mxu0 0
  %1503 = vmatprep.subr.bf16.mxu0 0
  %1504 = vmatpush1.bf16.msra.mxu0 0
  %1505 = vmatprep.mubr.bf16.mxu0 0
  %1506 = vmatmul.mubr.bf16.gmra.mrb[0].mxu0 %v1129
  %v1507 = vpop.f32.mrb[0].mxu0
  %v1508 = vadd.f32 %v1465, %v1507
  %v1509 = vpop.f32.mrb[0].mxu0
  %v1510 = vadd.f32 %v1467, %v1509
  %v1511 = vpop.f32.mrb[0].mxu0
  %v1512 = vadd.f32 %v1469, %v1511
  %v1513 = vpop.f32.mrb[0].mxu0
  %v1514 = vadd.f32 %v1471, %v1513
  %1515 = vdwg.mxu0
  %v1516 = vxor.u32 %v1510, 2147483648
  %v1517 = vxor.u32 %v1514, 2147483648
  %v1518 = vmul.f32 %v1516, 1.442695
  %v1519 = vpow.pop %v1518
  %v1520 = vmul.f32 %v1517, 1.442695
  %v1521 = vpow.pop %v1520
  %v1522 = vadd.f32 %v1519, 1.0
  %v1523 = vadd.f32 %v1521, 1.0
  %v1524 = vrcp.pop %v1522
  %v1525 = vmul.f32 1.0, %v1524
  %v1526 = vrcp.pop %v1523
  %v1527 = vmul.f32 1.0, %v1526
  %v1528 = vmul.f32 %v1508, %v1525
  %v1529 = vmul.f32 %v1512, %v1527
  %v1530 = vpack.c.bf16 %v1529, %v1528
  %v1531 = vld [vmem:[%s11] sm:$0xf]
  %v1532 = vld [vmem:[%s11 + $0x4] sm:$0xf]
  %v1533 = vld [vmem:[%s11 + $0x8] sm:$0xf]
  %v1534 = vld [vmem:[%s11 + $0xc] sm:$0xf]
  %v1535 = vld [vmem:[%s11 + $0x10] sm:$0xf]
  %v1536 = vld [vmem:[%s11 + $0x14] sm:$0xf]
  %v1537 = vld [vmem:[%s11 + $0x18] sm:$0xf]
  %v1538 = vld [vmem:[%s11 + $0x1c] sm:$0xf]
  %v1539 = vld [vmem:[%s11 + $0x20] sm:$0xf]
  %v1540 = vld [vmem:[%s11 + $0x24] sm:$0xf]
  %v1541 = vld [vmem:[%s11 + $0x28] sm:$0xf]
  %v1542 = vld [vmem:[%s11 + $0x2c] sm:$0xf]
  %v1543 = vld [vmem:[%s11 + $0x30] sm:$0xf]
  %v1544 = vld [vmem:[%s11 + $0x34] sm:$0xf]
  %v1545 = vld [vmem:[%s11 + $0x38] sm:$0xf]
  %v1546 = vld [vmem:[%s11 + $0x3c] sm:$0xf]
  %v1547 = vld [vmem:[%s12] sm:$0x1]
  %v1549 = vlaneseq
  %v1550 = vshrl.u32 %v1549, 7
  %v1551 = vsub.s32 0, %v1550
  %v1552 = vrot.slane %v1547, %v1551
  %v1570 = vunpack.c.l.b16 %v1531
  %v1571 = vunpack.c.l.b16 %v1532
  %v1572 = vunpack.c.l.b16 %v1533
  %v1573 = vunpack.c.l.b16 %v1534
  %v1574 = vunpack.c.l.b16 %v1535
  %v1575 = vunpack.c.l.b16 %v1536
  %v1576 = vunpack.c.l.b16 %v1537
  %v1577 = vunpack.c.l.b16 %v1538
  %v1578 = vunpack.c.l.b16 %v1539
  %v1579 = vunpack.c.l.b16 %v1540
  %v1580 = vunpack.c.l.b16 %v1541
  %v1581 = vunpack.c.l.b16 %v1542
  %v1582 = vunpack.c.l.b16 %v1543
  %v1583 = vunpack.c.l.b16 %v1544
  %v1584 = vunpack.c.l.b16 %v1545
  %v1585 = vunpack.c.l.b16 %v1546
  %v1586 = vpack.c.b16 %v1571, %v1570
  %v1587 = vpack.c.b16 %v1573, %v1572
  %v1588 = vpack.c.b16 %v1575, %v1574
  %v1589 = vpack.c.b16 %v1577, %v1576
  %v1590 = vpack.c.b16 %v1579, %v1578
  %v1591 = vpack.c.b16 %v1581, %v1580
  %v1592 = vpack.c.b16 %v1583, %v1582
  %v1593 = vpack.c.b16 %v1585, %v1584
  %1602 = vmatprep.subr.bf16.mxu0 0
  %1603 = vmatpush1.bf16.msra.mxu0 %v1586
  %1604 = vmatprep.subr.bf16.mxu0 0
  %1605 = vmatpush1.bf16.msra.mxu0 %v1587
  %1606 = vmatprep.subr.bf16.mxu0 0
  %1607 = vmatpush1.bf16.msra.mxu0 %v1588
  %1608 = vmatprep.subr.bf16.mxu0 0
  %1609 = vmatpush1.bf16.msra.mxu0 %v1589
  %1610 = vmatprep.subr.bf16.mxu0 0
  %1611 = vmatpush1.bf16.msra.mxu0 %v1590
  %1612 = vmatprep.subr.bf16.mxu0 0
  %1613 = vmatpush1.bf16.msra.mxu0 %v1591
  %1614 = vmatprep.subr.bf16.mxu0 0
  %1615 = vmatpush1.bf16.msra.mxu0 %v1592
  %1616 = vmatprep.subr.bf16.mxu0 0
  %1617 = vmatpush1.bf16.msra.mxu0 %v1593
  %1618 = vmatprep.subr.bf16.mxu0 0
  %1619 = vmatpush1.bf16.msra.mxu0 0
  %1620 = vmatprep.subr.bf16.mxu0 0
  %1621 = vmatpush1.bf16.msra.mxu0 0
  %1622 = vmatprep.subr.bf16.mxu0 0
  %1623 = vmatpush1.bf16.msra.mxu0 0
  %1624 = vmatprep.subr.bf16.mxu0 0
  %1625 = vmatpush1.bf16.msra.mxu0 0
  %1626 = vmatprep.subr.bf16.mxu0 0
  %1627 = vmatpush1.bf16.msra.mxu0 0
  %1628 = vmatprep.subr.bf16.mxu0 0
  %1629 = vmatpush1.bf16.msra.mxu0 0
  %1630 = vmatprep.subr.bf16.mxu0 0
  %1631 = vmatpush1.bf16.msra.mxu0 0
  %1632 = vmatprep.subr.bf16.mxu0 0
  %1633 = vmatpush1.bf16.msra.mxu0 0
  %1634 = vmatprep.mubr.bf16.mxu0 0
  %1635 = vmatmul.mubr.bf16.gmra.mrb[0].mxu0 %v1530
  %v1636 = vpop.f32.mrb[0].mxu0
  %v1637 = vadd.f32 %v1552, %v1636
  %v1638 = vpop.f32.mrb[0].mxu0
  %v1639 = vpop.f32.mrb[0].mxu0
  %v1640 = vadd.f32 %v1552, %v1639
  %v1641 = vpop.f32.mrb[0].mxu0
  %1642 = vdwg.mxu0
  %v1643 = vmax.f32 %v1637, 0.0
  %v1644 = vmax.f32 %v1640, 0.0
  %v1647 = vcombine.high %v1643, %v1643
  %v1649 = vunpack.c.l.s4 1983009808
  %v1650 = vunpack.c.0.s8 %v1649
  %v1651 = vlaneseq
  %v1652 = vshrl.u32 %v1651, 7
  %v1653 = vsub.s32 %v1650, %v1652
  %v1654 = vrot.slane %v1643, %v1653
  %v1656 = vunpack.c.l.s4 1983009808
  %v1657 = vunpack.c.0.s8 %v1656
  %v1658 = vlaneseq
  %v1659 = vshrl.u32 %v1658, 7
  %v1660 = vsub.s32 %v1657, %v1659
  %v1661 = vrot.slane %v1647, %v1660
  %v1662 = vcombine.high %v1654, %v1654
  %v1663 = vcombine.high %v1661, %v1661
  %v1665 = vunpack.c.l.s4 1983009808
  %v1666 = vunpack.c.0.s8 %v1665
  %v1667 = vlaneseq
  %v1668 = vshrl.u32 %v1667, 7
  %v1669 = vsub.s32 %v1666, %v1668
  %v1670 = vrot.slane %v1644, %v1669
  %v1671 = vcombine.high %v1670, %v1670
  %v1672 = vcombine.low %v1654, %v1662
  %v1674 = vunpack.c.l.s4 1983009808
  %v1675 = vunpack.c.0.s8 %v1674
  %v1676 = vlaneseq
  %v1677 = vshrl.u32 %v1676, 7
  %v1678 = vsub.s32 %v1675, %v1677
  %v1679 = vrot.slane %v1672, %v1678
  %v1680 = vcombine.low %v1663, %v1670
  %v1682 = vunpack.c.l.s4 1983009808
  %v1683 = vunpack.c.0.s8 %v1682
  %v1684 = vlaneseq
  %v1685 = vshrl.u32 %v1684, 7
  %v1686 = vsub.s32 %v1683, %v1685
  %v1687 = vrot.slane %v1680, %v1686
  %v1691 = vunpack.c.l.s4 1983009808
  %v1692 = vunpack.c.0.s8 %v1691
  %v1693 = vlaneseq
  %v1694 = vshrl.u32 %v1693, 7
  %v1695 = vsub.s32 %v1692, %v1694
  %v1696 = vrot.slane %v1661, %v1695
  %v1697 = vcombine.low %v1679, %v1696
  %v1699 = vunpack.c.l.s4 1983009808
  %v1700 = vunpack.c.0.s8 %v1699
  %v1701 = vlaneseq
  %v1702 = vshrl.u32 %v1701, 7
  %v1703 = vsub.s32 %v1700, %v1702
  %v1704 = vrot.slane %v1671, %v1703
  %v1705 = vcombine.low %v1687, %v1704
  %v1706 = vrot.slane %v1697, 1
  %v1707 = vrot.slane %v1705, 1
  %1708 = vrot.lane.b32.xlu0 %v1706, 64
  %v1709 = vpop.permute.xlu0 %1708
  %1710 = vrot.lane.b32.xlu0 %v1707, 64
  %v1711 = vpop.permute.xlu0 %1710
  %v1714 = vcombine.low %v1662, %v1661
  %v1716 = vunpack.c.l.s4 1983009808
  %v1717 = vunpack.c.0.s8 %v1716
  %v1718 = vlaneseq
  %v1719 = vshrl.u32 %v1718, 7
  %v1720 = vsub.s32 %v1717, %v1719
  %v1721 = vrot.slane %v1714, %v1720
  %v1722 = vcombine.low %v1670, %v1671
  %v1724 = vunpack.c.l.s4 1983009808
  %v1725 = vunpack.c.0.s8 %v1724
  %v1726 = vlaneseq
  %v1727 = vshrl.u32 %v1726, 7
  %v1728 = vsub.s32 %v1725, %v1727
  %v1729 = vrot.slane %v1722, %v1728
  %v1730 = vsel %vm117, %v1679, %v1709
  %v1731 = vsel %vm117, %v1687, %v1711
  %v1734 = vcombine.low %v1730, %v1721
  %v1735 = vcombine.low %v1731, %v1729
  %v1736 = vcombine.low %v1734, %v1735
  %v1737 = vcombine.high %v1734, %v1735
  %v1740 = vpack.c.bf16 %v1736, %v1736
  %v1741 = vpack.c.bf16 %v1737, %v1737
  %v1742 = vld [vmem:[%s13] sm:$0xff]
  %v1743 = vld [vmem:[%s13 + $0x8] sm:$0xff]
  %v1744 = vld [vmem:[%s13 + $0x10] sm:$0xff]
  %v1745 = vld [vmem:[%s13 + $0x18] sm:$0xff]
  %v1746 = vld [vmem:[%s13 + $0x20] sm:$0xff]
  %v1747 = vld [vmem:[%s13 + $0x28] sm:$0xff]
  %v1748 = vld [vmem:[%s13 + $0x30] sm:$0xff]
  %v1749 = vld [vmem:[%s13 + $0x38] sm:$0xff]
  %v1750 = vld [vmem:[%s13 + $0x40] sm:$0xff]
  %v1751 = vld [vmem:[%s13 + $0x48] sm:$0xff]
  %v1752 = vld [vmem:[%s13 + $0x50] sm:$0xff]
  %v1753 = vld [vmem:[%s13 + $0x58] sm:$0xff]
  %v1754 = vld [vmem:[%s13 + $0x60] sm:$0xff]
  %v1755 = vld [vmem:[%s13 + $0x68] sm:$0xff]
  %v1756 = vld [vmem:[%s13 + $0x70] sm:$0xff]
  %v1757 = vld [vmem:[%s13 + $0x78] sm:$0xff]
  %v1758 = vld [vmem:[%s13 + $0x80] sm:$0xff]
  %v1759 = vld [vmem:[%s13 + $0x88] sm:$0xff]
  %v1760 = vld [vmem:[%s13 + $0x90] sm:$0xff]
  %v1761 = vld [vmem:[%s13 + $0x98] sm:$0xff]
  %v1762 = vld [vmem:[%s13 + $0xa0] sm:$0xff]
  %v1763 = vld [vmem:[%s13 + $0xa8] sm:$0xff]
  %v1764 = vld [vmem:[%s13 + $0xb0] sm:$0xff]
  %v1765 = vld [vmem:[%s13 + $0xb8] sm:$0xff]
  %v1766 = vld [vmem:[%s14] sm:$0x3]
  %v1768 = vlaneseq
  %v1769 = vshrl.u32 %v1768, 7
  %v1770 = vsub.s32 0, %v1769
  %v1771 = vrot.slane %v1766, %v1770
  %v1772 = vlaneseq
  %v1773 = vshrl.u32 %v1772, 7
  %v1774 = vsub.s32 1, %v1773
  %v1775 = vrot.slane %v1766, %v1774
  %v1802 = vunpack.c.l.b16 %v1742
  %v1803 = vunpack.c.h.b16 %v1742
  %v1804 = vunpack.c.l.b16 %v1743
  %v1805 = vunpack.c.h.b16 %v1743
  %v1806 = vunpack.c.l.b16 %v1744
  %v1807 = vunpack.c.h.b16 %v1744
  %v1808 = vunpack.c.l.b16 %v1745
  %v1809 = vunpack.c.h.b16 %v1745
  %v1810 = vunpack.c.l.b16 %v1746
  %v1811 = vunpack.c.h.b16 %v1746
  %v1812 = vunpack.c.l.b16 %v1747
  %v1813 = vunpack.c.h.b16 %v1747
  %v1814 = vunpack.c.l.b16 %v1748
  %v1815 = vunpack.c.h.b16 %v1748
  %v1816 = vunpack.c.l.b16 %v1749
  %v1817 = vunpack.c.h.b16 %v1749
  %v1818 = vunpack.c.l.b16 %v1750
  %v1819 = vunpack.c.h.b16 %v1750
  %v1820 = vunpack.c.l.b16 %v1751
  %v1821 = vunpack.c.h.b16 %v1751
  %v1822 = vunpack.c.l.b16 %v1752
  %v1823 = vunpack.c.h.b16 %v1752
  %v1824 = vunpack.c.l.b16 %v1753
  %v1825 = vunpack.c.h.b16 %v1753
  %v1826 = vunpack.c.l.b16 %v1754
  %v1827 = vunpack.c.h.b16 %v1754
  %v1828 = vunpack.c.l.b16 %v1755
  %v1829 = vunpack.c.h.b16 %v1755
  %v1830 = vunpack.c.l.b16 %v1756
  %v1831 = vunpack.c.h.b16 %v1756
  %v1832 = vunpack.c.l.b16 %v1757
  %v1833 = vunpack.c.h.b16 %v1757
  %v1834 = vunpack.c.l.b16 %v1758
  %v1835 = vunpack.c.h.b16 %v1758
  %v1836 = vunpack.c.l.b16 %v1759
  %v1837 = vunpack.c.h.b16 %v1759
  %v1838 = vunpack.c.l.b16 %v1760
  %v1839 = vunpack.c.h.b16 %v1760
  %v1840 = vunpack.c.l.b16 %v1761
  %v1841 = vunpack.c.h.b16 %v1761
  %v1842 = vunpack.c.l.b16 %v1762
  %v1843 = vunpack.c.h.b16 %v1762
  %v1844 = vunpack.c.l.b16 %v1763
  %v1845 = vunpack.c.h.b16 %v1763
  %v1846 = vunpack.c.l.b16 %v1764
  %v1847 = vunpack.c.h.b16 %v1764
  %v1848 = vunpack.c.l.b16 %v1765
  %v1849 = vunpack.c.h.b16 %v1765
  %v1850 = vpack.c.b16 %v1804, %v1802
  %v1851 = vpack.c.b16 %v1805, %v1803
  %v1852 = vpack.c.b16 %v1808, %v1806
  %v1853 = vpack.c.b16 %v1809, %v1807
  %v1854 = vpack.c.b16 %v1812, %v1810
  %v1855 = vpack.c.b16 %v1813, %v1811
  %v1856 = vpack.c.b16 %v1816, %v1814
  %v1857 = vpack.c.b16 %v1817, %v1815
  %v1858 = vpack.c.b16 %v1820, %v1818
  %v1859 = vpack.c.b16 %v1821, %v1819
  %v1860 = vpack.c.b16 %v1824, %v1822
  %v1861 = vpack.c.b16 %v1825, %v1823
  %v1862 = vpack.c.b16 %v1828, %v1826
  %v1863 = vpack.c.b16 %v1829, %v1827
  %v1864 = vpack.c.b16 %v1832, %v1830
  %v1865 = vpack.c.b16 %v1833, %v1831
  %v1866 = vpack.c.b16 %v1836, %v1834
  %v1867 = vpack.c.b16 %v1837, %v1835
  %v1868 = vpack.c.b16 %v1840, %v1838
  %v1869 = vpack.c.b16 %v1841, %v1839
  %v1870 = vpack.c.b16 %v1844, %v1842
  %v1871 = vpack.c.b16 %v1845, %v1843
  %v1872 = vpack.c.b16 %v1848, %v1846
  %v1873 = vpack.c.b16 %v1849, %v1847
  %v1899 = vsel %vm117, %v1741, 0
  %1901 = vmatprep.subr.bf16.mxu0 %v1851
  %1902 = vmatpush1.bf16.msra.mxu0 %v1850
  %1903 = vmatprep.subr.bf16.mxu0 %v1853
  %1904 = vmatpush1.bf16.msra.mxu0 %v1852
  %1905 = vmatprep.subr.bf16.mxu0 %v1855
  %1906 = vmatpush1.bf16.msra.mxu0 %v1854
  %1907 = vmatprep.subr.bf16.mxu0 %v1857
  %1908 = vmatpush1.bf16.msra.mxu0 %v1856
  %1909 = vmatprep.subr.bf16.mxu0 %v1859
  %1910 = vmatpush1.bf16.msra.mxu0 %v1858
  %1911 = vmatprep.subr.bf16.mxu0 %v1861
  %1912 = vmatpush1.bf16.msra.mxu0 %v1860
  %1913 = vmatprep.subr.bf16.mxu0 %v1863
  %1914 = vmatpush1.bf16.msra.mxu0 %v1862
  %1915 = vmatprep.subr.bf16.mxu0 %v1865
  %1916 = vmatpush1.bf16.msra.mxu0 %v1864
  %1917 = vmatprep.subr.bf16.mxu0 %v1867
  %1918 = vmatpush1.bf16.msra.mxu0 %v1866
  %1919 = vmatprep.subr.bf16.mxu0 %v1869
  %1920 = vmatpush1.bf16.msra.mxu0 %v1868
  %1921 = vmatprep.subr.bf16.mxu0 %v1871
  %1922 = vmatpush1.bf16.msra.mxu0 %v1870
  %1923 = vmatprep.subr.bf16.mxu0 %v1873
  %1924 = vmatpush1.bf16.msra.mxu0 %v1872
  %1925 = vmatprep.subr.bf16.mxu0 0
  %1926 = vmatpush1.bf16.msra.mxu0 0
  %1927 = vmatprep.subr.bf16.mxu0 0
  %1928 = vmatpush1.bf16.msra.mxu0 0
  %1929 = vmatprep.subr.bf16.mxu0 0
  %1930 = vmatpush1.bf16.msra.mxu0 0
  %1931 = vmatprep.subr.bf16.mxu0 0
  %1932 = vmatpush1.bf16.msra.mxu0 0
  %1933 = vmatprep.mubr.bf16.mxu0 %v1899
  %1934 = vmatmul.mubr.bf16.gmra.mrb[0].mxu0 %v1740
  %v1935 = vpop.f32.mrb[0].mxu0
  %v1936 = vadd.f32 %v1771, %v1935
  %v1937 = vpop.f32.mrb[0].mxu0
  %v1938 = vadd.f32 %v1775, %v1937
  %v1939 = vpop.f32.mrb[0].mxu0
  %v1940 = vpop.f32.mrb[0].mxu0
  %1941 = vdwg.mxu0
  %v1942 = vxor.u32 %v1938, 2147483648
  %v1943 = vmul.f32 %v1942, 1.442695
  %v1944 = vpow.pop %v1943
  %v1945 = vadd.f32 %v1944, 1.0
  %v1946 = vrcp.pop %v1945
  %v1947 = vmul.f32 1.0, %v1946
  %v1948 = vmul.f32 %v1936, %v1947
  %v1949 = vld [vmem:[%s15] sm:$0x1]
  %v1950 = vld [vmem:[%s16] sm:$0x1]
  %1951 = vadd.xlane.f32.xlu0 %v1948
  %v1952 = vpop.xlane.xlu0 %1951
  %v1953 = vmul.f32 %v1952, %v960
  %v1954 = vsub.f32 %v1948, %v1953
  %v1955 = vmul.f32 %v1954, %v1954
  %1956 = vadd.xlane.f32.xlu0 %v1955
  %v1957 = vpop.xlane.xlu0 %1956
  %v1958 = vmul.f32 %v1957, %v960
  %v1959 = vadd.f32 %v1958, 1e-05
  %v1960 = vrsqrt.pop %v1959
  %v1961 = vmul.f32 %v1954, %v1960
  %v1963 = vlaneseq
  %v1964 = vshrl.u32 %v1963, 7
  %v1965 = vsub.s32 0, %v1964
  %v1966 = vrot.slane %v1949, %v1965
  %v1968 = vmul.f32 %v1961, %v1966
  %v1970 = vlaneseq
  %v1971 = vshrl.u32 %v1970, 7
  %v1972 = vsub.s32 0, %v1971
  %v1973 = vrot.slane %v1950, %v1972
  %v1975 = vadd.f32 %v1968, %v1973
  %v1977 = vcombine.high %v1975, %v1975
  %v1979 = vlaneseq
  %v1980 = vshrl.u32 %v1979, 7
  %v1981 = vsub.s32 1, %v1980
  %v1982 = vrot.slane %v1975, %v1981
  %v1983 = vlaneseq
  %v1984 = vshrl.u32 %v1983, 7
  %v1985 = vsub.s32 1, %v1984
  %v1986 = vrot.slane %v1977, %v1985
  %v1989 = vlaneseq
  %v1990 = vshrl.u32 %v1989, 7
  %v1991 = vsub.s32 2, %v1990
  %v1992 = vrot.slane %v1975, %v1991
  %v1993 = vlaneseq
  %v1994 = vshrl.u32 %v1993, 7
  %v1995 = vsub.s32 2, %v1994
  %v1996 = vrot.slane %v1977, %v1995
  %v1999 = vlaneseq
  %v2000 = vshrl.u32 %v1999, 7
  %v2001 = vsub.s32 3, %v2000
  %v2002 = vrot.slane %v1975, %v2001
  %v2003 = vlaneseq
  %v2004 = vshrl.u32 %v2003, 7
  %v2005 = vsub.s32 3, %v2004
  %v2006 = vrot.slane %v1977, %v2005
  %v2009 = vpack.c.bf16 %v1975, %v1975
  %v2010 = vpack.c.bf16 %v1982, %v1982
  %v2011 = vpack.c.bf16 %v1992, %v1992
  %v2012 = vpack.c.bf16 %v2002, %v2002
  %v2013 = vpack.c.bf16 %v1977, %v1977
  %v2014 = vpack.c.bf16 %v1986, %v1986
  %v2015 = vpack.c.bf16 %v1996, %v1996
  %v2016 = vpack.c.bf16 %v2006, %v2006
  %v2017 = vld [vmem:[%s17] sm:$0xff]
  %v2018 = vld [vmem:[%s17 + $0x8] sm:$0xff]
  %v2019 = vld [vmem:[%s17 + $0x10] sm:$0xff]
  %v2020 = vld [vmem:[%s17 + $0x18] sm:$0xff]
  %v2021 = vld [vmem:[%s17 + $0x20] sm:$0xff]
  %v2022 = vld [vmem:[%s17 + $0x28] sm:$0xff]
  %v2023 = vld [vmem:[%s17 + $0x30] sm:$0xff]
  %v2024 = vld [vmem:[%s17 + $0x38] sm:$0xff]
  %v2025 = vld [vmem:[%s17 + $0x40] sm:$0xff]
  %v2026 = vld [vmem:[%s17 + $0x48] sm:$0xff]
  %v2027 = vld [vmem:[%s17 + $0x50] sm:$0xff]
  %v2028 = vld [vmem:[%s17 + $0x58] sm:$0xff]
  %v2029 = vld [vmem:[%s17 + $0x60] sm:$0xff]
  %v2030 = vld [vmem:[%s17 + $0x68] sm:$0xff]
  %v2031 = vld [vmem:[%s17 + $0x70] sm:$0xff]
  %v2032 = vld [vmem:[%s17 + $0x78] sm:$0xff]
  %v2033 = vld [vmem:[%s17 + $0x80] sm:$0xff]
  %v2034 = vld [vmem:[%s17 + $0x88] sm:$0xff]
  %v2035 = vld [vmem:[%s17 + $0x90] sm:$0xff]
  %v2036 = vld [vmem:[%s17 + $0x98] sm:$0xff]
  %v2037 = vld [vmem:[%s17 + $0xa0] sm:$0xff]
  %v2038 = vld [vmem:[%s17 + $0xa8] sm:$0xff]
  %v2039 = vld [vmem:[%s17 + $0xb0] sm:$0xff]
  %v2040 = vld [vmem:[%s17 + $0xb8] sm:$0xff]
  %v2041 = vld [vmem:[%s17 + $0xc0] sm:$0xff]
  %v2042 = vld [vmem:[%s17 + $0xc8] sm:$0xff]
  %v2043 = vld [vmem:[%s17 + $0xd0] sm:$0xff]
  %v2044 = vld [vmem:[%s17 + $0xd8] sm:$0xff]
  %v2045 = vld [vmem:[%s17 + $0xe0] sm:$0xff]
  %v2046 = vld [vmem:[%s17 + $0xe8] sm:$0xff]
  %v2047 = vld [vmem:[%s17 + $0xf0] sm:$0xff]
  %v2048 = vld [vmem:[%s17 + $0xf8] sm:$0xff]
  %v2049 = vld [vmem:[%s17 + $0x100] sm:$0xff]
  %v2050 = vld [vmem:[%s17 + $0x108] sm:$0xff]
  %v2051 = vld [vmem:[%s17 + $0x110] sm:$0xff]
  %v2052 = vld [vmem:[%s17 + $0x118] sm:$0xff]
  %v2053 = vld [vmem:[%s17 + $0x120] sm:$0xff]
  %v2054 = vld [vmem:[%s17 + $0x128] sm:$0xff]
  %v2055 = vld [vmem:[%s17 + $0x130] sm:$0xff]
  %v2056 = vld [vmem:[%s17 + $0x138] sm:$0xff]
  %v2057 = vld [vmem:[%s17 + $0x140] sm:$0xff]
  %v2058 = vld [vmem:[%s17 + $0x148] sm:$0xff]
  %v2059 = vld [vmem:[%s17 + $0x150] sm:$0xff]
  %v2060 = vld [vmem:[%s17 + $0x158] sm:$0xff]
  %v2061 = vld [vmem:[%s17 + $0x160] sm:$0xff]
  %v2062 = vld [vmem:[%s17 + $0x168] sm:$0xff]
  %v2063 = vld [vmem:[%s17 + $0x170] sm:$0xff]
  %v2064 = vld [vmem:[%s17 + $0x178] sm:$0xff]
  %v2065 = vld [vmem:[%s17 + $0x180] sm:$0xff]
  %v2066 = vld [vmem:[%s17 + $0x188] sm:$0xff]
  %v2067 = vld [vmem:[%s17 + $0x190] sm:$0xff]
  %v2068 = vld [vmem:[%s17 + $0x198] sm:$0xff]
  %v2069 = vld [vmem:[%s17 + $0x1a0] sm:$0xff]
  %v2070 = vld [vmem:[%s17 + $0x1a8] sm:$0xff]
  %v2071 = vld [vmem:[%s17 + $0x1b0] sm:$0xff]
  %v2072 = vld [vmem:[%s17 + $0x1b8] sm:$0xff]
  %v2073 = vld [vmem:[%s17 + $0x1c0] sm:$0xff]
  %v2074 = vld [vmem:[%s17 + $0x1c8] sm:$0xff]
  %v2075 = vld [vmem:[%s17 + $0x1d0] sm:$0xff]
  %v2076 = vld [vmem:[%s17 + $0x1d8] sm:$0xff]
  %v2077 = vld [vmem:[%s17 + $0x1e0] sm:$0xff]
  %v2078 = vld [vmem:[%s17 + $0x1e8] sm:$0xff]
  %v2079 = vld [vmem:[%s17 + $0x1f0] sm:$0xff]
  %v2080 = vld [vmem:[%s17 + $0x1f8] sm:$0xff]
  %v2081 = vld [vmem:[%s17 + $0x200] sm:$0xff]
  %v2082 = vld [vmem:[%s17 + $0x208] sm:$0xff]
  %v2083 = vld [vmem:[%s17 + $0x210] sm:$0xff]
  %v2084 = vld [vmem:[%s17 + $0x218] sm:$0xff]
  %v2085 = vld [vmem:[%s17 + $0x220] sm:$0xff]
  %v2086 = vld [vmem:[%s17 + $0x228] sm:$0xff]
  %v2087 = vld [vmem:[%s17 + $0x230] sm:$0xff]
  %v2088 = vld [vmem:[%s17 + $0x238] sm:$0xff]
  %v2089 = vld [vmem:[%s17 + $0x240] sm:$0xff]
  %v2090 = vld [vmem:[%s17 + $0x248] sm:$0xff]
  %v2091 = vld [vmem:[%s17 + $0x250] sm:$0xff]
  %v2092 = vld [vmem:[%s17 + $0x258] sm:$0xff]
  %v2093 = vld [vmem:[%s17 + $0x260] sm:$0xff]
  %v2094 = vld [vmem:[%s17 + $0x268] sm:$0xff]
  %v2095 = vld [vmem:[%s17 + $0x270] sm:$0xff]
  %v2096 = vld [vmem:[%s17 + $0x278] sm:$0xff]
  %v2097 = vld [vmem:[%s17 + $0x280] sm:$0xff]
  %v2098 = vld [vmem:[%s17 + $0x288] sm:$0xff]
  %v2099 = vld [vmem:[%s17 + $0x290] sm:$0xff]
  %v2100 = vld [vmem:[%s17 + $0x298] sm:$0xff]
  %v2101 = vld [vmem:[%s17 + $0x2a0] sm:$0xff]
  %v2102 = vld [vmem:[%s17 + $0x2a8] sm:$0xff]
  %v2103 = vld [vmem:[%s17 + $0x2b0] sm:$0xff]
  %v2104 = vld [vmem:[%s17 + $0x2b8] sm:$0xff]
  %v2105 = vld [vmem:[%s17 + $0x2c0] sm:$0xff]
  %v2106 = vld [vmem:[%s17 + $0x2c8] sm:$0xff]
  %v2107 = vld [vmem:[%s17 + $0x2d0] sm:$0xff]
  %v2108 = vld [vmem:[%s17 + $0x2d8] sm:$0xff]
  %v2109 = vld [vmem:[%s17 + $0x2e0] sm:$0xff]
  %v2110 = vld [vmem:[%s17 + $0x2e8] sm:$0xff]
  %v2111 = vld [vmem:[%s17 + $0x2f0] sm:$0xff]
  %v2112 = vld [vmem:[%s17 + $0x2f8] sm:$0xff]
  %v2113 = vld [vmem:[%s17 + $0x300] sm:$0xff]
  %v2114 = vld [vmem:[%s17 + $0x308] sm:$0xff]
  %v2115 = vld [vmem:[%s17 + $0x310] sm:$0xff]
  %v2116 = vld [vmem:[%s17 + $0x318] sm:$0xff]
  %v2117 = vld [vmem:[%s17 + $0x320] sm:$0xff]
  %v2118 = vld [vmem:[%s17 + $0x328] sm:$0xff]
  %v2119 = vld [vmem:[%s17 + $0x330] sm:$0xff]
  %v2120 = vld [vmem:[%s17 + $0x338] sm:$0xff]
  %v2121 = vld [vmem:[%s17 + $0x340] sm:$0xff]
  %v2122 = vld [vmem:[%s17 + $0x348] sm:$0xff]
  %v2123 = vld [vmem:[%s17 + $0x350] sm:$0xff]
  %v2124 = vld [vmem:[%s17 + $0x358] sm:$0xff]
  %v2125 = vld [vmem:[%s17 + $0x360] sm:$0xff]
  %v2126 = vld [vmem:[%s17 + $0x368] sm:$0xff]
  %v2127 = vld [vmem:[%s17 + $0x370] sm:$0xff]
  %v2128 = vld [vmem:[%s17 + $0x378] sm:$0xff]
  %v2129 = vld [vmem:[%s17 + $0x380] sm:$0xff]
  %v2130 = vld [vmem:[%s17 + $0x388] sm:$0xff]
  %v2131 = vld [vmem:[%s17 + $0x390] sm:$0xff]
  %v2132 = vld [vmem:[%s17 + $0x398] sm:$0xff]
  %v2133 = vld [vmem:[%s17 + $0x3a0] sm:$0xff]
  %v2134 = vld [vmem:[%s17 + $0x3a8] sm:$0xff]
  %v2135 = vld [vmem:[%s17 + $0x3b0] sm:$0xff]
  %v2136 = vld [vmem:[%s17 + $0x3b8] sm:$0xff]
  %v2137 = vld [vmem:[%s17 + $0x3c0] sm:$0xff]
  %v2138 = vld [vmem:[%s17 + $0x3c8] sm:$0xff]
  %v2139 = vld [vmem:[%s17 + $0x3d0] sm:$0xff]
  %v2140 = vld [vmem:[%s17 + $0x3d8] sm:$0xff]
  %v2141 = vld [vmem:[%s17 + $0x3e0] sm:$0xff]
  %v2142 = vld [vmem:[%s17 + $0x3e8] sm:$0xff]
  %v2143 = vld [vmem:[%s17 + $0x3f0] sm:$0xff]
  %v2144 = vld [vmem:[%s17 + $0x3f8] sm:$0xff]
  %v2145 = vld [vmem:[%s18] sm:$0xf]
  %v2147 = vlaneseq
  %v2148 = vshrl.u32 %v2147, 7
  %v2149 = vsub.s32 0, %v2148
  %v2150 = vrot.slane %v2145, %v2149
  %v2151 = vlaneseq
  %v2152 = vshrl.u32 %v2151, 7
  %v2153 = vsub.s32 1, %v2152
  %v2154 = vrot.slane %v2145, %v2153
  %v2155 = vlaneseq
  %v2156 = vshrl.u32 %v2155, 7
  %v2157 = vsub.s32 2, %v2156
  %v2158 = vrot.slane %v2145, %v2157
  %v2159 = vlaneseq
  %v2160 = vshrl.u32 %v2159, 7
  %v2161 = vsub.s32 3, %v2160
  %v2162 = vrot.slane %v2145, %v2161
  %v2175 = vunpack.c.l.b16 %v2009
  %v2176 = vunpack.c.l.b16 %v2010
  %v2177 = vunpack.c.l.b16 %v2011
  %v2178 = vunpack.c.l.b16 %v2012
  %v2179 = vunpack.c.l.b16 %v2013
  %v2180 = vunpack.c.l.b16 %v2014
  %v2181 = vunpack.c.l.b16 %v2015
  %v2182 = vunpack.c.l.b16 %v2016
  %v2183 = vrot.slane %v2179, 7
  %vm2184 = vcmask 1041409
  %v2185 = vsel %vm2184, %v2183, %v2175
  %v2186 = vrot.slane %v2180, 7
  %v2187 = vsel %vm2184, %v2186, %v2176
  %v2188 = vrot.slane %v2181, 7
  %v2189 = vsel %vm2184, %v2188, %v2177
  %v2190 = vrot.slane %v2182, 7
  %v2191 = vsel %vm2184, %v2190, %v2178
  %v2192 = vpack.c.b16 %v2185, %v2185
  %v2193 = vpack.c.b16 %v2187, %v2187
  %v2194 = vpack.c.b16 %v2189, %v2189
  %v2195 = vpack.c.b16 %v2191, %v2191
  %v2328 = vunpack.c.l.b16 %v2017
  %v2329 = vunpack.c.h.b16 %v2017
  %v2330 = vunpack.c.l.b16 %v2018
  %v2331 = vunpack.c.h.b16 %v2018
  %v2332 = vunpack.c.l.b16 %v2019
  %v2333 = vunpack.c.h.b16 %v2019
  %v2334 = vunpack.c.l.b16 %v2020
  %v2335 = vunpack.c.h.b16 %v2020
  %v2336 = vunpack.c.l.b16 %v2021
  %v2337 = vunpack.c.h.b16 %v2021
  %v2338 = vunpack.c.l.b16 %v2022
  %v2339 = vunpack.c.h.b16 %v2022
  %v2340 = vunpack.c.l.b16 %v2023
  %v2341 = vunpack.c.h.b16 %v2023
  %v2342 = vunpack.c.l.b16 %v2024
  %v2343 = vunpack.c.h.b16 %v2024
  %v2344 = vunpack.c.l.b16 %v2025
  %v2345 = vunpack.c.h.b16 %v2025
  %v2346 = vunpack.c.l.b16 %v2026
  %v2347 = vunpack.c.h.b16 %v2026
  %v2348 = vunpack.c.l.b16 %v2027
  %v2349 = vunpack.c.h.b16 %v2027
  %v2350 = vunpack.c.l.b16 %v2028
  %v2351 = vunpack.c.h.b16 %v2028
  %v2352 = vunpack.c.l.b16 %v2029
  %v2353 = vunpack.c.h.b16 %v2029
  %v2354 = vunpack.c.l.b16 %v2030
  %v2355 = vunpack.c.h.b16 %v2030
  %v2356 = vunpack.c.l.b16 %v2031
  %v2357 = vunpack.c.h.b16 %v2031
  %v2358 = vunpack.c.l.b16 %v2032
  %v2359 = vunpack.c.h.b16 %v2032
  %v2360 = vunpack.c.l.b16 %v2033
  %v2361 = vunpack.c.h.b16 %v2033
  %v2362 = vunpack.c.l.b16 %v2034
  %v2363 = vunpack.c.h.b16 %v2034
  %v2364 = vunpack.c.l.b16 %v2035
  %v2365 = vunpack.c.h.b16 %v2035
  %v2366 = vunpack.c.l.b16 %v2036
  %v2367 = vunpack.c.h.b16 %v2036
  %v2368 = vunpack.c.l.b16 %v2037
  %v2369 = vunpack.c.h.b16 %v2037
  %v2370 = vunpack.c.l.b16 %v2038
  %v2371 = vunpack.c.h.b16 %v2038
  %v2372 = vunpack.c.l.b16 %v2039
  %v2373 = vunpack.c.h.b16 %v2039
  %v2374 = vunpack.c.l.b16 %v2040
  %v2375 = vunpack.c.h.b16 %v2040
  %v2376 = vunpack.c.l.b16 %v2041
  %v2377 = vunpack.c.h.b16 %v2041
  %v2378 = vunpack.c.l.b16 %v2042
  %v2379 = vunpack.c.h.b16 %v2042
  %v2380 = vunpack.c.l.b16 %v2043
  %v2381 = vunpack.c.h.b16 %v2043
  %v2382 = vunpack.c.l.b16 %v2044
  %v2383 = vunpack.c.h.b16 %v2044
  %v2384 = vunpack.c.l.b16 %v2045
  %v2385 = vunpack.c.h.b16 %v2045
  %v2386 = vunpack.c.l.b16 %v2046
  %v2387 = vunpack.c.h.b16 %v2046
  %v2388 = vunpack.c.l.b16 %v2047
  %v2389 = vunpack.c.h.b16 %v2047
  %v2390 = vunpack.c.l.b16 %v2048
  %v2391 = vunpack.c.h.b16 %v2048
  %v2392 = vunpack.c.l.b16 %v2049
  %v2393 = vunpack.c.h.b16 %v2049
  %v2394 = vunpack.c.l.b16 %v2050
  %v2395 = vunpack.c.h.b16 %v2050
  %v2396 = vunpack.c.l.b16 %v2051
  %v2397 = vunpack.c.h.b16 %v2051
  %v2398 = vunpack.c.l.b16 %v2052
  %v2399 = vunpack.c.h.b16 %v2052
  %v2400 = vunpack.c.l.b16 %v2053
  %v2401 = vunpack.c.h.b16 %v2053
  %v2402 = vunpack.c.l.b16 %v2054
  %v2403 = vunpack.c.h.b16 %v2054
  %v2404 = vunpack.c.l.b16 %v2055
  %v2405 = vunpack.c.h.b16 %v2055
  %v2406 = vunpack.c.l.b16 %v2056
  %v2407 = vunpack.c.h.b16 %v2056
  %v2408 = vunpack.c.l.b16 %v2057
  %v2409 = vunpack.c.h.b16 %v2057
  %v2410 = vunpack.c.l.b16 %v2058
  %v2411 = vunpack.c.h.b16 %v2058
  %v2412 = vunpack.c.l.b16 %v2059
  %v2413 = vunpack.c.h.b16 %v2059
  %v2414 = vunpack.c.l.b16 %v2060
  %v2415 = vunpack.c.h.b16 %v2060
  %v2416 = vunpack.c.l.b16 %v2061
  %v2417 = vunpack.c.h.b16 %v2061
  %v2418 = vunpack.c.l.b16 %v2062
  %v2419 = vunpack.c.h.b16 %v2062
  %v2420 = vunpack.c.l.b16 %v2063
  %v2421 = vunpack.c.h.b16 %v2063
  %v2422 = vunpack.c.l.b16 %v2064
  %v2423 = vunpack.c.h.b16 %v2064
  %v2424 = vunpack.c.l.b16 %v2065
  %v2425 = vunpack.c.h.b16 %v2065
  %v2426 = vunpack.c.l.b16 %v2066
  %v2427 = vunpack.c.h.b16 %v2066
  %v2428 = vunpack.c.l.b16 %v2067
  %v2429 = vunpack.c.h.b16 %v2067
  %v2430 = vunpack.c.l.b16 %v2068
  %v2431 = vunpack.c.h.b16 %v2068
  %v2432 = vunpack.c.l.b16 %v2069
  %v2433 = vunpack.c.h.b16 %v2069
  %v2434 = vunpack.c.l.b16 %v2070
  %v2435 = vunpack.c.h.b16 %v2070
  %v2436 = vunpack.c.l.b16 %v2071
  %v2437 = vunpack.c.h.b16 %v2071
  %v2438 = vunpack.c.l.b16 %v2072
  %v2439 = vunpack.c.h.b16 %v2072
  %v2440 = vunpack.c.l.b16 %v2073
  %v2441 = vunpack.c.h.b16 %v2073
  %v2442 = vunpack.c.l.b16 %v2074
  %v2443 = vunpack.c.h.b16 %v2074
  %v2444 = vunpack.c.l.b16 %v2075
  %v2445 = vunpack.c.h.b16 %v2075
  %v2446 = vunpack.c.l.b16 %v2076
  %v2447 = vunpack.c.h.b16 %v2076
  %v2448 = vunpack.c.l.b16 %v2077
  %v2449 = vunpack.c.h.b16 %v2077
  %v2450 = vunpack.c.l.b16 %v2078
  %v2451 = vunpack.c.h.b16 %v2078
  %v2452 = vunpack.c.l.b16 %v2079
  %v2453 = vunpack.c.h.b16 %v2079
  %v2454 = vunpack.c.l.b16 %v2080
  %v2455 = vunpack.c.h.b16 %v2080
  %v2456 = vunpack.c.l.b16 %v2081
  %v2457 = vunpack.c.h.b16 %v2081
  %v2458 = vunpack.c.l.b16 %v2082
  %v2459 = vunpack.c.h.b16 %v2082
  %v2460 = vunpack.c.l.b16 %v2083
  %v2461 = vunpack.c.h.b16 %v2083
  %v2462 = vunpack.c.l.b16 %v2084
  %v2463 = vunpack.c.h.b16 %v2084
  %v2464 = vunpack.c.l.b16 %v2085
  %v2465 = vunpack.c.h.b16 %v2085
  %v2466 = vunpack.c.l.b16 %v2086
  %v2467 = vunpack.c.h.b16 %v2086
  %v2468 = vunpack.c.l.b16 %v2087
  %v2469 = vunpack.c.h.b16 %v2087
  %v2470 = vunpack.c.l.b16 %v2088
  %v2471 = vunpack.c.h.b16 %v2088
  %v2472 = vunpack.c.l.b16 %v2089
  %v2473 = vunpack.c.h.b16 %v2089
  %v2474 = vunpack.c.l.b16 %v2090
  %v2475 = vunpack.c.h.b16 %v2090
  %v2476 = vunpack.c.l.b16 %v2091
  %v2477 = vunpack.c.h.b16 %v2091
  %v2478 = vunpack.c.l.b16 %v2092
  %v2479 = vunpack.c.h.b16 %v2092
  %v2480 = vunpack.c.l.b16 %v2093
  %v2481 = vunpack.c.h.b16 %v2093
  %v2482 = vunpack.c.l.b16 %v2094
  %v2483 = vunpack.c.h.b16 %v2094
  %v2484 = vunpack.c.l.b16 %v2095
  %v2485 = vunpack.c.h.b16 %v2095
  %v2486 = vunpack.c.l.b16 %v2096
  %v2487 = vunpack.c.h.b16 %v2096
  %v2488 = vunpack.c.l.b16 %v2097
  %v2489 = vunpack.c.h.b16 %v2097
  %v2490 = vunpack.c.l.b16 %v2098
  %v2491 = vunpack.c.h.b16 %v2098
  %v2492 = vunpack.c.l.b16 %v2099
  %v2493 = vunpack.c.h.b16 %v2099
  %v2494 = vunpack.c.l.b16 %v2100
  %v2495 = vunpack.c.h.b16 %v2100
  %v2496 = vunpack.c.l.b16 %v2101
  %v2497 = vunpack.c.h.b16 %v2101
  %v2498 = vunpack.c.l.b16 %v2102
  %v2499 = vunpack.c.h.b16 %v2102
  %v2500 = vunpack.c.l.b16 %v2103
  %v2501 = vunpack.c.h.b16 %v2103
  %v2502 = vunpack.c.l.b16 %v2104
  %v2503 = vunpack.c.h.b16 %v2104
  %v2504 = vunpack.c.l.b16 %v2105
  %v2505 = vunpack.c.h.b16 %v2105
  %v2506 = vunpack.c.l.b16 %v2106
  %v2507 = vunpack.c.h.b16 %v2106
  %v2508 = vunpack.c.l.b16 %v2107
  %v2509 = vunpack.c.h.b16 %v2107
  %v2510 = vunpack.c.l.b16 %v2108
  %v2511 = vunpack.c.h.b16 %v2108
  %v2512 = vunpack.c.l.b16 %v2109
  %v2513 = vunpack.c.h.b16 %v2109
  %v2514 = vunpack.c.l.b16 %v2110
  %v2515 = vunpack.c.h.b16 %v2110
  %v2516 = vunpack.c.l.b16 %v2111
  %v2517 = vunpack.c.h.b16 %v2111
  %v2518 = vunpack.c.l.b16 %v2112
  %v2519 = vunpack.c.h.b16 %v2112
  %v2520 = vunpack.c.l.b16 %v2113
  %v2521 = vunpack.c.h.b16 %v2113
  %v2522 = vunpack.c.l.b16 %v2114
  %v2523 = vunpack.c.h.b16 %v2114
  %v2524 = vunpack.c.l.b16 %v2115
  %v2525 = vunpack.c.h.b16 %v2115
  %v2526 = vunpack.c.l.b16 %v2116
  %v2527 = vunpack.c.h.b16 %v2116
  %v2528 = vunpack.c.l.b16 %v2117
  %v2529 = vunpack.c.h.b16 %v2117
  %v2530 = vunpack.c.l.b16 %v2118
  %v2531 = vunpack.c.h.b16 %v2118
  %v2532 = vunpack.c.l.b16 %v2119
  %v2533 = vunpack.c.h.b16 %v2119
  %v2534 = vunpack.c.l.b16 %v2120
  %v2535 = vunpack.c.h.b16 %v2120
  %v2536 = vunpack.c.l.b16 %v2121
  %v2537 = vunpack.c.h.b16 %v2121
  %v2538 = vunpack.c.l.b16 %v2122
  %v2539 = vunpack.c.h.b16 %v2122
  %v2540 = vunpack.c.l.b16 %v2123
  %v2541 = vunpack.c.h.b16 %v2123
  %v2542 = vunpack.c.l.b16 %v2124
  %v2543 = vunpack.c.h.b16 %v2124
  %v2544 = vunpack.c.l.b16 %v2125
  %v2545 = vunpack.c.h.b16 %v2125
  %v2546 = vunpack.c.l.b16 %v2126
  %v2547 = vunpack.c.h.b16 %v2126
  %v2548 = vunpack.c.l.b16 %v2127
  %v2549 = vunpack.c.h.b16 %v2127
  %v2550 = vunpack.c.l.b16 %v2128
  %v2551 = vunpack.c.h.b16 %v2128
  %v2552 = vunpack.c.l.b16 %v2129
  %v2553 = vunpack.c.h.b16 %v2129
  %v2554 = vunpack.c.l.b16 %v2130
  %v2555 = vunpack.c.h.b16 %v2130
  %v2556 = vunpack.c.l.b16 %v2131
  %v2557 = vunpack.c.h.b16 %v2131
  %v2558 = vunpack.c.l.b16 %v2132
  %v2559 = vunpack.c.h.b16 %v2132
  %v2560 = vunpack.c.l.b16 %v2133
  %v2561 = vunpack.c.h.b16 %v2133
  %v2562 = vunpack.c.l.b16 %v2134
  %v2563 = vunpack.c.h.b16 %v2134
  %v2564 = vunpack.c.l.b16 %v2135
  %v2565 = vunpack.c.h.b16 %v2135
  %v2566 = vunpack.c.l.b16 %v2136
  %v2567 = vunpack.c.h.b16 %v2136
  %v2568 = vunpack.c.l.b16 %v2137
  %v2569 = vunpack.c.h.b16 %v2137
  %v2570 = vunpack.c.l.b16 %v2138
  %v2571 = vunpack.c.h.b16 %v2138
  %v2572 = vunpack.c.l.b16 %v2139
  %v2573 = vunpack.c.h.b16 %v2139
  %v2574 = vunpack.c.l.b16 %v2140
  %v2575 = vunpack.c.h.b16 %v2140
  %v2576 = vunpack.c.l.b16 %v2141
  %v2577 = vunpack.c.h.b16 %v2141
  %v2578 = vunpack.c.l.b16 %v2142
  %v2579 = vunpack.c.h.b16 %v2142
  %v2580 = vunpack.c.l.b16 %v2143
  %v2581 = vunpack.c.h.b16 %v2143
  %v2582 = vunpack.c.l.b16 %v2144
  %v2583 = vunpack.c.h.b16 %v2144
  %v2584 = vpack.c.b16 %v2332, %v2328
  %v2585 = vpack.c.b16 %v2333, %v2329
  %v2586 = vpack.c.b16 %v2334, %v2330
  %v2587 = vpack.c.b16 %v2335, %v2331
  %v2588 = vpack.c.b16 %v2340, %v2336
  %v2589 = vpack.c.b16 %v2341, %v2337
  %v2590 = vpack.c.b16 %v2342, %v2338
  %v2591 = vpack.c.b16 %v2343, %v2339
  %v2592 = vpack.c.b16 %v2348, %v2344
  %v2593 = vpack.c.b16 %v2349, %v2345
  %v2594 = vpack.c.b16 %v2350, %v2346
  %v2595 = vpack.c.b16 %v2351, %v2347
  %v2596 = vpack.c.b16 %v2356, %v2352
  %v2597 = vpack.c.b16 %v2357, %v2353
  %v2598 = vpack.c.b16 %v2358, %v2354
  %v2599 = vpack.c.b16 %v2359, %v2355
  %v2600 = vpack.c.b16 %v2364, %v2360
  %v2601 = vpack.c.b16 %v2365, %v2361
  %v2602 = vpack.c.b16 %v2366, %v2362
  %v2603 = vpack.c.b16 %v2367, %v2363
  %v2604 = vpack.c.b16 %v2372, %v2368
  %v2605 = vpack.c.b16 %v2373, %v2369
  %v2606 = vpack.c.b16 %v2374, %v2370
  %v2607 = vpack.c.b16 %v2375, %v2371
  %v2608 = vpack.c.b16 %v2380, %v2376
  %v2609 = vpack.c.b16 %v2381, %v2377
  %v2610 = vpack.c.b16 %v2382, %v2378
  %v2611 = vpack.c.b16 %v2383, %v2379
  %v2612 = vpack.c.b16 %v2388, %v2384
  %v2613 = vpack.c.b16 %v2389, %v2385
  %v2614 = vpack.c.b16 %v2390, %v2386
  %v2615 = vpack.c.b16 %v2391, %v2387
  %v2616 = vpack.c.b16 %v2396, %v2392
  %v2617 = vpack.c.b16 %v2397, %v2393
  %v2618 = vpack.c.b16 %v2398, %v2394
  %v2619 = vpack.c.b16 %v2399, %v2395
  %v2620 = vpack.c.b16 %v2404, %v2400
  %v2621 = vpack.c.b16 %v2405, %v2401
  %v2622 = vpack.c.b16 %v2406, %v2402
  %v2623 = vpack.c.b16 %v2407, %v2403
  %v2624 = vpack.c.b16 %v2412, %v2408
  %v2625 = vpack.c.b16 %v2413, %v2409
  %v2626 = vpack.c.b16 %v2414, %v2410
  %v2627 = vpack.c.b16 %v2415, %v2411
  %v2628 = vpack.c.b16 %v2420, %v2416
  %v2629 = vpack.c.b16 %v2421, %v2417
  %v2630 = vpack.c.b16 %v2422, %v2418
  %v2631 = vpack.c.b16 %v2423, %v2419
  %v2632 = vpack.c.b16 %v2428, %v2424
  %v2633 = vpack.c.b16 %v2429, %v2425
  %v2634 = vpack.c.b16 %v2430, %v2426
  %v2635 = vpack.c.b16 %v2431, %v2427
  %v2636 = vpack.c.b16 %v2436, %v2432
  %v2637 = vpack.c.b16 %v2437, %v2433
  %v2638 = vpack.c.b16 %v2438, %v2434
  %v2639 = vpack.c.b16 %v2439, %v2435
  %v2640 = vpack.c.b16 %v2444, %v2440
  %v2641 = vpack.c.b16 %v2445, %v2441
  %v2642 = vpack.c.b16 %v2446, %v2442
  %v2643 = vpack.c.b16 %v2447, %v2443
  %v2644 = vpack.c.b16 %v2452, %v2448
  %v2645 = vpack.c.b16 %v2453, %v2449
  %v2646 = vpack.c.b16 %v2454, %v2450
  %v2647 = vpack.c.b16 %v2455, %v2451
  %v2648 = vpack.c.b16 %v2460, %v2456
  %v2649 = vpack.c.b16 %v2461, %v2457
  %v2650 = vpack.c.b16 %v2462, %v2458
  %v2651 = vpack.c.b16 %v2463, %v2459
  %v2652 = vpack.c.b16 %v2468, %v2464
  %v2653 = vpack.c.b16 %v2469, %v2465
  %v2654 = vpack.c.b16 %v2470, %v2466
  %v2655 = vpack.c.b16 %v2471, %v2467
  %v2656 = vpack.c.b16 %v2476, %v2472
  %v2657 = vpack.c.b16 %v2477, %v2473
  %v2658 = vpack.c.b16 %v2478, %v2474
  %v2659 = vpack.c.b16 %v2479, %v2475
  %v2660 = vpack.c.b16 %v2484, %v2480
  %v2661 = vpack.c.b16 %v2485, %v2481
  %v2662 = vpack.c.b16 %v2486, %v2482
  %v2663 = vpack.c.b16 %v2487, %v2483
  %v2664 = vpack.c.b16 %v2492, %v2488
  %v2665 = vpack.c.b16 %v2493, %v2489
  %v2666 = vpack.c.b16 %v2494, %v2490
  %v2667 = vpack.c.b16 %v2495, %v2491
  %v2668 = vpack.c.b16 %v2500, %v2496
  %v2669 = vpack.c.b16 %v2501, %v2497
  %v2670 = vpack.c.b16 %v2502, %v2498
  %v2671 = vpack.c.b16 %v2503, %v2499
  %v2672 = vpack.c.b16 %v2508, %v2504
  %v2673 = vpack.c.b16 %v2509, %v2505
  %v2674 = vpack.c.b16 %v2510, %v2506
  %v2675 = vpack.c.b16 %v2511, %v2507
  %v2676 = vpack.c.b16 %v2516, %v2512
  %v2677 = vpack.c.b16 %v2517, %v2513
  %v2678 = vpack.c.b16 %v2518, %v2514
  %v2679 = vpack.c.b16 %v2519, %v2515
  %v2680 = vpack.c.b16 %v2524, %v2520
  %v2681 = vpack.c.b16 %v2525, %v2521
  %v2682 = vpack.c.b16 %v2526, %v2522
  %v2683 = vpack.c.b16 %v2527, %v2523
  %v2684 = vpack.c.b16 %v2532, %v2528
  %v2685 = vpack.c.b16 %v2533, %v2529
  %v2686 = vpack.c.b16 %v2534, %v2530
  %v2687 = vpack.c.b16 %v2535, %v2531
  %v2688 = vpack.c.b16 %v2540, %v2536
  %v2689 = vpack.c.b16 %v2541, %v2537
  %v2690 = vpack.c.b16 %v2542, %v2538
  %v2691 = vpack.c.b16 %v2543, %v2539
  %v2692 = vpack.c.b16 %v2548, %v2544
  %v2693 = vpack.c.b16 %v2549, %v2545
  %v2694 = vpack.c.b16 %v2550, %v2546
  %v2695 = vpack.c.b16 %v2551, %v2547
  %v2696 = vpack.c.b16 %v2556, %v2552
  %v2697 = vpack.c.b16 %v2557, %v2553
  %v2698 = vpack.c.b16 %v2558, %v2554
  %v2699 = vpack.c.b16 %v2559, %v2555
  %v2700 = vpack.c.b16 %v2564, %v2560
  %v2701 = vpack.c.b16 %v2565, %v2561
  %v2702 = vpack.c.b16 %v2566, %v2562
  %v2703 = vpack.c.b16 %v2567, %v2563
  %v2704 = vpack.c.b16 %v2572, %v2568
  %v2705 = vpack.c.b16 %v2573, %v2569
  %v2706 = vpack.c.b16 %v2574, %v2570
  %v2707 = vpack.c.b16 %v2575, %v2571
  %v2708 = vpack.c.b16 %v2580, %v2576
  %v2709 = vpack.c.b16 %v2581, %v2577
  %v2710 = vpack.c.b16 %v2582, %v2578
  %v2711 = vpack.c.b16 %v2583, %v2579
  %2840 = vmatprep.subr.bf16.mxu0 %v2585
  %2841 = vmatpush1.bf16.msra.mxu0 %v2584
  %2842 = vmatprep.subr.bf16.mxu0 %v2589
  %2843 = vmatpush1.bf16.msra.mxu0 %v2588
  %2844 = vmatprep.subr.bf16.mxu0 %v2593
  %2845 = vmatpush1.bf16.msra.mxu0 %v2592
  %2846 = vmatprep.subr.bf16.mxu0 %v2597
  %2847 = vmatpush1.bf16.msra.mxu0 %v2596
  %2848 = vmatprep.subr.bf16.mxu0 %v2601
  %2849 = vmatpush1.bf16.msra.mxu0 %v2600
  %2850 = vmatprep.subr.bf16.mxu0 %v2605
  %2851 = vmatpush1.bf16.msra.mxu0 %v2604
  %2852 = vmatprep.subr.bf16.mxu0 %v2609
  %2853 = vmatpush1.bf16.msra.mxu0 %v2608
  %2854 = vmatprep.subr.bf16.mxu0 %v2613
  %2855 = vmatpush1.bf16.msra.mxu0 %v2612
  %2856 = vmatprep.subr.bf16.mxu0 %v2617
  %2857 = vmatpush1.bf16.msra.mxu0 %v2616
  %2858 = vmatprep.subr.bf16.mxu0 %v2621
  %2859 = vmatpush1.bf16.msra.mxu0 %v2620
  %2860 = vmatprep.subr.bf16.mxu0 %v2625
  %2861 = vmatpush1.bf16.msra.mxu0 %v2624
  %2862 = vmatprep.subr.bf16.mxu0 %v2629
  %2863 = vmatpush1.bf16.msra.mxu0 %v2628
  %2864 = vmatprep.subr.bf16.mxu0 %v2633
  %2865 = vmatpush1.bf16.msra.mxu0 %v2632
  %2866 = vmatprep.subr.bf16.mxu0 %v2637
  %2867 = vmatpush1.bf16.msra.mxu0 %v2636
  %2868 = vmatprep.subr.bf16.mxu0 %v2641
  %2869 = vmatpush1.bf16.msra.mxu0 %v2640
  %2870 = vmatprep.subr.bf16.mxu0 %v2645
  %2871 = vmatpush1.bf16.msra.mxu0 %v2644
  %2872 = vmatprep.mubr.bf16.mxu0 %v2193
  %2873 = vmatmul.mubr.bf16.gmra.mrb[0].mxu0 %v2192
  %v2874 = vpop.f32.mrb[0].mxu0
  %v2875 = vadd.f32 %v2150, %v2874
  %v2876 = vpop.f32.mrb[0].mxu0
  %v2877 = vadd.f32 %v2154, %v2876
  %v2878 = vpop.f32.mrb[0].mxu0
  %v2879 = vpop.f32.mrb[0].mxu0
  %2880 = vdwg.mxu0
  %2881 = vmatprep.subr.bf16.mxu0 %v2649
  %2882 = vmatpush1.bf16.msra.mxu0 %v2648
  %2883 = vmatprep.subr.bf16.mxu0 %v2653
  %2884 = vmatpush1.bf16.msra.mxu0 %v2652
  %2885 = vmatprep.subr.bf16.mxu0 %v2657
  %2886 = vmatpush1.bf16.msra.mxu0 %v2656
  %2887 = vmatprep.subr.bf16.mxu0 %v2661
  %2888 = vmatpush1.bf16.msra.mxu0 %v2660
  %2889 = vmatprep.subr.bf16.mxu0 %v2665
  %2890 = vmatpush1.bf16.msra.mxu0 %v2664
  %2891 = vmatprep.subr.bf16.mxu0 %v2669
  %2892 = vmatpush1.bf16.msra.mxu0 %v2668
  %2893 = vmatprep.subr.bf16.mxu0 %v2673
  %2894 = vmatpush1.bf16.msra.mxu0 %v2672
  %2895 = vmatprep.subr.bf16.mxu0 %v2677
  %2896 = vmatpush1.bf16.msra.mxu0 %v2676
  %2897 = vmatprep.subr.bf16.mxu0 %v2681
  %2898 = vmatpush1.bf16.msra.mxu0 %v2680
  %2899 = vmatprep.subr.bf16.mxu0 %v2685
  %2900 = vmatpush1.bf16.msra.mxu0 %v2684
  %2901 = vmatprep.subr.bf16.mxu0 %v2689
  %2902 = vmatpush1.bf16.msra.mxu0 %v2688
  %2903 = vmatprep.subr.bf16.mxu0 %v2693
  %2904 = vmatpush1.bf16.msra.mxu0 %v2692
  %2905 = vmatprep.subr.bf16.mxu0 %v2697
  %2906 = vmatpush1.bf16.msra.mxu0 %v2696
  %2907 = vmatprep.subr.bf16.mxu0 %v2701
  %2908 = vmatpush1.bf16.msra.mxu0 %v2700
  %2909 = vmatprep.subr.bf16.mxu0 %v2705
  %2910 = vmatpush1.bf16.msra.mxu0 %v2704
  %2911 = vmatprep.subr.bf16.mxu0 %v2709
  %2912 = vmatpush1.bf16.msra.mxu0 %v2708
  %2913 = vmatprep.mubr.bf16.mxu0 %v2195
  %2914 = vmatmul.mubr.bf16.gmra.mrb[0].mxu0 %v2194
  %v2915 = vpop.f32.mrb[0].mxu0
  %v2916 = vadd.f32 %v2875, %v2915
  %v2917 = vpop.f32.mrb[0].mxu0
  %v2918 = vadd.f32 %v2877, %v2917
  %v2919 = vpop.f32.mrb[0].mxu0
  %v2920 = vpop.f32.mrb[0].mxu0
  %2921 = vdwg.mxu0
  %2922 = vmatprep.subr.bf16.mxu0 %v2587
  %2923 = vmatpush1.bf16.msra.mxu0 %v2586
  %2924 = vmatprep.subr.bf16.mxu0 %v2591
  %2925 = vmatpush1.bf16.msra.mxu0 %v2590
  %2926 = vmatprep.subr.bf16.mxu0 %v2595
  %2927 = vmatpush1.bf16.msra.mxu0 %v2594
  %2928 = vmatprep.subr.bf16.mxu0 %v2599
  %2929 = vmatpush1.bf16.msra.mxu0 %v2598
  %2930 = vmatprep.subr.bf16.mxu0 %v2603
  %2931 = vmatpush1.bf16.msra.mxu0 %v2602
  %2932 = vmatprep.subr.bf16.mxu0 %v2607
  %2933 = vmatpush1.bf16.msra.mxu0 %v2606
  %2934 = vmatprep.subr.bf16.mxu0 %v2611
  %2935 = vmatpush1.bf16.msra.mxu0 %v2610
  %2936 = vmatprep.subr.bf16.mxu0 %v2615
  %2937 = vmatpush1.bf16.msra.mxu0 %v2614
  %2938 = vmatprep.subr.bf16.mxu0 %v2619
  %2939 = vmatpush1.bf16.msra.mxu0 %v2618
  %2940 = vmatprep.subr.bf16.mxu0 %v2623
  %2941 = vmatpush1.bf16.msra.mxu0 %v2622
  %2942 = vmatprep.subr.bf16.mxu0 %v2627
  %2943 = vmatpush1.bf16.msra.mxu0 %v2626
  %2944 = vmatprep.subr.bf16.mxu0 %v2631
  %2945 = vmatpush1.bf16.msra.mxu0 %v2630
  %2946 = vmatprep.subr.bf16.mxu0 %v2635
  %2947 = vmatpush1.bf16.msra.mxu0 %v2634
  %2948 = vmatprep.subr.bf16.mxu0 %v2639
  %2949 = vmatpush1.bf16.msra.mxu0 %v2638
  %2950 = vmatprep.subr.bf16.mxu0 %v2643
  %2951 = vmatpush1.bf16.msra.mxu0 %v2642
  %2952 = vmatprep.subr.bf16.mxu0 %v2647
  %2953 = vmatpush1.bf16.msra.mxu0 %v2646
  %2954 = vmatprep.mubr.bf16.mxu0 %v2193
  %2955 = vmatmul.mubr.bf16.gmra.mrb[0].mxu0 %v2192
  %v2956 = vpop.f32.mrb[0].mxu0
  %v2957 = vadd.f32 %v2158, %v2956
  %v2958 = vpop.f32.mrb[0].mxu0
  %v2959 = vadd.f32 %v2162, %v2958
  %v2960 = vpop.f32.mrb[0].mxu0
  %v2961 = vpop.f32.mrb[0].mxu0
  %2962 = vdwg.mxu0
  %2963 = vmatprep.subr.bf16.mxu0 %v2651
  %2964 = vmatpush1.bf16.msra.mxu0 %v2650
  %2965 = vmatprep.subr.bf16.mxu0 %v2655
  %2966 = vmatpush1.bf16.msra.mxu0 %v2654
  %2967 = vmatprep.subr.bf16.mxu0 %v2659
  %2968 = vmatpush1.bf16.msra.mxu0 %v2658
  %2969 = vmatprep.subr.bf16.mxu0 %v2663
  %2970 = vmatpush1.bf16.msra.mxu0 %v2662
  %2971 = vmatprep.subr.bf16.mxu0 %v2667
  %2972 = vmatpush1.bf16.msra.mxu0 %v2666
  %2973 = vmatprep.subr.bf16.mxu0 %v2671
  %2974 = vmatpush1.bf16.msra.mxu0 %v2670
  %2975 = vmatprep.subr.bf16.mxu0 %v2675
  %2976 = vmatpush1.bf16.msra.mxu0 %v2674
  %2977 = vmatprep.subr.bf16.mxu0 %v2679
  %2978 = vmatpush1.bf16.msra.mxu0 %v2678
  %2979 = vmatprep.subr.bf16.mxu0 %v2683
  %2980 = vmatpush1.bf16.msra.mxu0 %v2682
  %2981 = vmatprep.subr.bf16.mxu0 %v2687
  %2982 = vmatpush1.bf16.msra.mxu0 %v2686
  %2983 = vmatprep.subr.bf16.mxu0 %v2691
  %2984 = vmatpush1.bf16.msra.mxu0 %v2690
  %2985 = vmatprep.subr.bf16.mxu0 %v2695
  %2986 = vmatpush1.bf16.msra.mxu0 %v2694
  %2987 = vmatprep.subr.bf16.mxu0 %v2699
  %2988 = vmatpush1.bf16.msra.mxu0 %v2698
  %2989 = vmatprep.subr.bf16.mxu0 %v2703
  %2990 = vmatpush1.bf16.msra.mxu0 %v2702
  %2991 = vmatprep.subr.bf16.mxu0 %v2707
  %2992 = vmatpush1.bf16.msra.mxu0 %v2706
  %2993 = vmatprep.subr.bf16.mxu0 %v2711
  %2994 = vmatpush1.bf16.msra.mxu0 %v2710
  %2995 = vmatprep.mubr.bf16.mxu0 %v2195
  %2996 = vmatmul.mubr.bf16.gmra.mrb[0].mxu0 %v2194
  %v2997 = vpop.f32.mrb[0].mxu0
  %v2998 = vadd.f32 %v2957, %v2997
  %v2999 = vpop.f32.mrb[0].mxu0
  %v3000 = vadd.f32 %v2959, %v2999
  %v3001 = vpop.f32.mrb[0].mxu0
  %v3002 = vpop.f32.mrb[0].mxu0
  %3003 = vdwg.mxu0
  %v3004 = vxor.u32 %v2998, 2147483648
  %v3005 = vxor.u32 %v3000, 2147483648
  %v3006 = vmul.f32 %v3004, 1.442695
  %v3007 = vpow.pop %v3006
  %v3008 = vmul.f32 %v3005, 1.442695
  %v3009 = vpow.pop %v3008
  %v3010 = vadd.f32 %v3007, 1.0
  %v3011 = vadd.f32 %v3009, 1.0
  %v3012 = vrcp.pop %v3010
  %v3013 = vmul.f32 1.0, %v3012
  %v3014 = vrcp.pop %v3011
  %v3015 = vmul.f32 1.0, %v3014
  %v3016 = vmul.f32 %v2916, %v3013
  %v3017 = vmul.f32 %v2918, %v3015
  %v3018 = vld [vmem:[%s19] sm:$0x3]
  %v3019 = vld [vmem:[%s20] sm:$0x3]
  %vm3020 = vcmask 1041408
  %v3021 = vsel %vm3020, %v3016, 0.0
  %v3022 = vsel %vm3020, %v3017, 0.0
  %v3023 = vadd.f32 %v3021, %v3022
  %3024 = vadd.xlane.f32.xlu0 %v3023
  %v3025 = vpop.xlane.xlu0 %3024
  %v3026 = vrcp.pop 256.0
  %v3027 = vmul.f32 %v3025, %v3026
  %v3028 = vsub.f32 %v3016, %v3027
  %v3029 = vsub.f32 %v3017, %v3027
  %v3030 = vmul.f32 %v3028, %v3028
  %v3031 = vmul.f32 %v3029, %v3029
  %v3032 = vsel %vm3020, %v3030, 0.0
  %v3033 = vsel %vm3020, %v3031, 0.0
  %v3034 = vadd.f32 %v3032, %v3033
  %3035 = vadd.xlane.f32.xlu0 %v3034
  %v3036 = vpop.xlane.xlu0 %3035
  %v3037 = vmul.f32 %v3036, %v3026
  %v3038 = vadd.f32 %v3037, 1e-05
  %v3039 = vrsqrt.pop %v3038
  %v3040 = vmul.f32 %v3028, %v3039
  %v3041 = vmul.f32 %v3029, %v3039
  %v3043 = vlaneseq
  %v3044 = vshrl.u32 %v3043, 7
  %v3045 = vsub.s32 0, %v3044
  %v3046 = vrot.slane %v3018, %v3045
  %v3047 = vlaneseq
  %v3048 = vshrl.u32 %v3047, 7
  %v3049 = vsub.s32 1, %v3048
  %v3050 = vrot.slane %v3018, %v3049
  %v3053 = vmul.f32 %v3040, %v3046
  %v3054 = vmul.f32 %v3041, %v3050
  %v3056 = vlaneseq
  %v3057 = vshrl.u32 %v3056, 7
  %v3058 = vsub.s32 0, %v3057
  %v3059 = vrot.slane %v3019, %v3058
  %v3060 = vlaneseq
  %v3061 = vshrl.u32 %v3060, 7
  %v3062 = vsub.s32 1, %v3061
  %v3063 = vrot.slane %v3019, %v3062
  %v3066 = vadd.f32 %v3053, %v3059
  %v3067 = vadd.f32 %v3054, %v3063
  %v3068 = vpack.c.bf16 %v3066, %v3066
  %v3069 = vpack.c.bf16 %v3067, %v3067
  %v3070 = vld [vmem:[%s21] sm:$0xff]
  %v3071 = vld [vmem:[%s21 + $0x8] sm:$0xff]
  %v3072 = vld [vmem:[%s21 + $0x10] sm:$0xff]
  %v3073 = vld [vmem:[%s21 + $0x18] sm:$0xff]
  %v3074 = vld [vmem:[%s21 + $0x20] sm:$0xff]
  %v3075 = vld [vmem:[%s21 + $0x28] sm:$0xff]
  %v3076 = vld [vmem:[%s21 + $0x30] sm:$0xff]
  %v3077 = vld [vmem:[%s21 + $0x38] sm:$0xff]
  %v3078 = vld [vmem:[%s21 + $0x40] sm:$0xff]
  %v3079 = vld [vmem:[%s21 + $0x48] sm:$0xff]
  %v3080 = vld [vmem:[%s21 + $0x50] sm:$0xff]
  %v3081 = vld [vmem:[%s21 + $0x58] sm:$0xff]
  %v3082 = vld [vmem:[%s21 + $0x60] sm:$0xff]
  %v3083 = vld [vmem:[%s21 + $0x68] sm:$0xff]
  %v3084 = vld [vmem:[%s21 + $0x70] sm:$0xff]
  %v3085 = vld [vmem:[%s21 + $0x78] sm:$0xff]
  %v3086 = vld [vmem:[%s21 + $0x80] sm:$0xff]
  %v3087 = vld [vmem:[%s21 + $0x88] sm:$0xff]
  %v3088 = vld [vmem:[%s21 + $0x90] sm:$0xff]
  %v3089 = vld [vmem:[%s21 + $0x98] sm:$0xff]
  %v3090 = vld [vmem:[%s21 + $0xa0] sm:$0xff]
  %v3091 = vld [vmem:[%s21 + $0xa8] sm:$0xff]
  %v3092 = vld [vmem:[%s21 + $0xb0] sm:$0xff]
  %v3093 = vld [vmem:[%s21 + $0xb8] sm:$0xff]
  %v3094 = vld [vmem:[%s21 + $0xc0] sm:$0xff]
  %v3095 = vld [vmem:[%s21 + $0xc8] sm:$0xff]
  %v3096 = vld [vmem:[%s21 + $0xd0] sm:$0xff]
  %v3097 = vld [vmem:[%s21 + $0xd8] sm:$0xff]
  %v3098 = vld [vmem:[%s21 + $0xe0] sm:$0xff]
  %v3099 = vld [vmem:[%s21 + $0xe8] sm:$0xff]
  %v3100 = vld [vmem:[%s21 + $0xf0] sm:$0xff]
  %v3101 = vld [vmem:[%s21 + $0xf8] sm:$0xff]
  %v3102 = vld [vmem:[%s22] sm:$0x3]
  %v3104 = vlaneseq
  %v3105 = vshrl.u32 %v3104, 7
  %v3106 = vsub.s32 0, %v3105
  %v3107 = vrot.slane %v3102, %v3106
  %v3108 = vlaneseq
  %v3109 = vshrl.u32 %v3108, 7
  %v3110 = vsub.s32 1, %v3109
  %v3111 = vrot.slane %v3102, %v3110
  %v3146 = vunpack.c.l.b16 %v3070
  %v3147 = vunpack.c.h.b16 %v3070
  %v3148 = vunpack.c.l.b16 %v3071
  %v3149 = vunpack.c.h.b16 %v3071
  %v3150 = vunpack.c.l.b16 %v3072
  %v3151 = vunpack.c.h.b16 %v3072
  %v3152 = vunpack.c.l.b16 %v3073
  %v3153 = vunpack.c.h.b16 %v3073
  %v3154 = vunpack.c.l.b16 %v3074
  %v3155 = vunpack.c.h.b16 %v3074
  %v3156 = vunpack.c.l.b16 %v3075
  %v3157 = vunpack.c.h.b16 %v3075
  %v3158 = vunpack.c.l.b16 %v3076
  %v3159 = vunpack.c.h.b16 %v3076
  %v3160 = vunpack.c.l.b16 %v3077
  %v3161 = vunpack.c.h.b16 %v3077
  %v3162 = vunpack.c.l.b16 %v3078
  %v3163 = vunpack.c.h.b16 %v3078
  %v3164 = vunpack.c.l.b16 %v3079
  %v3165 = vunpack.c.h.b16 %v3079
  %v3166 = vunpack.c.l.b16 %v3080
  %v3167 = vunpack.c.h.b16 %v3080
  %v3168 = vunpack.c.l.b16 %v3081
  %v3169 = vunpack.c.h.b16 %v3081
  %v3170 = vunpack.c.l.b16 %v3082
  %v3171 = vunpack.c.h.b16 %v3082
  %v3172 = vunpack.c.l.b16 %v3083
  %v3173 = vunpack.c.h.b16 %v3083
  %v3174 = vunpack.c.l.b16 %v3084
  %v3175 = vunpack.c.h.b16 %v3084
  %v3176 = vunpack.c.l.b16 %v3085
  %v3177 = vunpack.c.h.b16 %v3085
  %v3178 = vunpack.c.l.b16 %v3086
  %v3179 = vunpack.c.h.b16 %v3086
  %v3180 = vunpack.c.l.b16 %v3087
  %v3181 = vunpack.c.h.b16 %v3087
  %v3182 = vunpack.c.l.b16 %v3088
  %v3183 = vunpack.c.h.b16 %v3088
  %v3184 = vunpack.c.l.b16 %v3089
  %v3185 = vunpack.c.h.b16 %v3089
  %v3186 = vunpack.c.l.b16 %v3090
  %v3187 = vunpack.c.h.b16 %v3090
  %v3188 = vunpack.c.l.b16 %v3091
  %v3189 = vunpack.c.h.b16 %v3091
  %v3190 = vunpack.c.l.b16 %v3092
  %v3191 = vunpack.c.h.b16 %v3092
  %v3192 = vunpack.c.l.b16 %v3093
  %v3193 = vunpack.c.h.b16 %v3093
  %v3194 = vunpack.c.l.b16 %v3094
  %v3195 = vunpack.c.h.b16 %v3094
  %v3196 = vunpack.c.l.b16 %v3095
  %v3197 = vunpack.c.h.b16 %v3095
  %v3198 = vunpack.c.l.b16 %v3096
  %v3199 = vunpack.c.h.b16 %v3096
  %v3200 = vunpack.c.l.b16 %v3097
  %v3201 = vunpack.c.h.b16 %v3097
  %v3202 = vunpack.c.l.b16 %v3098
  %v3203 = vunpack.c.h.b16 %v3098
  %v3204 = vunpack.c.l.b16 %v3099
  %v3205 = vunpack.c.h.b16 %v3099
  %v3206 = vunpack.c.l.b16 %v3100
  %v3207 = vunpack.c.h.b16 %v3100
  %v3208 = vunpack.c.l.b16 %v3101
  %v3209 = vunpack.c.h.b16 %v3101
  %v3210 = vpack.c.b16 %v3148, %v3146
  %v3211 = vpack.c.b16 %v3149, %v3147
  %v3212 = vpack.c.b16 %v3152, %v3150
  %v3213 = vpack.c.b16 %v3153, %v3151
  %v3214 = vpack.c.b16 %v3156, %v3154
  %v3215 = vpack.c.b16 %v3157, %v3155
  %v3216 = vpack.c.b16 %v3160, %v3158
  %v3217 = vpack.c.b16 %v3161, %v3159
  %v3218 = vpack.c.b16 %v3164, %v3162
  %v3219 = vpack.c.b16 %v3165, %v3163
  %v3220 = vpack.c.b16 %v3168, %v3166
  %v3221 = vpack.c.b16 %v3169, %v3167
  %v3222 = vpack.c.b16 %v3172, %v3170
  %v3223 = vpack.c.b16 %v3173, %v3171
  %v3224 = vpack.c.b16 %v3176, %v3174
  %v3225 = vpack.c.b16 %v3177, %v3175
  %v3226 = vpack.c.b16 %v3180, %v3178
  %v3227 = vpack.c.b16 %v3181, %v3179
  %v3228 = vpack.c.b16 %v3184, %v3182
  %v3229 = vpack.c.b16 %v3185, %v3183
  %v3230 = vpack.c.b16 %v3188, %v3186
  %v3231 = vpack.c.b16 %v3189, %v3187
  %v3232 = vpack.c.b16 %v3192, %v3190
  %v3233 = vpack.c.b16 %v3193, %v3191
  %v3234 = vpack.c.b16 %v3196, %v3194
  %v3235 = vpack.c.b16 %v3197, %v3195
  %v3236 = vpack.c.b16 %v3200, %v3198
  %v3237 = vpack.c.b16 %v3201, %v3199
  %v3238 = vpack.c.b16 %v3204, %v3202
  %v3239 = vpack.c.b16 %v3205, %v3203
  %v3240 = vpack.c.b16 %v3208, %v3206
  %v3241 = vpack.c.b16 %v3209, %v3207
  %3274 = vmatprep.subr.bf16.mxu0 %v3211
  %3275 = vmatpush1.bf16.msra.mxu0 %v3210
  %3276 = vmatprep.subr.bf16.mxu0 %v3213
  %3277 = vmatpush1.bf16.msra.mxu0 %v3212
  %3278 = vmatprep.subr.bf16.mxu0 %v3215
  %3279 = vmatpush1.bf16.msra.mxu0 %v3214
  %3280 = vmatprep.subr.bf16.mxu0 %v3217
  %3281 = vmatpush1.bf16.msra.mxu0 %v3216
  %3282 = vmatprep.subr.bf16.mxu0 %v3219
  %3283 = vmatpush1.bf16.msra.mxu0 %v3218
  %3284 = vmatprep.subr.bf16.mxu0 %v3221
  %3285 = vmatpush1.bf16.msra.mxu0 %v3220
  %3286 = vmatprep.subr.bf16.mxu0 %v3223
  %3287 = vmatpush1.bf16.msra.mxu0 %v3222
  %3288 = vmatprep.subr.bf16.mxu0 %v3225
  %3289 = vmatpush1.bf16.msra.mxu0 %v3224
  %3290 = vmatprep.subr.bf16.mxu0 %v3227
  %3291 = vmatpush1.bf16.msra.mxu0 %v3226
  %3292 = vmatprep.subr.bf16.mxu0 %v3229
  %3293 = vmatpush1.bf16.msra.mxu0 %v3228
  %3294 = vmatprep.subr.bf16.mxu0 %v3231
  %3295 = vmatpush1.bf16.msra.mxu0 %v3230
  %3296 = vmatprep.subr.bf16.mxu0 %v3233
  %3297 = vmatpush1.bf16.msra.mxu0 %v3232
  %3298 = vmatprep.subr.bf16.mxu0 %v3235
  %3299 = vmatpush1.bf16.msra.mxu0 %v3234
  %3300 = vmatprep.subr.bf16.mxu0 %v3237
  %3301 = vmatpush1.bf16.msra.mxu0 %v3236
  %3302 = vmatprep.subr.bf16.mxu0 %v3239
  %3303 = vmatpush1.bf16.msra.mxu0 %v3238
  %3304 = vmatprep.subr.bf16.mxu0 %v3241
  %3305 = vmatpush1.bf16.msra.mxu0 %v3240
  %3306 = vmatprep.mubr.bf16.mxu0 %v3069
  %3307 = vmatmul.mubr.bf16.gmra.mrb[0].mxu0 %v3068
  %v3308 = vpop.f32.mrb[0].mxu0
  %v3309 = vadd.f32 %v3107, %v3308
  %v3310 = vpop.f32.mrb[0].mxu0
  %v3311 = vadd.f32 %v3111, %v3310
  %v3312 = vpop.f32.mrb[0].mxu0
  %v3313 = vpop.f32.mrb[0].mxu0
  %3314 = vdwg.mxu0
  %v3315 = vmax.f32 %v3309, 0.0
  %v3316 = vmax.f32 %v3311, 0.0
  %v3317 = vpack.c.bf16 %v3315, %v3315
  %v3318 = vpack.c.bf16 %v3316, %v3316
  %v3319 = vld [vmem:[%s23] sm:$0xf]
  %v3320 = vld [vmem:[%s23 + $0x4] sm:$0xf]
  %v3321 = vld [vmem:[%s23 + $0x8] sm:$0xf]
  %v3322 = vld [vmem:[%s23 + $0xc] sm:$0xf]
  %v3323 = vld [vmem:[%s23 + $0x10] sm:$0xf]
  %v3324 = vld [vmem:[%s23 + $0x14] sm:$0xf]
  %v3325 = vld [vmem:[%s23 + $0x18] sm:$0xf]
  %v3326 = vld [vmem:[%s23 + $0x1c] sm:$0xf]
  %v3327 = vld [vmem:[%s23 + $0x20] sm:$0xf]
  %v3328 = vld [vmem:[%s23 + $0x24] sm:$0xf]
  %v3329 = vld [vmem:[%s23 + $0x28] sm:$0xf]
  %v3330 = vld [vmem:[%s23 + $0x2c] sm:$0xf]
  %v3331 = vld [vmem:[%s23 + $0x30] sm:$0xf]
  %v3332 = vld [vmem:[%s23 + $0x34] sm:$0xf]
  %v3333 = vld [vmem:[%s23 + $0x38] sm:$0xf]
  %v3334 = vld [vmem:[%s23 + $0x3c] sm:$0xf]
  %v3335 = vld [vmem:[%s23 + $0x40] sm:$0xf]
  %v3336 = vld [vmem:[%s23 + $0x44] sm:$0xf]
  %v3337 = vld [vmem:[%s23 + $0x48] sm:$0xf]
  %v3338 = vld [vmem:[%s23 + $0x4c] sm:$0xf]
  %v3339 = vld [vmem:[%s23 + $0x50] sm:$0xf]
  %v3340 = vld [vmem:[%s23 + $0x54] sm:$0xf]
  %v3341 = vld [vmem:[%s23 + $0x58] sm:$0xf]
  %v3342 = vld [vmem:[%s23 + $0x5c] sm:$0xf]
  %v3343 = vld [vmem:[%s23 + $0x60] sm:$0xf]
  %v3344 = vld [vmem:[%s23 + $0x64] sm:$0xf]
  %v3345 = vld [vmem:[%s23 + $0x68] sm:$0xf]
  %v3346 = vld [vmem:[%s23 + $0x6c] sm:$0xf]
  %v3347 = vld [vmem:[%s23 + $0x70] sm:$0xf]
  %v3348 = vld [vmem:[%s23 + $0x74] sm:$0xf]
  %v3349 = vld [vmem:[%s23 + $0x78] sm:$0xf]
  %v3350 = vld [vmem:[%s23 + $0x7c] sm:$0xf]
  %v3351 = vld [vmem:[#allocation2] sm:$0x1]
  %v3353 = vlaneseq
  %v3354 = vshrl.u32 %v3353, 7
  %v3355 = vsub.s32 0, %v3354
  %v3356 = vrot.slane %v3351, %v3355
  %v3390 = vunpack.c.l.b16 %v3319
  %v3391 = vunpack.c.l.b16 %v3320
  %v3392 = vunpack.c.l.b16 %v3321
  %v3393 = vunpack.c.l.b16 %v3322
  %v3394 = vunpack.c.l.b16 %v3323
  %v3395 = vunpack.c.l.b16 %v3324
  %v3396 = vunpack.c.l.b16 %v3325
  %v3397 = vunpack.c.l.b16 %v3326
  %v3398 = vunpack.c.l.b16 %v3327
  %v3399 = vunpack.c.l.b16 %v3328
  %v3400 = vunpack.c.l.b16 %v3329
  %v3401 = vunpack.c.l.b16 %v3330
  %v3402 = vunpack.c.l.b16 %v3331
  %v3403 = vunpack.c.l.b16 %v3332
  %v3404 = vunpack.c.l.b16 %v3333
  %v3405 = vunpack.c.l.b16 %v3334
  %v3406 = vunpack.c.l.b16 %v3335
  %v3407 = vunpack.c.l.b16 %v3336
  %v3408 = vunpack.c.l.b16 %v3337
  %v3409 = vunpack.c.l.b16 %v3338
  %v3410 = vunpack.c.l.b16 %v3339
  %v3411 = vunpack.c.l.b16 %v3340
  %v3412 = vunpack.c.l.b16 %v3341
  %v3413 = vunpack.c.l.b16 %v3342
  %v3414 = vunpack.c.l.b16 %v3343
  %v3415 = vunpack.c.l.b16 %v3344
  %v3416 = vunpack.c.l.b16 %v3345
  %v3417 = vunpack.c.l.b16 %v3346
  %v3418 = vunpack.c.l.b16 %v3347
  %v3419 = vunpack.c.l.b16 %v3348
  %v3420 = vunpack.c.l.b16 %v3349
  %v3421 = vunpack.c.l.b16 %v3350
  %v3422 = vpack.c.b16 %v3391, %v3390
  %v3423 = vpack.c.b16 %v3393, %v3392
  %v3424 = vpack.c.b16 %v3395, %v3394
  %v3425 = vpack.c.b16 %v3397, %v3396
  %v3426 = vpack.c.b16 %v3399, %v3398
  %v3427 = vpack.c.b16 %v3401, %v3400
  %v3428 = vpack.c.b16 %v3403, %v3402
  %v3429 = vpack.c.b16 %v3405, %v3404
  %v3430 = vpack.c.b16 %v3407, %v3406
  %v3431 = vpack.c.b16 %v3409, %v3408
  %v3432 = vpack.c.b16 %v3411, %v3410
  %v3433 = vpack.c.b16 %v3413, %v3412
  %v3434 = vpack.c.b16 %v3415, %v3414
  %v3435 = vpack.c.b16 %v3417, %v3416
  %v3436 = vpack.c.b16 %v3419, %v3418
  %v3437 = vpack.c.b16 %v3421, %v3420
  %3454 = vmatprep.subr.bf16.mxu0 0
  %3455 = vmatpush1.bf16.msra.mxu0 %v3422
  %3456 = vmatprep.subr.bf16.mxu0 0
  %3457 = vmatpush1.bf16.msra.mxu0 %v3423
  %3458 = vmatprep.subr.bf16.mxu0 0
  %3459 = vmatpush1.bf16.msra.mxu0 %v3424
  %3460 = vmatprep.subr.bf16.mxu0 0
  %3461 = vmatpush1.bf16.msra.mxu0 %v3425
  %3462 = vmatprep.subr.bf16.mxu0 0
  %3463 = vmatpush1.bf16.msra.mxu0 %v3426
  %3464 = vmatprep.subr.bf16.mxu0 0
  %3465 = vmatpush1.bf16.msra.mxu0 %v3427
  %3466 = vmatprep.subr.bf16.mxu0 0
  %3467 = vmatpush1.bf16.msra.mxu0 %v3428
  %3468 = vmatprep.subr.bf16.mxu0 0
  %3469 = vmatpush1.bf16.msra.mxu0 %v3429
  %3470 = vmatprep.subr.bf16.mxu0 0
  %3471 = vmatpush1.bf16.msra.mxu0 %v3430
  %3472 = vmatprep.subr.bf16.mxu0 0
  %3473 = vmatpush1.bf16.msra.mxu0 %v3431
  %3474 = vmatprep.subr.bf16.mxu0 0
  %3475 = vmatpush1.bf16.msra.mxu0 %v3432
  %3476 = vmatprep.subr.bf16.mxu0 0
  %3477 = vmatpush1.bf16.msra.mxu0 %v3433
  %3478 = vmatprep.subr.bf16.mxu0 0
  %3479 = vmatpush1.bf16.msra.mxu0 %v3434
  %3480 = vmatprep.subr.bf16.mxu0 0
  %3481 = vmatpush1.bf16.msra.mxu0 %v3435
  %3482 = vmatprep.subr.bf16.mxu0 0
  %3483 = vmatpush1.bf16.msra.mxu0 %v3436
  %3484 = vmatprep.subr.bf16.mxu0 0
  %3485 = vmatpush1.bf16.msra.mxu0 %v3437
  %3486 = vmatprep.mubr.bf16.mxu0 %v3318
  %3487 = vmatmul.mubr.bf16.gmra.mrb[0].mxu0 %v3317
  %v3488 = vpop.f32.mrb[0].mxu0
  %v3489 = vadd.f32 %v3356, %v3488
  %v3490 = vpop.f32.mrb[0].mxu0
  %v3491 = vpop.f32.mrb[0].mxu0
  %v3492 = vpop.f32.mrb[0].mxu0
  %3493 = vdwg.mxu0
  %v3494 = vadd.f32 %v3489, 0.0
  %vm3495 = vcmask 1024
  %3496 = vst.msk [vmem:[%s25] sm:$0x3] %vm3495, %v3494
  // Predicated region
  $region102: #{_lambda_.1} parent=0 // pred_check
    _
  $region103: #{_lambda_.1} parent=0 // pred_check_branch
    %3498 = sbr.rel (0) target = $region105
  $region104: #{_lambda_.1} parent=0 // pred_region
    _
  $region105: #{_lambda_.1} parent=0 // pred_fallthru
    _
  // Predicated region
  $region106: #{_lambda_.1} parent=0 // pred_check
    _
  $region107: #{_lambda_.1} parent=0 // pred_check_branch
    %3500 = sbr.rel (0) target = $region109
  $region108: #{_lambda_.1} parent=0 // pred_region
    _
  $region109: #{_lambda_.1} parent=0 // pred_fallthru
    _

</llo_original>
